<compile_context>
chip_gen: v7x
topology: tpu7x:2x2x1
jax: 0.10.0
libtpu: 0.0.40
codegen_flags: <defaults>
</compile_context>

<pallas_src>
import functools

import jax
import jax.numpy as jnp
from jax import lax
from jax.experimental import pallas as pl
from jax.experimental.pallas import tpu as pltpu

_INV_SQRT2 = 0.7071067811865476


# ----------------------------------------------------------------------------
# Row tiling helpers
# ----------------------------------------------------------------------------
def _choose_rows(n, cap=1024):
    """Pick a row tile for the (N, C) channel-mixing kernels.

    Preference order:
      (a) the whole slab as one block when n <= cap (single grid step; no
          pointless split on single-TC chips),
      (b) the largest divisor of n that is a sublane multiple and <= cap
          (no pad / slice HBM copies),
      (c) a pad fallback (rare; only if n has no 8-multiple divisor <= cap).
    Returns (tile, padded_n).
    """
    if n <= cap:
        return n, n
    for t in range(cap, 7, -1):
        if n % t == 0 and t % 8 == 0:
            return t, n
    t = cap
    return t, -(-n // t) * t


def _prep_rows(arrs, cap=1024):
    n = arrs[0].shape[0]
    tn, n_pad = _choose_rows(n, cap)
    if n_pad != n:   # fallback only; costs one HBM copy per padded operand
        arrs = [jnp.pad(a, ((0, n_pad - n), (0, 0))) for a in arrs]
    return arrs, tn, n_pad


# ----------------------------------------------------------------------------
# Pallas kernels
# ----------------------------------------------------------------------------
def _linear_kernel(x_ref, w_ref, b_ref, o_ref, *, small_cin):
    x = x_ref[...].astype(jnp.float32)
    w = w_ref[...].astype(jnp.float32)
    b = b_ref[...].astype(jnp.float32)
    if small_cin:
        # fc0 has Cin=2: broadcast-FMAs on the VPU instead of a K=2 MXU matmul.
        acc = x[:, 0:1] * w[0:1, :]
        for k in range(1, x.shape[1]):
            acc = acc + x[:, k:k + 1] * w[k:k + 1, :]
        y = acc + b
    else:
        y = jnp.dot(x, w, preferred_element_type=jnp.float32) + b
    o_ref[...] = y.astype(o_ref.dtype)


def pallas_linear(x, w, b, out_dtype=None):
    """x: (N, Cin) @ w: (Cin, Cout) + b -> (N, Cout)."""
    N, Cin = x.shape
    Cout = w.shape[1]
    out_dtype = x.dtype if out_dtype is None else out_dtype
    (xp,), tn, Np = _prep_rows([x])
    out = pl.pallas_call(
        functools.partial(_linear_kernel, small_cin=Cin <= 4),
        out_shape=jax.ShapeDtypeStruct((Np, Cout), out_dtype),
        grid_spec=pltpu.PrefetchScalarGridSpec(
            num_scalar_prefetch=0,
            grid=(Np // tn,),
            in_specs=[
                pl.BlockSpec((tn, Cin), lambda i: (i, 0)),
                pl.BlockSpec((Cin, Cout), lambda i: (0, 0)),   # resident weight
                pl.BlockSpec((1, Cout), lambda i: (0, 0)),
            ],
            out_specs=pl.BlockSpec((tn, Cout), lambda i: (i, 0)),
        ),
        compiler_params=pltpu.CompilerParams(dimension_semantics=("parallel",)),
    )(xp, w, b.reshape(1, Cout))
    return out[:N] if Np != N else out


def _conv_add_gelu_kernel(x_ref, y1_ref, w_ref, b_ref, o_ref):
    x = x_ref[...].astype(jnp.float32)
    y2 = jnp.dot(x, w_ref[...].astype(jnp.float32),
                 preferred_element_type=jnp.float32) + b_ref[...].astype(jnp.float32)
    z = y1_ref[...].astype(jnp.float32) + y2
    g = 0.5 * z * (1.0 + lax.erf(z * _INV_SQRT2))   # exact (erf) GELU, as F.gelu
    o_ref[...] = g.astype(o_ref.dtype)


def pallas_conv_add_gelu(x, y1, w, b, out_dtype=None):
    """Fused 1x1 conv + residual add + GELU: gelu(x @ w + b + y1).  (Non-final layers.)"""
    N, C = x.shape
    Cout = w.shape[1]
    out_dtype = x.dtype if out_dtype is None else out_dtype
    (xp, y1p), tn, Np = _prep_rows([x, y1])
    out = pl.pallas_call(
        _conv_add_gelu_kernel,
        out_shape=jax.ShapeDtypeStruct((Np, Cout), out_dtype),
        grid_spec=pltpu.PrefetchScalarGridSpec(
            num_scalar_prefetch=0,
            grid=(Np // tn,),
            in_specs=[
                pl.BlockSpec((tn, C), lambda i: (i, 0)),
                pl.BlockSpec((tn, Cout), lambda i: (i, 0)),
                pl.BlockSpec((C, Cout), lambda i: (0, 0)),
                pl.BlockSpec((1, Cout), lambda i: (0, 0)),
            ],
            out_specs=pl.BlockSpec((tn, Cout), lambda i: (i, 0)),
        ),
        compiler_params=pltpu.CompilerParams(dimension_semantics=("parallel",)),
    )(xp, y1p, w, b.reshape(1, Cout))
    return out[:N] if Np != N else out


def _layer_head_kernel(x_ref, y1_ref, w0_ref, b0_ref, w1_ref, b1_ref,
                       w2_ref, b2_ref, o_ref, *, small_dout):
    """Fused final layer + head: gelu(x@w0+b0+y1) -> fc1 -> ReLU -> fc2.

    All intermediates ((tn, width) and (tn, 128)) live in VMEM only."""
    x = x_ref[...].astype(jnp.float32)
    z = jnp.dot(x, w0_ref[...].astype(jnp.float32),
                preferred_element_type=jnp.float32)
    z = z + b0_ref[...].astype(jnp.float32) + y1_ref[...].astype(jnp.float32)
    z = 0.5 * z * (1.0 + lax.erf(z * _INV_SQRT2))          # exact GELU
    h = jnp.dot(z, w1_ref[...].astype(jnp.float32),
                preferred_element_type=jnp.float32) + b1_ref[...].astype(jnp.float32)
    h = jnp.maximum(h, 0.0)                                 # ReLU after fc1 only
    w2 = w2_ref[...].astype(jnp.float32)
    if small_dout:
        # w2 is pre-transposed (Dout, C1): VPU mul + XLU lane reduce per column
        # (avoids a degenerate (tn,128)x(128,Dout<=4) MXU matmul).
        cols = [jnp.sum(h * w2[o:o + 1, :], axis=-1, keepdims=True)
                for o in range(w2.shape[0])]
        y = cols[0] if len(cols) == 1 else jnp.concatenate(cols, axis=-1)
    else:
        # w2 is (C1, Dout): MXU path for wider heads.
        y = jnp.dot(h, w2, preferred_element_type=jnp.float32)
    y = y + b2_ref[...].astype(jnp.float32)                 # no activation after fc2
    o_ref[...] = y.astype(o_ref.dtype)


def pallas_layer_head(x, y1, w0, b0, w1, b1, w2, w2t, b2, out_dtype=jnp.float32):
    """gelu(x@w0 + b0 + y1) -> relu(.@w1 + b1) -> .@w2 + b2, one pallas_call."""
    N, C = x.shape
    C1 = w1.shape[1]
    Dout = w2.shape[1]
    small_dout = Dout <= 4
    w2x = w2t if small_dout else w2          # pick the layout the kernel wants
    (xp, y1p), tn, Np = _prep_rows([x, y1])
    out = pl.pallas_call(
        functools.partial(_layer_head_kernel, small_dout=small_dout),
        out_shape=jax.ShapeDtypeStruct((Np, Dout), out_dtype),
        grid_spec=pltpu.PrefetchScalarGridSpec(
            num_scalar_prefetch=0,
            grid=(Np // tn,),
            in_specs=[
                pl.BlockSpec((tn, C), lambda i: (i, 0)),
                pl.BlockSpec((tn, C), lambda i: (i, 0)),
                pl.BlockSpec((C, C), lambda i: (0, 0)),
                pl.BlockSpec((1, C), lambda i: (0, 0)),
                pl.BlockSpec((C, C1), lambda i: (0, 0)),
                pl.BlockSpec((1, C1), lambda i: (0, 0)),
                pl.BlockSpec(w2x.shape, lambda i: (0, 0)),
                pl.BlockSpec((1, Dout), lambda i: (0, 0)),
            ],
            out_specs=pl.BlockSpec((tn, Dout), lambda i: (i, 0)),
        ),
        compiler_params=pltpu.CompilerParams(dimension_semantics=("parallel",)),
    )(xp, y1p, w0, b0.reshape(1, C), w1, b1.reshape(1, C1), w2x, b2.reshape(1, Dout))
    return out[:N] if Np != N else out


def _spectral_kernel(x_ref, w_ref, o_ref):
    """Block-complex spectral multiply for one (corner, mode-tile) grid step.

    x_ref: (1, Mt, B, 2Cin)  =  [xr | xi] along lanes
    w_ref: (1, Mt, 2Cin, 2Cout)  =  [[wr, wi], [-wi, wr]] per mode
    o_ref: (1, Mt, B, 2Cout) =  [real | imag] along lanes
    ONE batched dot per step (batch over modes, leading batch dim)."""
    x = x_ref[0]
    w = w_ref[0]
    dn = (((2,), (1,)), ((0,), (0,)))      # contract 2Cin, batch over modes
    y = lax.dot_general(x, w, dn, preferred_element_type=jnp.float32)
    o_ref[0] = y.astype(o_ref.dtype)


def pallas_spectral_mul(xb, wb, *, vmem_budget=12 * 1024 * 1024):
    """xb: (2, M, B, 2Cin) f32; wb: (2, M, 2Cin, 2Cout) f32 -> (2, M, B, 2Cout) f32.

    Grid = (corner, M-tile).  The M axis is tiled so the double-buffered
    weight + x + out blocks stay under a ~12 MiB VMEM budget (fits v7x's
    64 MiB and v5e's small default scoped limit); weight blocks are not
    re-fetched while their block index is unchanged."""
    _, M, B, Ci2 = xb.shape
    Co2 = wb.shape[-1]
    bytes_per_mode = 4 * (Ci2 * Co2 + B * Ci2 + B * Co2) * 2   # x2: double buffer
    mt = 1
    for t in range(M, 0, -1):
        if M % t == 0 and t * bytes_per_mode <= vmem_budget:
            mt = t
            break
    x_spec = pl.BlockSpec((1, mt, B, Ci2), lambda c, m: (c, m, 0, 0))
    w_spec = pl.BlockSpec((1, mt, Ci2, Co2), lambda c, m: (c, m, 0, 0))
    o_spec = pl.BlockSpec((1, mt, B, Co2), lambda c, m: (c, m, 0, 0))
    return pl.pallas_call(
        _spectral_kernel,
        out_shape=jax.ShapeDtypeStruct((2, M, B, Co2), jnp.float32),
        grid_spec=pltpu.PrefetchScalarGridSpec(
            num_scalar_prefetch=0,
            grid=(2, M // mt),                 # corners x mode tiles
            in_specs=[x_spec, w_spec],
            out_specs=o_spec,
        ),
        compiler_params=pltpu.CompilerParams(
            dimension_semantics=("parallel", "parallel"),   # disjoint outputs
            vmem_limit_bytes=32 * 1024 * 1024),
    )(xb, wb)


# ----------------------------------------------------------------------------
# Model forward (glue in plain JAX, hot paths in Pallas)
# ----------------------------------------------------------------------------
def spectral_conv2d(x, wb, m1, m2):
    """x: (B, H, W, Cin) -> (B, H, W, Cout); wb: (2, m1*m2, 2Cin, 2Cout) block-complex."""
    B, H, W, Cin = x.shape
    Cout = wb.shape[-1] // 2
    Wf = W // 2 + 1
    M = m1 * m2

    x_ft = jnp.fft.rfft2(x.astype(jnp.float32), axes=(1, 2))   # (B, H, Wf, Cin) c64
    lo = x_ft[:, :m1, :m2, :]
    hi = x_ft[:, H - m1:, :m2, :]
    corners = jnp.stack([lo, hi], axis=0)                      # (2, B, m1, m2, Cin)
    # [real | imag] along the channel/lane axis (block-complex input).
    xblk = jnp.concatenate([jnp.real(corners), jnp.imag(corners)], axis=-1)
    xblk = xblk.reshape(2, B, M, 2 * Cin).transpose(0, 2, 1, 3)  # (2, M, B, 2Cin)

    yblk = pallas_spectral_mul(xblk.astype(jnp.float32), wb)     # (2, M, B, 2Cout)
    yblk = yblk.transpose(0, 2, 1, 3).reshape(2, B, m1, m2, 2 * Cout)
    o_c = (yblk[..., :Cout] + 1j * yblk[..., Cout:]).astype(jnp.complex64)
    out_lo, out_hi = o_c[0], o_c[1]                              # (B, m1, m2, Cout)

    if H >= 2 * m1:
        # assemble out_ft via pad/concat instead of zeros + two scatters
        pad = ((0, 0), (0, 0), (0, Wf - m2), (0, 0))
        top = jnp.pad(out_lo, pad)
        bot = jnp.pad(out_hi, pad)
        mid = jnp.zeros((B, H - 2 * m1, Wf, Cout), jnp.complex64)
        out_ft = jnp.concatenate([top, mid, bot], axis=1)
    else:  # overlapping corners (rare): match PyTorch's write order
        out_ft = jnp.zeros((B, H, Wf, Cout), jnp.complex64)
        out_ft = out_ft.at[:, :m1, :m2, :].set(out_lo)
        out_ft = out_ft.at[:, H - m1:, :m2, :].set(out_hi)
    y = jnp.fft.irfft2(out_ft, s=(H, W), axes=(1, 2))
    return y


def fno2d_forward(x, params, m1, m2, act_dtype=jnp.float32):
    """x: (B, in_dim, H, W) NCHW (as in the PyTorch module) -> (B, 1, H, W).

    act_dtype=jnp.bfloat16 halves HBM traffic of the memory-bound channel-mixing
    kernels (math stays f32 in-kernel); default f32 matches PyTorch exactly."""
    layers = params["layers"]
    assert len(layers) >= 1, "FNO2d requires at least one Fourier layer"

    x = jnp.transpose(x, (0, 2, 3, 1))               # -> (B, H, W, in_dim)
    B, H, W, Din = x.shape
    N = B * H * W
    width = params["fc0_w"].shape[1]

    h = pallas_linear(x.reshape(N, Din).astype(act_dtype),
                      params["fc0_w"], params["fc0_b"], out_dtype=act_dtype)

    out = None
    nl = len(layers)
    for li, lp in enumerate(layers):
        y1 = spectral_conv2d(h.reshape(B, H, W, width).astype(jnp.float32),
                             lp["wb"], m1, m2)
        y1 = y1.reshape(N, width).astype(act_dtype)
        if li < nl - 1:
            h = pallas_conv_add_gelu(h, y1, lp["w0_w"], lp["w0_b"],
                                     out_dtype=act_dtype)
        else:
            # Last layer: fuse conv1x1 + add + GELU + fc1 + ReLU + fc2.
            out = pallas_layer_head(h, y1, lp["w0_w"], lp["w0_b"],
                                    params["fc1_w"], params["fc1_b"],
                                    params["fc2_w"], params["fc2_wt"],
                                    params["fc2_b"], out_dtype=jnp.float32)

    out = out.reshape(B, H, W, -1)
    return jnp.transpose(out, (0, 3, 1, 2))          # back to NCHW


# ----------------------------------------------------------------------------
# Deterministic parameter init (shapes match the PyTorch module)
# ----------------------------------------------------------------------------
def init_params(key, in_dim, width, modes1, modes2, nl, out_dim=1):
    def linear_init(k, fan_in, fan_out):
        kw, kb = jax.random.split(k)
        bound = fan_in ** -0.5
        w = jax.random.uniform(kw, (fan_in, fan_out), jnp.float32, -bound, bound)
        b = jax.random.uniform(kb, (fan_out,), jnp.float32, -bound, bound)
        return w, b

    M = modes1 * modes2
    keys = jax.random.split(key, 3 + nl)
    params = {}
    params["fc0_w"], params["fc0_b"] = linear_init(keys[0], in_dim, width)   # Linear(2, width)
    params["fc1_w"], params["fc1_b"] = linear_init(keys[1], width, 128)      # Linear(width, 128)
    params["fc2_w"], params["fc2_b"] = linear_init(keys[2], 128, out_dim)    # Linear(128, 1)
    params["fc2_wt"] = params["fc2_w"].T                                     # pre-transposed once

    scale = 1.0 / (width * width)
    layers = []
    for i in range(nl):
        k = jax.random.split(keys[3 + i], 5)

        # SpectralConv2d weights (torch.rand, cfloat), torch shape (in, out, m1, m2).
        # Pre-packed ONCE at init into the block-complex matrix
        #   W_block[m] = [[wr, wi], [-wi, wr]]  of shape (2Cin, 2Cout)
        # so the spectral kernel is a single real matmul per mode.
        def spec_w_block(kr, ki):
            r = scale * jax.random.uniform(kr, (width, width, modes1, modes2), jnp.float32)
            im = scale * jax.random.uniform(ki, (width, width, modes1, modes2), jnp.float32)
            r = r.transpose(2, 3, 0, 1).reshape(M, width, width)     # (M, Cin, Cout)
            im = im.transpose(2, 3, 0, 1).reshape(M, width, width)
            top = jnp.concatenate([r, im], axis=-1)                  # (M, Cin, 2Cout)
            bot = jnp.concatenate([-im, r], axis=-1)                 # (M, Cin, 2Cout)
            return jnp.concatenate([top, bot], axis=1)               # (M, 2Cin, 2Cout)

        w1b = spec_w_block(k[0], k[1])
        w2b = spec_w_block(k[2], k[3])
        w0_w, w0_b = linear_init(k[4], width, width)   # Conv1d(width, width, 1) as (Cin, Cout)
        layers.append({
            "wb": jnp.stack([w1b, w2b], axis=0),       # (2, M, 2Cin, 2Cout)
            "w0_w": w0_w, "w0_b": w0_b,
        })
    params["layers"] = layers
    return params


# ----------------------------------------------------------------------------
if __name__ == "__main__":
    # Small shapes consistent with the module: FNO2d(modes1=4, modes2=4, nl=2, width=32)
    B, H, W = 2, 16, 16
    in_dim, out_dim = 2, 1          # fc0 = Linear(2, width), fc2 = Linear(128, 1)
    modes1, modes2 = 4, 4
    nl, width = 2, 32

    key = jax.random.PRNGKey(0)
    kx, kp = jax.random.split(key)
    x = jax.random.normal(kx, (B, in_dim, H, W), dtype=jnp.float32)   # NCHW, like torch
    params = init_params(kp, in_dim, width, modes1, modes2, nl, out_dim)

    fwd = jax.jit(functools.partial(fno2d_forward, m1=modes1, m2=modes2))
    out = fwd(x, params)
    jax.block_until_ready(out)
    assert out.shape == (B, out_dim, H, W), out.shape
    assert bool(jnp.all(jnp.isfinite(out)))
    print("KERNEL_OK")
</pallas_src>

<mosaic_0001>
module attributes {stable_mosaic.version = 11 : i64} {
  func.func @_linear_kernel(%arg0: i32, %arg1: memref<512x2xf32, #tpu.memory_space<vmem>>, %arg2: memref<2x32xf32, #tpu.memory_space<vmem>>, %arg3: memref<1x32xf32, #tpu.memory_space<vmem>>, %arg4: memref<512x32xf32, #tpu.memory_space<vmem>>) attributes {dimension_semantics = [#tpu.dimension_semantics<parallel>], iteration_bounds = array<i64: 1>, scalar_prefetch = 0 : i64, scratch_operands = 0 : i64, tpu.core_type = #tpu.core_type<tc>, window_params = [{transform_indices = @transform_0, window_bounds = array<i64: 512, 2>}, {pipeline_mode = #tpu.pipeline_mode<synchronous>, transform_indices = @transform_1, window_bounds = array<i64: 2, 32>}, {pipeline_mode = #tpu.pipeline_mode<synchronous>, transform_indices = @transform_2, window_bounds = array<i64: 1, 32>}, {transform_indices = @transform_3, window_bounds = array<i64: 512, 32>}]} {
    %c0 = arith.constant 0 : index
    %c0_0 = arith.constant 0 : index
    %0 = vector.load %arg1[%c0, %c0_0] : memref<512x2xf32, #tpu.memory_space<vmem>>, vector<512x2xf32>
    %c0_1 = arith.constant 0 : index
    %c0_2 = arith.constant 0 : index
    %1 = vector.load %arg2[%c0_1, %c0_2] : memref<2x32xf32, #tpu.memory_space<vmem>>, vector<2x32xf32>
    %c0_3 = arith.constant 0 : index
    %c0_4 = arith.constant 0 : index
    %2 = vector.load %arg3[%c0_3, %c0_4] : memref<1x32xf32, #tpu.memory_space<vmem>>, vector<1x32xf32>
    %3 = vector.extract_strided_slice %0 {offsets = [0, 0], sizes = [512, 1], strides = [1, 1]} : vector<512x2xf32> to vector<512x1xf32>
    %4 = vector.extract_strided_slice %1 {offsets = [0, 0], sizes = [1, 32], strides = [1, 1]} : vector<2x32xf32> to vector<1x32xf32>
    %5 = vector.broadcast %3 : vector<512x1xf32> to vector<512x32xf32>
    %6 = vector.broadcast %4 : vector<1x32xf32> to vector<512x32xf32>
    %7 = arith.mulf %5, %6 : vector<512x32xf32>
    %8 = vector.extract_strided_slice %0 {offsets = [0, 1], sizes = [512, 1], strides = [1, 1]} : vector<512x2xf32> to vector<512x1xf32>
    %9 = vector.extract_strided_slice %1 {offsets = [1, 0], sizes = [1, 32], strides = [1, 1]} : vector<2x32xf32> to vector<1x32xf32>
    %10 = vector.broadcast %8 : vector<512x1xf32> to vector<512x32xf32>
    %11 = vector.broadcast %9 : vector<1x32xf32> to vector<512x32xf32>
    %12 = arith.mulf %10, %11 : vector<512x32xf32>
    %13 = arith.addf %7, %12 : vector<512x32xf32>
    %14 = vector.broadcast %2 : vector<1x32xf32> to vector<512x32xf32>
    %15 = arith.addf %13, %14 : vector<512x32xf32>
    %c0_5 = arith.constant 0 : index
    %c0_6 = arith.constant 0 : index
    %16 = vector.load %arg4[%c0_5, %c0_6] : memref<512x32xf32, #tpu.memory_space<vmem>>, vector<512x32xf32>
    tpu.vector_store %arg4[%c0_5, %c0_6], %15 {strides = array<i32>} : memref<512x32xf32, #tpu.memory_space<vmem>>, vector<512x32xf32>,
    return
  }
  func.func @transform_0(%arg0: i32) -> (i32, i32) {
    %c0_i32 = arith.constant 0 : i32
    %c0_i32_0 = arith.constant 0 : i32
    return %arg0, %c0_i32 : i32, i32
  }
  func.func @transform_1(%arg0: i32) -> (i32, i32) {
    %c0_i32 = arith.constant 0 : i32
    %c0_i32_0 = arith.constant 0 : i32
    %c0_i32_1 = arith.constant 0 : i32
    return %c0_i32, %c0_i32_0 : i32, i32
  }
  func.func @transform_2(%arg0: i32) -> (i32, i32) {
    %c0_i32 = arith.constant 0 : i32
    %c0_i32_0 = arith.constant 0 : i32
    %c0_i32_1 = arith.constant 0 : i32
    return %c0_i32, %c0_i32_0 : i32, i32
  }
  func.func @transform_3(%arg0: i32) -> (i32, i32) {
    %c0_i32 = arith.constant 0 : i32
    %c0_i32_0 = arith.constant 0 : i32
    return %arg0, %c0_i32 : i32, i32
  }
}

module attributes {stable_mosaic.version = 11 : i64} {
  func.func @_spectral_kernel(%arg0: i32, %arg1: i32, %arg2: memref<1x16x2x64xf32, #tpu.memory_space<vmem>>, %arg3: memref<1x16x64x64xf32, #tpu.memory_space<vmem>>, %arg4: memref<1x16x2x64xf32, #tpu.memory_space<vmem>>) attributes {dimension_semantics = [#tpu.dimension_semantics<parallel>, #tpu.dimension_semantics<parallel>], iteration_bounds = array<i64: 2, 1>, scalar_prefetch = 0 : i64, scratch_operands = 0 : i64, tpu.core_type = #tpu.core_type<tc>, window_params = [{transform_indices = @transform_0, window_bounds = array<i64: 1, 16, 2, 64>}, {transform_indices = @transform_1, window_bounds = array<i64: 1, 16, 64, 64>}, {transform_indices = @transform_2, window_bounds = array<i64: 1, 16, 2, 64>}]} {
    %c0 = arith.constant 0 : index
    %c0_0 = arith.constant 0 : index
    %c0_1 = arith.constant 0 : index
    %c0_2 = arith.constant 0 : index
    %0 = vector.load %arg2[%c0, %c0_0, %c0_1, %c0_2] : memref<1x16x2x64xf32, #tpu.memory_space<vmem>>, vector<1x16x2x64xf32>
    %1 = vector.shape_cast %0 : vector<1x16x2x64xf32> to vector<16x2x64xf32>
    %c0_3 = arith.constant 0 : index
    %c0_4 = arith.constant 0 : index
    %c0_5 = arith.constant 0 : index
    %c0_6 = arith.constant 0 : index
    %2 = vector.load %arg3[%c0_3, %c0_4, %c0_5, %c0_6] : memref<1x16x64x64xf32, #tpu.memory_space<vmem>>, vector<1x16x64x64xf32>
    %3 = vector.shape_cast %2 : vector<1x16x64x64xf32> to vector<16x64x64xf32>
    %cst = arith.constant dense<0.000000e+00> : vector<16x2x64xf32>
    %4 = tpu.matmul %1, %3, %cst {dimension_numbers = #tpu.dot_dimension_numbers<[2], [1], [1], [2], [0, 0, 0, 1, 1, 2], [0], [0]>} : vector<16x2x64xf32>, vector<16x64x64xf32>, vector<16x2x64xf32> -> vector<16x2x64xf32>
    %c0_7 = arith.constant 0 : index
    %c0_8 = arith.constant 0 : index
    %c0_9 = arith.constant 0 : index
    %c0_10 = arith.constant 0 : index
    %5 = vector.load %arg4[%c0_7, %c0_8, %c0_9, %c0_10] : memref<1x16x2x64xf32, #tpu.memory_space<vmem>>, vector<1x16x2x64xf32>
    %6 = vector.shape_cast %5 : vector<1x16x2x64xf32> to vector<16x2x64xf32>
    %7 = vector.shape_cast %4 : vector<16x2x64xf32> to vector<1x16x2x64xf32>
    tpu.vector_store %arg4[%c0_7, %c0_8, %c0_9, %c0_10], %7 {strides = array<i32>} : memref<1x16x2x64xf32, #tpu.memory_space<vmem>>, vector<1x16x2x64xf32>,
    return
  }
  func.func @transform_0(%arg0: i32, %arg1: i32) -> (i32, i32, i32, i32) {
    %c0_i32 = arith.constant 0 : i32
    %c0_i32_0 = arith.constant 0 : i32
    %c0_i32_1 = arith.constant 0 : i32
    return %arg0, %arg1, %c0_i32, %c0_i32_0 : i32, i32, i32, i32
  }
  func.func @transform_1(%arg0: i32, %arg1: i32) -> (i32, i32, i32, i32) {
    %c0_i32 = arith.constant 0 : i32
    %c0_i32_0 = arith.constant 0 : i32
    %c0_i32_1 = arith.constant 0 : i32
    return %arg0, %arg1, %c0_i32, %c0_i32_0 : i32, i32, i32, i32
  }
  func.func @transform_2(%arg0: i32, %arg1: i32) -> (i32, i32, i32, i32) {
    %c0_i32 = arith.constant 0 : i32
    %c0_i32_0 = arith.constant 0 : i32
    %c0_i32_1 = arith.constant 0 : i32
    return %arg0, %arg1, %c0_i32, %c0_i32_0 : i32, i32, i32, i32
  }
}

module attributes {stable_mosaic.version = 11 : i64} {
  func.func @_conv_add_gelu_kernel(%arg0: i32, %arg1: memref<512x32xf32, #tpu.memory_space<vmem>>, %arg2: memref<512x32xf32, #tpu.memory_space<vmem>>, %arg3: memref<32x32xf32, #tpu.memory_space<vmem>>, %arg4: memref<1x32xf32, #tpu.memory_space<vmem>>, %arg5: memref<512x32xf32, #tpu.memory_space<vmem>>) attributes {dimension_semantics = [#tpu.dimension_semantics<parallel>], iteration_bounds = array<i64: 1>, scalar_prefetch = 0 : i64, scratch_operands = 0 : i64, tpu.core_type = #tpu.core_type<tc>, window_params = [{transform_indices = @transform_0, window_bounds = array<i64: 512, 32>}, {transform_indices = @transform_1, window_bounds = array<i64: 512, 32>}, {pipeline_mode = #tpu.pipeline_mode<synchronous>, transform_indices = @transform_2, window_bounds = array<i64: 32, 32>}, {pipeline_mode = #tpu.pipeline_mode<synchronous>, transform_indices = @transform_3, window_bounds = array<i64: 1, 32>}, {transform_indices = @transform_4, window_bounds = array<i64: 512, 32>}]} {
    %c0 = arith.constant 0 : index
    %c0_0 = arith.constant 0 : index
    %0 = vector.load %arg1[%c0, %c0_0] : memref<512x32xf32, #tpu.memory_space<vmem>>, vector<512x32xf32>
    %c0_1 = arith.constant 0 : index
    %c0_2 = arith.constant 0 : index
    %1 = vector.load %arg3[%c0_1, %c0_2] : memref<32x32xf32, #tpu.memory_space<vmem>>, vector<32x32xf32>
    %cst = arith.constant dense<0.000000e+00> : vector<512x32xf32>
    %2 = tpu.matmul %0, %1, %cst {dimension_numbers = #tpu.dot_dimension_numbers<[1], [0], [0], [1], [0, 0, 1, 1], [], []>} : vector<512x32xf32>, vector<32x32xf32>, vector<512x32xf32> -> vector<512x32xf32>
    %c0_3 = arith.constant 0 : index
    %c0_4 = arith.constant 0 : index
    %3 = vector.load %arg4[%c0_3, %c0_4] : memref<1x32xf32, #tpu.memory_space<vmem>>, vector<1x32xf32>
    %4 = vector.broadcast %3 : vector<1x32xf32> to vector<512x32xf32>
    %5 = arith.addf %2, %4 : vector<512x32xf32>
    %c0_5 = arith.constant 0 : index
    %c0_6 = arith.constant 0 : index
    %6 = vector.load %arg2[%c0_5, %c0_6] : memref<512x32xf32, #tpu.memory_space<vmem>>, vector<512x32xf32>
    %7 = arith.addf %6, %5 : vector<512x32xf32>
    %cst_7 = arith.constant 5.000000e-01 : f32
    %8 = vector.broadcast %cst_7 : f32 to vector<512x32xf32>
    %9 = arith.mulf %8, %7 : vector<512x32xf32>
    %cst_8 = arith.constant 0.707106769 : f32
    %10 = vector.broadcast %cst_8 : f32 to vector<512x32xf32>
    %11 = arith.mulf %7, %10 : vector<512x32xf32>
    %12 = math.erf %11 : vector<512x32xf32>
    %cst_9 = arith.constant 1.000000e+00 : f32
    %13 = vector.broadcast %cst_9 : f32 to vector<512x32xf32>
    %14 = arith.addf %13, %12 : vector<512x32xf32>
    %15 = arith.mulf %9, %14 : vector<512x32xf32>
    %c0_10 = arith.constant 0 : index
    %c0_11 = arith.constant 0 : index
    %16 = vector.load %arg5[%c0_10, %c0_11] : memref<512x32xf32, #tpu.memory_space<vmem>>, vector<512x32xf32>
    tpu.vector_store %arg5[%c0_10, %c0_11], %15 {strides = array<i32>} : memref<512x32xf32, #tpu.memory_space<vmem>>, vector<512x32xf32>,
    return
  }
  func.func @transform_0(%arg0: i32) -> (i32, i32) {
    %c0_i32 = arith.constant 0 : i32
    %c0_i32_0 = arith.constant 0 : i32
    return %arg0, %c0_i32 : i32, i32
  }
  func.func @transform_1(%arg0: i32) -> (i32, i32) {
    %c0_i32 = arith.constant 0 : i32
    %c0_i32_0 = arith.constant 0 : i32
    return %arg0, %c0_i32 : i32, i32
  }
  func.func @transform_2(%arg0: i32) -> (i32, i32) {
    %c0_i32 = arith.constant 0 : i32
    %c0_i32_0 = arith.constant 0 : i32
    %c0_i32_1 = arith.constant 0 : i32
    return %c0_i32, %c0_i32_0 : i32, i32
  }
  func.func @transform_3(%arg0: i32) -> (i32, i32) {
    %c0_i32 = arith.constant 0 : i32
    %c0_i32_0 = arith.constant 0 : i32
    %c0_i32_1 = arith.constant 0 : i32
    return %c0_i32, %c0_i32_0 : i32, i32
  }
  func.func @transform_4(%arg0: i32) -> (i32, i32) {
    %c0_i32 = arith.constant 0 : i32
    %c0_i32_0 = arith.constant 0 : i32
    return %arg0, %c0_i32 : i32, i32
  }
}

module attributes {stable_mosaic.version = 11 : i64} {
  func.func @_layer_head_kernel(%arg0: i32, %arg1: memref<512x32xf32, #tpu.memory_space<vmem>>, %arg2: memref<512x32xf32, #tpu.memory_space<vmem>>, %arg3: memref<32x32xf32, #tpu.memory_space<vmem>>, %arg4: memref<1x32xf32, #tpu.memory_space<vmem>>, %arg5: memref<32x128xf32, #tpu.memory_space<vmem>>, %arg6: memref<1x128xf32, #tpu.memory_space<vmem>>, %arg7: memref<1x128xf32, #tpu.memory_space<vmem>>, %arg8: memref<1x1xf32, #tpu.memory_space<vmem>>, %arg9: memref<512x1xf32, #tpu.memory_space<vmem>>) attributes {dimension_semantics = [#tpu.dimension_semantics<parallel>], iteration_bounds = array<i64: 1>, scalar_prefetch = 0 : i64, scratch_operands = 0 : i64, tpu.core_type = #tpu.core_type<tc>, window_params = [{transform_indices = @transform_0, window_bounds = array<i64: 512, 32>}, {transform_indices = @transform_1, window_bounds = array<i64: 512, 32>}, {pipeline_mode = #tpu.pipeline_mode<synchronous>, transform_indices = @transform_2, window_bounds = array<i64: 32, 32>}, {pipeline_mode = #tpu.pipeline_mode<synchronous>, transform_indices = @transform_3, window_bounds = array<i64: 1, 32>}, {pipeline_mode = #tpu.pipeline_mode<synchronous>, transform_indices = @transform_4, window_bounds = array<i64: 32, 128>}, {pipeline_mode = #tpu.pipeline_mode<synchronous>, transform_indices = @transform_5, window_bounds = array<i64: 1, 128>}, {pipeline_mode = #tpu.pipeline_mode<synchronous>, transform_indices = @transform_6, window_bounds = array<i64: 1, 128>}, {pipeline_mode = #tpu.pipeline_mode<synchronous>, transform_indices = @transform_7, window_bounds = array<i64: 1, 1>}, {transform_indices = @transform_8, window_bounds = array<i64: 512, 1>}]} {
    %c0 = arith.constant 0 : index
    %c0_0 = arith.constant 0 : index
    %0 = vector.load %arg1[%c0, %c0_0] : memref<512x32xf32, #tpu.memory_space<vmem>>, vector<512x32xf32>
    %c0_1 = arith.constant 0 : index
    %c0_2 = arith.constant 0 : index
    %1 = vector.load %arg3[%c0_1, %c0_2] : memref<32x32xf32, #tpu.memory_space<vmem>>, vector<32x32xf32>
    %cst = arith.constant dense<0.000000e+00> : vector<512x32xf32>
    %2 = tpu.matmul %0, %1, %cst {dimension_numbers = #tpu.dot_dimension_numbers<[1], [0], [0], [1], [0, 0, 1, 1], [], []>} : vector<512x32xf32>, vector<32x32xf32>, vector<512x32xf32> -> vector<512x32xf32>
    %c0_3 = arith.constant 0 : index
    %c0_4 = arith.constant 0 : index
    %3 = vector.load %arg4[%c0_3, %c0_4] : memref<1x32xf32, #tpu.memory_space<vmem>>, vector<1x32xf32>
    %4 = vector.broadcast %3 : vector<1x32xf32> to vector<512x32xf32>
    %5 = arith.addf %2, %4 : vector<512x32xf32>
    %c0_5 = arith.constant 0 : index
    %c0_6 = arith.constant 0 : index
    %6 = vector.load %arg2[%c0_5, %c0_6] : memref<512x32xf32, #tpu.memory_space<vmem>>, vector<512x32xf32>
    %7 = arith.addf %5, %6 : vector<512x32xf32>
    %cst_7 = arith.constant 5.000000e-01 : f32
    %8 = vector.broadcast %cst_7 : f32 to vector<512x32xf32>
    %9 = arith.mulf %8, %7 : vector<512x32xf32>
    %cst_8 = arith.constant 0.707106769 : f32
    %10 = vector.broadcast %cst_8 : f32 to vector<512x32xf32>
    %11 = arith.mulf %7, %10 : vector<512x32xf32>
    %12 = math.erf %11 : vector<512x32xf32>
    %cst_9 = arith.constant 1.000000e+00 : f32
    %13 = vector.broadcast %cst_9 : f32 to vector<512x32xf32>
    %14 = arith.addf %13, %12 : vector<512x32xf32>
    %15 = arith.mulf %9, %14 : vector<512x32xf32>
    %c0_10 = arith.constant 0 : index
    %c0_11 = arith.constant 0 : index
    %16 = vector.load %arg5[%c0_10, %c0_11] : memref<32x128xf32, #tpu.memory_space<vmem>>, vector<32x128xf32>
    %cst_12 = arith.constant dense<0.000000e+00> : vector<512x128xf32>
    %17 = tpu.matmul %15, %16, %cst_12 {dimension_numbers = #tpu.dot_dimension_numbers<[1], [0], [0], [1], [0, 0, 1, 1], [], []>} : vector<512x32xf32>, vector<32x128xf32>, vector<512x128xf32> -> vector<512x128xf32>
    %c0_13 = arith.constant 0 : index
    %c0_14 = arith.constant 0 : index
    %18 = vector.load %arg6[%c0_13, %c0_14] : memref<1x128xf32, #tpu.memory_space<vmem>>, vector<1x128xf32>
    %19 = vector.broadcast %18 : vector<1x128xf32> to vector<512x128xf32>
    %20 = arith.addf %17, %19 : vector<512x128xf32>
    %cst_15 = arith.constant 0.000000e+00 : f32
    %21 = vector.broadcast %cst_15 : f32 to vector<512x128xf32>
    %22 = arith.maximumf %20, %21 : vector<512x128xf32>
    %c0_16 = arith.constant 0 : index
    %c0_17 = arith.constant 0 : index
    %23 = vector.load %arg7[%c0_16, %c0_17] : memref<1x128xf32, #tpu.memory_space<vmem>>, vector<1x128xf32>
    %24 = vector.broadcast %23 : vector<1x128xf32> to vector<512x128xf32>
    %25 = arith.mulf %22, %24 : vector<512x128xf32>
    %cst_18 = arith.constant dense<0.000000e+00> : vector<512xf32>
    %26 = vector.multi_reduction <add>, %25, %cst_18 [1] : vector<512x128xf32> to vector<512xf32>
    %27 = vector.shape_cast %26 : vector<512xf32> to vector<512x1xf32>
    %c0_19 = arith.constant 0 : index
    %c0_20 = arith.constant 0 : index
    %28 = vector.load %arg8[%c0_19, %c0_20] : memref<1x1xf32, #tpu.memory_space<vmem>>, vector<1x1xf32>
    %29 = vector.broadcast %28 : vector<1x1xf32> to vector<512x1xf32>
    %30 = arith.addf %27, %29 : vector<512x1xf32>
    %c0_21 = arith.constant 0 : index
    %c0_22 = arith.constant 0 : index
    %31 = vector.load %arg9[%c0_21, %c0_22] : memref<512x1xf32, #tpu.memory_space<vmem>>, vector<512x1xf32>
    tpu.vector_store %arg9[%c0_21, %c0_22], %30 {strides = array<i32>} : memref<512x1xf32, #tpu.memory_space<vmem>>, vector<512x1xf32>,
    return
  }
  func.func @transform_0(%arg0: i32) -> (i32, i32) {
    %c0_i32 = arith.constant 0 : i32
    %c0_i32_0 = arith.constant 0 : i32
    return %arg0, %c0_i32 : i32, i32
  }
  func.func @transform_1(%arg0: i32) -> (i32, i32) {
    %c0_i32 = arith.constant 0 : i32
    %c0_i32_0 = arith.constant 0 : i32
    return %arg0, %c0_i32 : i32, i32
  }
  func.func @transform_2(%arg0: i32) -> (i32, i32) {
    %c0_i32 = arith.constant 0 : i32
    %c0_i32_0 = arith.constant 0 : i32
    %c0_i32_1 = arith.constant 0 : i32
    return %c0_i32, %c0_i32_0 : i32, i32
  }
  func.func @transform_3(%arg0: i32) -> (i32, i32) {
    %c0_i32 = arith.constant 0 : i32
    %c0_i32_0 = arith.constant 0 : i32
    %c0_i32_1 = arith.constant 0 : i32
    return %c0_i32, %c0_i32_0 : i32, i32
  }
  func.func @transform_4(%arg0: i32) -> (i32, i32) {
    %c0_i32 = arith.constant 0 : i32
    %c0_i32_0 = arith.constant 0 : i32
    %c0_i32_1 = arith.constant 0 : i32
    return %c0_i32, %c0_i32_0 : i32, i32
  }
  func.func @transform_5(%arg0: i32) -> (i32, i32) {
    %c0_i32 = arith.constant 0 : i32
    %c0_i32_0 = arith.constant 0 : i32
    %c0_i32_1 = arith.constant 0 : i32
    return %c0_i32, %c0_i32_0 : i32, i32
  }
  func.func @transform_6(%arg0: i32) -> (i32, i32) {
    %c0_i32 = arith.constant 0 : i32
    %c0_i32_0 = arith.constant 0 : i32
    %c0_i32_1 = arith.constant 0 : i32
    return %c0_i32, %c0_i32_0 : i32, i32
  }
  func.func @transform_7(%arg0: i32) -> (i32, i32) {
    %c0_i32 = arith.constant 0 : i32
    %c0_i32_0 = arith.constant 0 : i32
    %c0_i32_1 = arith.constant 0 : i32
    return %c0_i32, %c0_i32_0 : i32, i32
  }
  func.func @transform_8(%arg0: i32) -> (i32, i32) {
    %c0_i32 = arith.constant 0 : i32
    %c0_i32_0 = arith.constant 0 : i32
    return %arg0, %c0_i32 : i32, i32
  }
}

</mosaic_0001>

<llo_original>
// kernel: fno2d_forward.5
$region0: #{fno2d_forward.5}
  #allocation0 [shape = 'u32[]', space=smem, size = 0x4, offset = 0x4, fixed_abs, tag = 'smem constant byte address 0x4 - core index']
  #allocation1 [shape = 'u32[144,128]{1,0:T(1,128)}', space=vmem, size = 0x12000, scoped, tag = 'internal scratch']
  %s0 = inlined_call_operand.vmem [shape: f32[512,2], index: 0, kind: input, shape index: {}]
  %s1 = inlined_call_operand.vmem [shape: f32[2,32], index: 1, kind: input, shape index: {}]
  %s2 = inlined_call_operand.vmem [shape: f32[1,32], index: 2, kind: input, shape index: {}]
  %s3 = inlined_call_operand.vmem [shape: f32[512,32], index: 3, kind: output, shape index: {}]
  %s4 = sld [smem:[#allocation0]]
  $region22: #{fno2d_forward.5} parent=0
    _
  %s6 = ssub.s32 1, %s4
  %s7 = scalar_select 0, %s6, %s4
  // Predicated region
  $region2: #{fno2d_forward.5} parent=0 // pred_check
    _
  $region3: #{fno2d_forward.5} parent=0 // pred_check_branch
    %9 = sbr.rel (0) target = $region5
  $region4: #{fno2d_forward.5} parent=0 // pred_region
    _
  $region5: #{fno2d_forward.5} parent=0 // pred_fallthru
    _
  // Predicated region
  $region6: #{fno2d_forward.5} parent=0 // pred_check
    _
  $region7: #{fno2d_forward.5} parent=0 // pred_check_branch
    %11 = sbr.rel (0) target = $region9
  $region8: #{fno2d_forward.5} parent=0 // pred_region
    _
  $region9: #{fno2d_forward.5} parent=0 // pred_fallthru
    _
  // Predicated region
  $region10: #{fno2d_forward.5} parent=0 // pred_check
    _
  $region11: #{fno2d_forward.5} parent=0 // pred_check_branch
    %13 = sbr.rel (0) target = $region13
  $region12: #{fno2d_forward.5} parent=0 // pred_region
    _
  $region13: #{fno2d_forward.5} parent=0 // pred_fallthru
    _
  %v14 = vld [vmem:[%s0] sm:$0xff]
  %v15 = vld [vmem:[%s0 + $0x8] sm:$0xff]
  %v16 = vld [vmem:[%s0 + $0x10] sm:$0xff]
  %v17 = vld [vmem:[%s0 + $0x18] sm:$0xff]
  %v18 = vld [vmem:[%s0 + $0x20] sm:$0xff]
  %v19 = vld [vmem:[%s0 + $0x28] sm:$0xff]
  %v20 = vld [vmem:[%s0 + $0x30] sm:$0xff]
  %v21 = vld [vmem:[%s0 + $0x38] sm:$0xff]
  %v22 = vld [vmem:[%s0 + $0x40] sm:$0xff]
  %v23 = vld [vmem:[%s0 + $0x48] sm:$0xff]
  %v24 = vld [vmem:[%s0 + $0x50] sm:$0xff]
  %v25 = vld [vmem:[%s0 + $0x58] sm:$0xff]
  %v26 = vld [vmem:[%s0 + $0x60] sm:$0xff]
  %v27 = vld [vmem:[%s0 + $0x68] sm:$0xff]
  %v28 = vld [vmem:[%s0 + $0x70] sm:$0xff]
  %v29 = vld [vmem:[%s0 + $0x78] sm:$0xff]
  %v30 = vld [vmem:[%s0 + $0x80] sm:$0xff]
  %v31 = vld [vmem:[%s0 + $0x88] sm:$0xff]
  %v32 = vld [vmem:[%s0 + $0x90] sm:$0xff]
  %v33 = vld [vmem:[%s0 + $0x98] sm:$0xff]
  %v34 = vld [vmem:[%s0 + $0xa0] sm:$0xff]
  %v35 = vld [vmem:[%s0 + $0xa8] sm:$0xff]
  %v36 = vld [vmem:[%s0 + $0xb0] sm:$0xff]
  %v37 = vld [vmem:[%s0 + $0xb8] sm:$0xff]
  %v38 = vld [vmem:[%s0 + $0xc0] sm:$0xff]
  %v39 = vld [vmem:[%s0 + $0xc8] sm:$0xff]
  %v40 = vld [vmem:[%s0 + $0xd0] sm:$0xff]
  %v41 = vld [vmem:[%s0 + $0xd8] sm:$0xff]
  %v42 = vld [vmem:[%s0 + $0xe0] sm:$0xff]
  %v43 = vld [vmem:[%s0 + $0xe8] sm:$0xff]
  %v44 = vld [vmem:[%s0 + $0xf0] sm:$0xff]
  %v45 = vld [vmem:[%s0 + $0xf8] sm:$0xff]
  %v46 = vld [vmem:[%s0 + $0x100] sm:$0xff]
  %v47 = vld [vmem:[%s0 + $0x108] sm:$0xff]
  %v48 = vld [vmem:[%s0 + $0x110] sm:$0xff]
  %v49 = vld [vmem:[%s0 + $0x118] sm:$0xff]
  %v50 = vld [vmem:[%s0 + $0x120] sm:$0xff]
  %v51 = vld [vmem:[%s0 + $0x128] sm:$0xff]
  %v52 = vld [vmem:[%s0 + $0x130] sm:$0xff]
  %v53 = vld [vmem:[%s0 + $0x138] sm:$0xff]
  %v54 = vld [vmem:[%s0 + $0x140] sm:$0xff]
  %v55 = vld [vmem:[%s0 + $0x148] sm:$0xff]
  %v56 = vld [vmem:[%s0 + $0x150] sm:$0xff]
  %v57 = vld [vmem:[%s0 + $0x158] sm:$0xff]
  %v58 = vld [vmem:[%s0 + $0x160] sm:$0xff]
  %v59 = vld [vmem:[%s0 + $0x168] sm:$0xff]
  %v60 = vld [vmem:[%s0 + $0x170] sm:$0xff]
  %v61 = vld [vmem:[%s0 + $0x178] sm:$0xff]
  %v62 = vld [vmem:[%s0 + $0x180] sm:$0xff]
  %v63 = vld [vmem:[%s0 + $0x188] sm:$0xff]
  %v64 = vld [vmem:[%s0 + $0x190] sm:$0xff]
  %v65 = vld [vmem:[%s0 + $0x198] sm:$0xff]
  %v66 = vld [vmem:[%s0 + $0x1a0] sm:$0xff]
  %v67 = vld [vmem:[%s0 + $0x1a8] sm:$0xff]
  %v68 = vld [vmem:[%s0 + $0x1b0] sm:$0xff]
  %v69 = vld [vmem:[%s0 + $0x1b8] sm:$0xff]
  %v70 = vld [vmem:[%s0 + $0x1c0] sm:$0xff]
  %v71 = vld [vmem:[%s0 + $0x1c8] sm:$0xff]
  %v72 = vld [vmem:[%s0 + $0x1d0] sm:$0xff]
  %v73 = vld [vmem:[%s0 + $0x1d8] sm:$0xff]
  %v74 = vld [vmem:[%s0 + $0x1e0] sm:$0xff]
  %v75 = vld [vmem:[%s0 + $0x1e8] sm:$0xff]
  %v76 = vld [vmem:[%s0 + $0x1f0] sm:$0xff]
  %v77 = vld [vmem:[%s0 + $0x1f8] sm:$0xff]
  %v78 = vld [vmem:[%s1] sm:$0x3]
  %v79 = vld [vmem:[%s2] sm:$0x1]
  %81 = vset.pattern.permute.xlu0 0
  %82 = vperm.xlu0 %81, %v14
  %v83 = vpop.permute.xlu0 %82
  %86 = vset.pattern.permute.xlu0 0
  %87 = vperm.xlu0 %86, %v15
  %v88 = vpop.permute.xlu0 %87
  %91 = vset.pattern.permute.xlu0 0
  %92 = vperm.xlu0 %91, %v16
  %v93 = vpop.permute.xlu0 %92
  %96 = vset.pattern.permute.xlu0 0
  %97 = vperm.xlu0 %96, %v17
  %v98 = vpop.permute.xlu0 %97
  %101 = vset.pattern.permute.xlu0 0
  %102 = vperm.xlu0 %101, %v18
  %v103 = vpop.permute.xlu0 %102
  %106 = vset.pattern.permute.xlu0 0
  %107 = vperm.xlu0 %106, %v19
  %v108 = vpop.permute.xlu0 %107
  %111 = vset.pattern.permute.xlu0 0
  %112 = vperm.xlu0 %111, %v20
  %v113 = vpop.permute.xlu0 %112
  %116 = vset.pattern.permute.xlu0 0
  %117 = vperm.xlu0 %116, %v21
  %v118 = vpop.permute.xlu0 %117
  %121 = vset.pattern.permute.xlu0 0
  %122 = vperm.xlu0 %121, %v22
  %v123 = vpop.permute.xlu0 %122
  %126 = vset.pattern.permute.xlu0 0
  %127 = vperm.xlu0 %126, %v23
  %v128 = vpop.permute.xlu0 %127
  %131 = vset.pattern.permute.xlu0 0
  %132 = vperm.xlu0 %131, %v24
  %v133 = vpop.permute.xlu0 %132
  %136 = vset.pattern.permute.xlu0 0
  %137 = vperm.xlu0 %136, %v25
  %v138 = vpop.permute.xlu0 %137
  %141 = vset.pattern.permute.xlu0 0
  %142 = vperm.xlu0 %141, %v26
  %v143 = vpop.permute.xlu0 %142
  %146 = vset.pattern.permute.xlu0 0
  %147 = vperm.xlu0 %146, %v27
  %v148 = vpop.permute.xlu0 %147
  %151 = vset.pattern.permute.xlu0 0
  %152 = vperm.xlu0 %151, %v28
  %v153 = vpop.permute.xlu0 %152
  %156 = vset.pattern.permute.xlu0 0
  %157 = vperm.xlu0 %156, %v29
  %v158 = vpop.permute.xlu0 %157
  %161 = vset.pattern.permute.xlu0 0
  %162 = vperm.xlu0 %161, %v30
  %v163 = vpop.permute.xlu0 %162
  %166 = vset.pattern.permute.xlu0 0
  %167 = vperm.xlu0 %166, %v31
  %v168 = vpop.permute.xlu0 %167
  %171 = vset.pattern.permute.xlu0 0
  %172 = vperm.xlu0 %171, %v32
  %v173 = vpop.permute.xlu0 %172
  %176 = vset.pattern.permute.xlu0 0
  %177 = vperm.xlu0 %176, %v33
  %v178 = vpop.permute.xlu0 %177
  %181 = vset.pattern.permute.xlu0 0
  %182 = vperm.xlu0 %181, %v34
  %v183 = vpop.permute.xlu0 %182
  %186 = vset.pattern.permute.xlu0 0
  %187 = vperm.xlu0 %186, %v35
  %v188 = vpop.permute.xlu0 %187
  %191 = vset.pattern.permute.xlu0 0
  %192 = vperm.xlu0 %191, %v36
  %v193 = vpop.permute.xlu0 %192
  %196 = vset.pattern.permute.xlu0 0
  %197 = vperm.xlu0 %196, %v37
  %v198 = vpop.permute.xlu0 %197
  %201 = vset.pattern.permute.xlu0 0
  %202 = vperm.xlu0 %201, %v38
  %v203 = vpop.permute.xlu0 %202
  %206 = vset.pattern.permute.xlu0 0
  %207 = vperm.xlu0 %206, %v39
  %v208 = vpop.permute.xlu0 %207
  %211 = vset.pattern.permute.xlu0 0
  %212 = vperm.xlu0 %211, %v40
  %v213 = vpop.permute.xlu0 %212
  %216 = vset.pattern.permute.xlu0 0
  %217 = vperm.xlu0 %216, %v41
  %v218 = vpop.permute.xlu0 %217
  %221 = vset.pattern.permute.xlu0 0
  %222 = vperm.xlu0 %221, %v42
  %v223 = vpop.permute.xlu0 %222
  %226 = vset.pattern.permute.xlu0 0
  %227 = vperm.xlu0 %226, %v43
  %v228 = vpop.permute.xlu0 %227
  %231 = vset.pattern.permute.xlu0 0
  %232 = vperm.xlu0 %231, %v44
  %v233 = vpop.permute.xlu0 %232
  %236 = vset.pattern.permute.xlu0 0
  %237 = vperm.xlu0 %236, %v45
  %v238 = vpop.permute.xlu0 %237
  %241 = vset.pattern.permute.xlu0 0
  %242 = vperm.xlu0 %241, %v46
  %v243 = vpop.permute.xlu0 %242
  %246 = vset.pattern.permute.xlu0 0
  %247 = vperm.xlu0 %246, %v47
  %v248 = vpop.permute.xlu0 %247
  %251 = vset.pattern.permute.xlu0 0
  %252 = vperm.xlu0 %251, %v48
  %v253 = vpop.permute.xlu0 %252
  %256 = vset.pattern.permute.xlu0 0
  %257 = vperm.xlu0 %256, %v49
  %v258 = vpop.permute.xlu0 %257
  %261 = vset.pattern.permute.xlu0 0
  %262 = vperm.xlu0 %261, %v50
  %v263 = vpop.permute.xlu0 %262
  %266 = vset.pattern.permute.xlu0 0
  %267 = vperm.xlu0 %266, %v51
  %v268 = vpop.permute.xlu0 %267
  %271 = vset.pattern.permute.xlu0 0
  %272 = vperm.xlu0 %271, %v52
  %v273 = vpop.permute.xlu0 %272
  %276 = vset.pattern.permute.xlu0 0
  %277 = vperm.xlu0 %276, %v53
  %v278 = vpop.permute.xlu0 %277
  %281 = vset.pattern.permute.xlu0 0
  %282 = vperm.xlu0 %281, %v54
  %v283 = vpop.permute.xlu0 %282
  %286 = vset.pattern.permute.xlu0 0
  %287 = vperm.xlu0 %286, %v55
  %v288 = vpop.permute.xlu0 %287
  %291 = vset.pattern.permute.xlu0 0
  %292 = vperm.xlu0 %291, %v56
  %v293 = vpop.permute.xlu0 %292
  %296 = vset.pattern.permute.xlu0 0
  %297 = vperm.xlu0 %296, %v57
  %v298 = vpop.permute.xlu0 %297
  %301 = vset.pattern.permute.xlu0 0
  %302 = vperm.xlu0 %301, %v58
  %v303 = vpop.permute.xlu0 %302
  %306 = vset.pattern.permute.xlu0 0
  %307 = vperm.xlu0 %306, %v59
  %v308 = vpop.permute.xlu0 %307
  %311 = vset.pattern.permute.xlu0 0
  %312 = vperm.xlu0 %311, %v60
  %v313 = vpop.permute.xlu0 %312
  %316 = vset.pattern.permute.xlu0 0
  %317 = vperm.xlu0 %316, %v61
  %v318 = vpop.permute.xlu0 %317
  %321 = vset.pattern.permute.xlu0 0
  %322 = vperm.xlu0 %321, %v62
  %v323 = vpop.permute.xlu0 %322
  %326 = vset.pattern.permute.xlu0 0
  %327 = vperm.xlu0 %326, %v63
  %v328 = vpop.permute.xlu0 %327
  %331 = vset.pattern.permute.xlu0 0
  %332 = vperm.xlu0 %331, %v64
  %v333 = vpop.permute.xlu0 %332
  %336 = vset.pattern.permute.xlu0 0
  %337 = vperm.xlu0 %336, %v65
  %v338 = vpop.permute.xlu0 %337
  %341 = vset.pattern.permute.xlu0 0
  %342 = vperm.xlu0 %341, %v66
  %v343 = vpop.permute.xlu0 %342
  %346 = vset.pattern.permute.xlu0 0
  %347 = vperm.xlu0 %346, %v67
  %v348 = vpop.permute.xlu0 %347
  %351 = vset.pattern.permute.xlu0 0
  %352 = vperm.xlu0 %351, %v68
  %v353 = vpop.permute.xlu0 %352
  %356 = vset.pattern.permute.xlu0 0
  %357 = vperm.xlu0 %356, %v69
  %v358 = vpop.permute.xlu0 %357
  %361 = vset.pattern.permute.xlu0 0
  %362 = vperm.xlu0 %361, %v70
  %v363 = vpop.permute.xlu0 %362
  %366 = vset.pattern.permute.xlu0 0
  %367 = vperm.xlu0 %366, %v71
  %v368 = vpop.permute.xlu0 %367
  %371 = vset.pattern.permute.xlu0 0
  %372 = vperm.xlu0 %371, %v72
  %v373 = vpop.permute.xlu0 %372
  %376 = vset.pattern.permute.xlu0 0
  %377 = vperm.xlu0 %376, %v73
  %v378 = vpop.permute.xlu0 %377
  %381 = vset.pattern.permute.xlu0 0
  %382 = vperm.xlu0 %381, %v74
  %v383 = vpop.permute.xlu0 %382
  %386 = vset.pattern.permute.xlu0 0
  %387 = vperm.xlu0 %386, %v75
  %v388 = vpop.permute.xlu0 %387
  %391 = vset.pattern.permute.xlu0 0
  %392 = vperm.xlu0 %391, %v76
  %v393 = vpop.permute.xlu0 %392
  %396 = vset.pattern.permute.xlu0 0
  %397 = vperm.xlu0 %396, %v77
  %v398 = vpop.permute.xlu0 %397
  %v400 = vlaneseq
  %v401 = vshrl.u32 %v400, 7
  %v402 = vsub.s32 0, %v401
  %v403 = vrot.slane %v78, %v402
  %v404 = vmul.f32 %v83, %v403
  %v405 = vmul.f32 %v88, %v403
  %v406 = vmul.f32 %v93, %v403
  %v407 = vmul.f32 %v98, %v403
  %v408 = vmul.f32 %v103, %v403
  %v409 = vmul.f32 %v108, %v403
  %v410 = vmul.f32 %v113, %v403
  %v411 = vmul.f32 %v118, %v403
  %v412 = vmul.f32 %v123, %v403
  %v413 = vmul.f32 %v128, %v403
  %v414 = vmul.f32 %v133, %v403
  %v415 = vmul.f32 %v138, %v403
  %v416 = vmul.f32 %v143, %v403
  %v417 = vmul.f32 %v148, %v403
  %v418 = vmul.f32 %v153, %v403
  %v419 = vmul.f32 %v158, %v403
  %v420 = vmul.f32 %v163, %v403
  %v421 = vmul.f32 %v168, %v403
  %v422 = vmul.f32 %v173, %v403
  %v423 = vmul.f32 %v178, %v403
  %v424 = vmul.f32 %v183, %v403
  %v425 = vmul.f32 %v188, %v403
  %v426 = vmul.f32 %v193, %v403
  %v427 = vmul.f32 %v198, %v403
  %v428 = vmul.f32 %v203, %v403
  %v429 = vmul.f32 %v208, %v403
  %v430 = vmul.f32 %v213, %v403
  %v431 = vmul.f32 %v218, %v403
  %v432 = vmul.f32 %v223, %v403
  %v433 = vmul.f32 %v228, %v403
  %v434 = vmul.f32 %v233, %v403
  %v435 = vmul.f32 %v238, %v403
  %v436 = vmul.f32 %v243, %v403
  %v437 = vmul.f32 %v248, %v403
  %v438 = vmul.f32 %v253, %v403
  %v439 = vmul.f32 %v258, %v403
  %v440 = vmul.f32 %v263, %v403
  %v441 = vmul.f32 %v268, %v403
  %v442 = vmul.f32 %v273, %v403
  %v443 = vmul.f32 %v278, %v403
  %v444 = vmul.f32 %v283, %v403
  %v445 = vmul.f32 %v288, %v403
  %v446 = vmul.f32 %v293, %v403
  %v447 = vmul.f32 %v298, %v403
  %v448 = vmul.f32 %v303, %v403
  %v449 = vmul.f32 %v308, %v403
  %v450 = vmul.f32 %v313, %v403
  %v451 = vmul.f32 %v318, %v403
  %v452 = vmul.f32 %v323, %v403
  %v453 = vmul.f32 %v328, %v403
  %v454 = vmul.f32 %v333, %v403
  %v455 = vmul.f32 %v338, %v403
  %v456 = vmul.f32 %v343, %v403
  %v457 = vmul.f32 %v348, %v403
  %v458 = vmul.f32 %v353, %v403
  %v459 = vmul.f32 %v358, %v403
  %v460 = vmul.f32 %v363, %v403
  %v461 = vmul.f32 %v368, %v403
  %v462 = vmul.f32 %v373, %v403
  %v463 = vmul.f32 %v378, %v403
  %v464 = vmul.f32 %v383, %v403
  %v465 = vmul.f32 %v388, %v403
  %v466 = vmul.f32 %v393, %v403
  %v467 = vmul.f32 %v398, %v403
  %468 = vset.pattern.permute.xlu0 1
  %469 = vperm.xlu0 %468, %v14
  %v470 = vpop.permute.xlu0 %469
  %472 = vset.pattern.permute.xlu0 1
  %473 = vperm.xlu0 %472, %v15
  %v474 = vpop.permute.xlu0 %473
  %476 = vset.pattern.permute.xlu0 1
  %477 = vperm.xlu0 %476, %v16
  %v478 = vpop.permute.xlu0 %477
  %480 = vset.pattern.permute.xlu0 1
  %481 = vperm.xlu0 %480, %v17
  %v482 = vpop.permute.xlu0 %481
  %484 = vset.pattern.permute.xlu0 1
  %485 = vperm.xlu0 %484, %v18
  %v486 = vpop.permute.xlu0 %485
  %488 = vset.pattern.permute.xlu0 1
  %489 = vperm.xlu0 %488, %v19
  %v490 = vpop.permute.xlu0 %489
  %492 = vset.pattern.permute.xlu0 1
  %493 = vperm.xlu0 %492, %v20
  %v494 = vpop.permute.xlu0 %493
  %496 = vset.pattern.permute.xlu0 1
  %497 = vperm.xlu0 %496, %v21
  %v498 = vpop.permute.xlu0 %497
  %500 = vset.pattern.permute.xlu0 1
  %501 = vperm.xlu0 %500, %v22
  %v502 = vpop.permute.xlu0 %501
  %504 = vset.pattern.permute.xlu0 1
  %505 = vperm.xlu0 %504, %v23
  %v506 = vpop.permute.xlu0 %505
  %508 = vset.pattern.permute.xlu0 1
  %509 = vperm.xlu0 %508, %v24
  %v510 = vpop.permute.xlu0 %509
  %512 = vset.pattern.permute.xlu0 1
  %513 = vperm.xlu0 %512, %v25
  %v514 = vpop.permute.xlu0 %513
  %516 = vset.pattern.permute.xlu0 1
  %517 = vperm.xlu0 %516, %v26
  %v518 = vpop.permute.xlu0 %517
  %520 = vset.pattern.permute.xlu0 1
  %521 = vperm.xlu0 %520, %v27
  %v522 = vpop.permute.xlu0 %521
  %524 = vset.pattern.permute.xlu0 1
  %525 = vperm.xlu0 %524, %v28
  %v526 = vpop.permute.xlu0 %525
  %528 = vset.pattern.permute.xlu0 1
  %529 = vperm.xlu0 %528, %v29
  %v530 = vpop.permute.xlu0 %529
  %532 = vset.pattern.permute.xlu0 1
  %533 = vperm.xlu0 %532, %v30
  %v534 = vpop.permute.xlu0 %533
  %536 = vset.pattern.permute.xlu0 1
  %537 = vperm.xlu0 %536, %v31
  %v538 = vpop.permute.xlu0 %537
  %540 = vset.pattern.permute.xlu0 1
  %541 = vperm.xlu0 %540, %v32
  %v542 = vpop.permute.xlu0 %541
  %544 = vset.pattern.permute.xlu0 1
  %545 = vperm.xlu0 %544, %v33
  %v546 = vpop.permute.xlu0 %545
  %548 = vset.pattern.permute.xlu0 1
  %549 = vperm.xlu0 %548, %v34
  %v550 = vpop.permute.xlu0 %549
  %552 = vset.pattern.permute.xlu0 1
  %553 = vperm.xlu0 %552, %v35
  %v554 = vpop.permute.xlu0 %553
  %556 = vset.pattern.permute.xlu0 1
  %557 = vperm.xlu0 %556, %v36
  %v558 = vpop.permute.xlu0 %557
  %560 = vset.pattern.permute.xlu0 1
  %561 = vperm.xlu0 %560, %v37
  %v562 = vpop.permute.xlu0 %561
  %564 = vset.pattern.permute.xlu0 1
  %565 = vperm.xlu0 %564, %v38
  %v566 = vpop.permute.xlu0 %565
  %568 = vset.pattern.permute.xlu0 1
  %569 = vperm.xlu0 %568, %v39
  %v570 = vpop.permute.xlu0 %569
  %572 = vset.pattern.permute.xlu0 1
  %573 = vperm.xlu0 %572, %v40
  %v574 = vpop.permute.xlu0 %573
  %576 = vset.pattern.permute.xlu0 1
  %577 = vperm.xlu0 %576, %v41
  %v578 = vpop.permute.xlu0 %577
  %580 = vset.pattern.permute.xlu0 1
  %581 = vperm.xlu0 %580, %v42
  %v582 = vpop.permute.xlu0 %581
  %584 = vset.pattern.permute.xlu0 1
  %585 = vperm.xlu0 %584, %v43
  %v586 = vpop.permute.xlu0 %585
  %588 = vset.pattern.permute.xlu0 1
  %589 = vperm.xlu0 %588, %v44
  %v590 = vpop.permute.xlu0 %589
  %592 = vset.pattern.permute.xlu0 1
  %593 = vperm.xlu0 %592, %v45
  %v594 = vpop.permute.xlu0 %593
  %596 = vset.pattern.permute.xlu0 1
  %597 = vperm.xlu0 %596, %v46
  %v598 = vpop.permute.xlu0 %597
  %600 = vset.pattern.permute.xlu0 1
  %601 = vperm.xlu0 %600, %v47
  %v602 = vpop.permute.xlu0 %601
  %604 = vset.pattern.permute.xlu0 1
  %605 = vperm.xlu0 %604, %v48
  %v606 = vpop.permute.xlu0 %605
  %608 = vset.pattern.permute.xlu0 1
  %609 = vperm.xlu0 %608, %v49
  %v610 = vpop.permute.xlu0 %609
  %612 = vset.pattern.permute.xlu0 1
  %613 = vperm.xlu0 %612, %v50
  %v614 = vpop.permute.xlu0 %613
  %616 = vset.pattern.permute.xlu0 1
  %617 = vperm.xlu0 %616, %v51
  %v618 = vpop.permute.xlu0 %617
  %620 = vset.pattern.permute.xlu0 1
  %621 = vperm.xlu0 %620, %v52
  %v622 = vpop.permute.xlu0 %621
  %624 = vset.pattern.permute.xlu0 1
  %625 = vperm.xlu0 %624, %v53
  %v626 = vpop.permute.xlu0 %625
  %628 = vset.pattern.permute.xlu0 1
  %629 = vperm.xlu0 %628, %v54
  %v630 = vpop.permute.xlu0 %629
  %632 = vset.pattern.permute.xlu0 1
  %633 = vperm.xlu0 %632, %v55
  %v634 = vpop.permute.xlu0 %633
  %636 = vset.pattern.permute.xlu0 1
  %637 = vperm.xlu0 %636, %v56
  %v638 = vpop.permute.xlu0 %637
  %640 = vset.pattern.permute.xlu0 1
  %641 = vperm.xlu0 %640, %v57
  %v642 = vpop.permute.xlu0 %641
  %644 = vset.pattern.permute.xlu0 1
  %645 = vperm.xlu0 %644, %v58
  %v646 = vpop.permute.xlu0 %645
  %648 = vset.pattern.permute.xlu0 1
  %649 = vperm.xlu0 %648, %v59
  %v650 = vpop.permute.xlu0 %649
  %652 = vset.pattern.permute.xlu0 1
  %653 = vperm.xlu0 %652, %v60
  %v654 = vpop.permute.xlu0 %653
  %656 = vset.pattern.permute.xlu0 1
  %657 = vperm.xlu0 %656, %v61
  %v658 = vpop.permute.xlu0 %657
  %660 = vset.pattern.permute.xlu0 1
  %661 = vperm.xlu0 %660, %v62
  %v662 = vpop.permute.xlu0 %661
  %664 = vset.pattern.permute.xlu0 1
  %665 = vperm.xlu0 %664, %v63
  %v666 = vpop.permute.xlu0 %665
  %668 = vset.pattern.permute.xlu0 1
  %669 = vperm.xlu0 %668, %v64
  %v670 = vpop.permute.xlu0 %669
  %672 = vset.pattern.permute.xlu0 1
  %673 = vperm.xlu0 %672, %v65
  %v674 = vpop.permute.xlu0 %673
  %676 = vset.pattern.permute.xlu0 1
  %677 = vperm.xlu0 %676, %v66
  %v678 = vpop.permute.xlu0 %677
  %680 = vset.pattern.permute.xlu0 1
  %681 = vperm.xlu0 %680, %v67
  %v682 = vpop.permute.xlu0 %681
  %684 = vset.pattern.permute.xlu0 1
  %685 = vperm.xlu0 %684, %v68
  %v686 = vpop.permute.xlu0 %685
  %688 = vset.pattern.permute.xlu0 1
  %689 = vperm.xlu0 %688, %v69
  %v690 = vpop.permute.xlu0 %689
  %692 = vset.pattern.permute.xlu0 1
  %693 = vperm.xlu0 %692, %v70
  %v694 = vpop.permute.xlu0 %693
  %696 = vset.pattern.permute.xlu0 1
  %697 = vperm.xlu0 %696, %v71
  %v698 = vpop.permute.xlu0 %697
  %700 = vset.pattern.permute.xlu0 1
  %701 = vperm.xlu0 %700, %v72
  %v702 = vpop.permute.xlu0 %701
  %704 = vset.pattern.permute.xlu0 1
  %705 = vperm.xlu0 %704, %v73
  %v706 = vpop.permute.xlu0 %705
  %708 = vset.pattern.permute.xlu0 1
  %709 = vperm.xlu0 %708, %v74
  %v710 = vpop.permute.xlu0 %709
  %712 = vset.pattern.permute.xlu0 1
  %713 = vperm.xlu0 %712, %v75
  %v714 = vpop.permute.xlu0 %713
  %716 = vset.pattern.permute.xlu0 1
  %717 = vperm.xlu0 %716, %v76
  %v718 = vpop.permute.xlu0 %717
  %720 = vset.pattern.permute.xlu0 1
  %721 = vperm.xlu0 %720, %v77
  %v722 = vpop.permute.xlu0 %721
  %v724 = vlaneseq
  %v725 = vshrl.u32 %v724, 7
  %v726 = vsub.s32 1, %v725
  %v727 = vrot.slane %v78, %v726
  %v728 = vmul.f32 %v470, %v727
  %v729 = vmul.f32 %v474, %v727
  %v730 = vmul.f32 %v478, %v727
  %v731 = vmul.f32 %v482, %v727
  %v732 = vmul.f32 %v486, %v727
  %v733 = vmul.f32 %v490, %v727
  %v734 = vmul.f32 %v494, %v727
  %v735 = vmul.f32 %v498, %v727
  %v736 = vmul.f32 %v502, %v727
  %v737 = vmul.f32 %v506, %v727
  %v738 = vmul.f32 %v510, %v727
  %v739 = vmul.f32 %v514, %v727
  %v740 = vmul.f32 %v518, %v727
  %v741 = vmul.f32 %v522, %v727
  %v742 = vmul.f32 %v526, %v727
  %v743 = vmul.f32 %v530, %v727
  %v744 = vmul.f32 %v534, %v727
  %v745 = vmul.f32 %v538, %v727
  %v746 = vmul.f32 %v542, %v727
  %v747 = vmul.f32 %v546, %v727
  %v748 = vmul.f32 %v550, %v727
  %v749 = vmul.f32 %v554, %v727
  %v750 = vmul.f32 %v558, %v727
  %v751 = vmul.f32 %v562, %v727
  %v752 = vmul.f32 %v566, %v727
  %v753 = vmul.f32 %v570, %v727
  %v754 = vmul.f32 %v574, %v727
  %v755 = vmul.f32 %v578, %v727
  %v756 = vmul.f32 %v582, %v727
  %v757 = vmul.f32 %v586, %v727
  %v758 = vmul.f32 %v590, %v727
  %v759 = vmul.f32 %v594, %v727
  %v760 = vmul.f32 %v598, %v727
  %v761 = vmul.f32 %v602, %v727
  %v762 = vmul.f32 %v606, %v727
  %v763 = vmul.f32 %v610, %v727
  %v764 = vmul.f32 %v614, %v727
  %v765 = vmul.f32 %v618, %v727
  %v766 = vmul.f32 %v622, %v727
  %v767 = vmul.f32 %v626, %v727
  %v768 = vmul.f32 %v630, %v727
  %v769 = vmul.f32 %v634, %v727
  %v770 = vmul.f32 %v638, %v727
  %v771 = vmul.f32 %v642, %v727
  %v772 = vmul.f32 %v646, %v727
  %v773 = vmul.f32 %v650, %v727
  %v774 = vmul.f32 %v654, %v727
  %v775 = vmul.f32 %v658, %v727
  %v776 = vmul.f32 %v662, %v727
  %v777 = vmul.f32 %v666, %v727
  %v778 = vmul.f32 %v670, %v727
  %v779 = vmul.f32 %v674, %v727
  %v780 = vmul.f32 %v678, %v727
  %v781 = vmul.f32 %v682, %v727
  %v782 = vmul.f32 %v686, %v727
  %v783 = vmul.f32 %v690, %v727
  %v784 = vmul.f32 %v694, %v727
  %v785 = vmul.f32 %v698, %v727
  %v786 = vmul.f32 %v702, %v727
  %v787 = vmul.f32 %v706, %v727
  %v788 = vmul.f32 %v710, %v727
  %v789 = vmul.f32 %v714, %v727
  %v790 = vmul.f32 %v718, %v727
  %v791 = vmul.f32 %v722, %v727
  %v792 = vadd.f32 %v404, %v728
  %v793 = vadd.f32 %v405, %v729
  %v794 = vadd.f32 %v406, %v730
  %v795 = vadd.f32 %v407, %v731
  %v796 = vadd.f32 %v408, %v732
  %v797 = vadd.f32 %v409, %v733
  %v798 = vadd.f32 %v410, %v734
  %v799 = vadd.f32 %v411, %v735
  %v800 = vadd.f32 %v412, %v736
  %v801 = vadd.f32 %v413, %v737
  %v802 = vadd.f32 %v414, %v738
  %v803 = vadd.f32 %v415, %v739
  %v804 = vadd.f32 %v416, %v740
  %v805 = vadd.f32 %v417, %v741
  %v806 = vadd.f32 %v418, %v742
  %v807 = vadd.f32 %v419, %v743
  %v808 = vadd.f32 %v420, %v744
  %v809 = vadd.f32 %v421, %v745
  %v810 = vadd.f32 %v422, %v746
  %v811 = vadd.f32 %v423, %v747
  %v812 = vadd.f32 %v424, %v748
  %v813 = vadd.f32 %v425, %v749
  %v814 = vadd.f32 %v426, %v750
  %v815 = vadd.f32 %v427, %v751
  %v816 = vadd.f32 %v428, %v752
  %v817 = vadd.f32 %v429, %v753
  %v818 = vadd.f32 %v430, %v754
  %v819 = vadd.f32 %v431, %v755
  %v820 = vadd.f32 %v432, %v756
  %v821 = vadd.f32 %v433, %v757
  %v822 = vadd.f32 %v434, %v758
  %v823 = vadd.f32 %v435, %v759
  %v824 = vadd.f32 %v436, %v760
  %v825 = vadd.f32 %v437, %v761
  %v826 = vadd.f32 %v438, %v762
  %v827 = vadd.f32 %v439, %v763
  %v828 = vadd.f32 %v440, %v764
  %v829 = vadd.f32 %v441, %v765
  %v830 = vadd.f32 %v442, %v766
  %v831 = vadd.f32 %v443, %v767
  %v832 = vadd.f32 %v444, %v768
  %v833 = vadd.f32 %v445, %v769
  %v834 = vadd.f32 %v446, %v770
  %v835 = vadd.f32 %v447, %v771
  %v836 = vadd.f32 %v448, %v772
  %v837 = vadd.f32 %v449, %v773
  %v838 = vadd.f32 %v450, %v774
  %v839 = vadd.f32 %v451, %v775
  %v840 = vadd.f32 %v452, %v776
  %v841 = vadd.f32 %v453, %v777
  %v842 = vadd.f32 %v454, %v778
  %v843 = vadd.f32 %v455, %v779
  %v844 = vadd.f32 %v456, %v780
  %v845 = vadd.f32 %v457, %v781
  %v846 = vadd.f32 %v458, %v782
  %v847 = vadd.f32 %v459, %v783
  %v848 = vadd.f32 %v460, %v784
  %v849 = vadd.f32 %v461, %v785
  %v850 = vadd.f32 %v462, %v786
  %v851 = vadd.f32 %v463, %v787
  %v852 = vadd.f32 %v464, %v788
  %v853 = vadd.f32 %v465, %v789
  %v854 = vadd.f32 %v466, %v790
  %v855 = vadd.f32 %v467, %v791
  %v857 = vlaneseq
  %v858 = vshrl.u32 %v857, 7
  %v859 = vsub.s32 0, %v858
  %v860 = vrot.slane %v79, %v859
  %v862 = vadd.f32 %v792, %v860
  %v863 = vadd.f32 %v793, %v860
  %v864 = vadd.f32 %v794, %v860
  %v865 = vadd.f32 %v795, %v860
  %v866 = vadd.f32 %v796, %v860
  %v867 = vadd.f32 %v797, %v860
  %v868 = vadd.f32 %v798, %v860
  %v869 = vadd.f32 %v799, %v860
  %v870 = vadd.f32 %v800, %v860
  %v871 = vadd.f32 %v801, %v860
  %v872 = vadd.f32 %v802, %v860
  %v873 = vadd.f32 %v803, %v860
  %v874 = vadd.f32 %v804, %v860
  %v875 = vadd.f32 %v805, %v860
  %v876 = vadd.f32 %v806, %v860
  %v877 = vadd.f32 %v807, %v860
  %v878 = vadd.f32 %v808, %v860
  %v879 = vadd.f32 %v809, %v860
  %v880 = vadd.f32 %v810, %v860
  %v881 = vadd.f32 %v811, %v860
  %v882 = vadd.f32 %v812, %v860
  %v883 = vadd.f32 %v813, %v860
  %v884 = vadd.f32 %v814, %v860
  %v885 = vadd.f32 %v815, %v860
  %v886 = vadd.f32 %v816, %v860
  %v887 = vadd.f32 %v817, %v860
  %v888 = vadd.f32 %v818, %v860
  %v889 = vadd.f32 %v819, %v860
  %v890 = vadd.f32 %v820, %v860
  %v891 = vadd.f32 %v821, %v860
  %v892 = vadd.f32 %v822, %v860
  %v893 = vadd.f32 %v823, %v860
  %v894 = vadd.f32 %v824, %v860
  %v895 = vadd.f32 %v825, %v860
  %v896 = vadd.f32 %v826, %v860
  %v897 = vadd.f32 %v827, %v860
  %v898 = vadd.f32 %v828, %v860
  %v899 = vadd.f32 %v829, %v860
  %v900 = vadd.f32 %v830, %v860
  %v901 = vadd.f32 %v831, %v860
  %v902 = vadd.f32 %v832, %v860
  %v903 = vadd.f32 %v833, %v860
  %v904 = vadd.f32 %v834, %v860
  %v905 = vadd.f32 %v835, %v860
  %v906 = vadd.f32 %v836, %v860
  %v907 = vadd.f32 %v837, %v860
  %v908 = vadd.f32 %v838, %v860
  %v909 = vadd.f32 %v839, %v860
  %v910 = vadd.f32 %v840, %v860
  %v911 = vadd.f32 %v841, %v860
  %v912 = vadd.f32 %v842, %v860
  %v913 = vadd.f32 %v843, %v860
  %v914 = vadd.f32 %v844, %v860
  %v915 = vadd.f32 %v845, %v860
  %v916 = vadd.f32 %v846, %v860
  %v917 = vadd.f32 %v847, %v860
  %v918 = vadd.f32 %v848, %v860
  %v919 = vadd.f32 %v849, %v860
  %v920 = vadd.f32 %v850, %v860
  %v921 = vadd.f32 %v851, %v860
  %v922 = vadd.f32 %v852, %v860
  %v923 = vadd.f32 %v853, %v860
  %v924 = vadd.f32 %v854, %v860
  %v925 = vadd.f32 %v855, %v860
  %vm926 = vcmask 261120
  %927 = vst.msk [vmem:[%s3] sm:$0xff] %vm926, %v862
  %928 = vst.msk [vmem:[%s3 + $0x8] sm:$0xff] %vm926, %v863
  %929 = vst.msk [vmem:[%s3 + $0x10] sm:$0xff] %vm926, %v864
  %930 = vst.msk [vmem:[%s3 + $0x18] sm:$0xff] %vm926, %v865
  %931 = vst.msk [vmem:[%s3 + $0x20] sm:$0xff] %vm926, %v866
  %932 = vst.msk [vmem:[%s3 + $0x28] sm:$0xff] %vm926, %v867
  %933 = vst.msk [vmem:[%s3 + $0x30] sm:$0xff] %vm926, %v868
  %934 = vst.msk [vmem:[%s3 + $0x38] sm:$0xff] %vm926, %v869
  %935 = vst.msk [vmem:[%s3 + $0x40] sm:$0xff] %vm926, %v870
  %936 = vst.msk [vmem:[%s3 + $0x48] sm:$0xff] %vm926, %v871
  %937 = vst.msk [vmem:[%s3 + $0x50] sm:$0xff] %vm926, %v872
  %938 = vst.msk [vmem:[%s3 + $0x58] sm:$0xff] %vm926, %v873
  %939 = vst.msk [vmem:[%s3 + $0x60] sm:$0xff] %vm926, %v874
  %940 = vst.msk [vmem:[%s3 + $0x68] sm:$0xff] %vm926, %v875
  %941 = vst.msk [vmem:[%s3 + $0x70] sm:$0xff] %vm926, %v876
  %942 = vst.msk [vmem:[%s3 + $0x78] sm:$0xff] %vm926, %v877
  %943 = vst.msk [vmem:[%s3 + $0x80] sm:$0xff] %vm926, %v878
  %944 = vst.msk [vmem:[%s3 + $0x88] sm:$0xff] %vm926, %v879
  %945 = vst.msk [vmem:[%s3 + $0x90] sm:$0xff] %vm926, %v880
  %946 = vst.msk [vmem:[%s3 + $0x98] sm:$0xff] %vm926, %v881
  %947 = vst.msk [vmem:[%s3 + $0xa0] sm:$0xff] %vm926, %v882
  %948 = vst.msk [vmem:[%s3 + $0xa8] sm:$0xff] %vm926, %v883
  %949 = vst.msk [vmem:[%s3 + $0xb0] sm:$0xff] %vm926, %v884
  %950 = vst.msk [vmem:[%s3 + $0xb8] sm:$0xff] %vm926, %v885
  %951 = vst.msk [vmem:[%s3 + $0xc0] sm:$0xff] %vm926, %v886
  %952 = vst.msk [vmem:[%s3 + $0xc8] sm:$0xff] %vm926, %v887
  %953 = vst.msk [vmem:[%s3 + $0xd0] sm:$0xff] %vm926, %v888
  %954 = vst.msk [vmem:[%s3 + $0xd8] sm:$0xff] %vm926, %v889
  %955 = vst.msk [vmem:[%s3 + $0xe0] sm:$0xff] %vm926, %v890
  %956 = vst.msk [vmem:[%s3 + $0xe8] sm:$0xff] %vm926, %v891
  %957 = vst.msk [vmem:[%s3 + $0xf0] sm:$0xff] %vm926, %v892
  %958 = vst.msk [vmem:[%s3 + $0xf8] sm:$0xff] %vm926, %v893
  %959 = vst.msk [vmem:[%s3 + $0x100] sm:$0xff] %vm926, %v894
  %960 = vst.msk [vmem:[%s3 + $0x108] sm:$0xff] %vm926, %v895
  %961 = vst.msk [vmem:[%s3 + $0x110] sm:$0xff] %vm926, %v896
  %962 = vst.msk [vmem:[%s3 + $0x118] sm:$0xff] %vm926, %v897
  %963 = vst.msk [vmem:[%s3 + $0x120] sm:$0xff] %vm926, %v898
  %964 = vst.msk [vmem:[%s3 + $0x128] sm:$0xff] %vm926, %v899
  %965 = vst.msk [vmem:[%s3 + $0x130] sm:$0xff] %vm926, %v900
  %966 = vst.msk [vmem:[%s3 + $0x138] sm:$0xff] %vm926, %v901
  %967 = vst.msk [vmem:[%s3 + $0x140] sm:$0xff] %vm926, %v902
  %968 = vst.msk [vmem:[%s3 + $0x148] sm:$0xff] %vm926, %v903
  %969 = vst.msk [vmem:[%s3 + $0x150] sm:$0xff] %vm926, %v904
  %970 = vst.msk [vmem:[%s3 + $0x158] sm:$0xff] %vm926, %v905
  %971 = vst.msk [vmem:[%s3 + $0x160] sm:$0xff] %vm926, %v906
  %972 = vst.msk [vmem:[%s3 + $0x168] sm:$0xff] %vm926, %v907
  %973 = vst.msk [vmem:[%s3 + $0x170] sm:$0xff] %vm926, %v908
  %974 = vst.msk [vmem:[%s3 + $0x178] sm:$0xff] %vm926, %v909
  %975 = vst.msk [vmem:[%s3 + $0x180] sm:$0xff] %vm926, %v910
  %976 = vst.msk [vmem:[%s3 + $0x188] sm:$0xff] %vm926, %v911
  %977 = vst.msk [vmem:[%s3 + $0x190] sm:$0xff] %vm926, %v912
  %978 = vst.msk [vmem:[%s3 + $0x198] sm:$0xff] %vm926, %v913
  %979 = vst.msk [vmem:[%s3 + $0x1a0] sm:$0xff] %vm926, %v914
  %980 = vst.msk [vmem:[%s3 + $0x1a8] sm:$0xff] %vm926, %v915
  %981 = vst.msk [vmem:[%s3 + $0x1b0] sm:$0xff] %vm926, %v916
  %982 = vst.msk [vmem:[%s3 + $0x1b8] sm:$0xff] %vm926, %v917
  %983 = vst.msk [vmem:[%s3 + $0x1c0] sm:$0xff] %vm926, %v918
  %984 = vst.msk [vmem:[%s3 + $0x1c8] sm:$0xff] %vm926, %v919
  %985 = vst.msk [vmem:[%s3 + $0x1d0] sm:$0xff] %vm926, %v920
  %986 = vst.msk [vmem:[%s3 + $0x1d8] sm:$0xff] %vm926, %v921
  %987 = vst.msk [vmem:[%s3 + $0x1e0] sm:$0xff] %vm926, %v922
  %988 = vst.msk [vmem:[%s3 + $0x1e8] sm:$0xff] %vm926, %v923
  %989 = vst.msk [vmem:[%s3 + $0x1f0] sm:$0xff] %vm926, %v924
  %990 = vst.msk [vmem:[%s3 + $0x1f8] sm:$0xff] %vm926, %v925
  // Predicated region
  $region14: #{fno2d_forward.5} parent=0 // pred_check
    _
  $region15: #{fno2d_forward.5} parent=0 // pred_check_branch
    %992 = sbr.rel (0) target = $region17
  $region16: #{fno2d_forward.5} parent=0 // pred_region
    _
  $region17: #{fno2d_forward.5} parent=0 // pred_fallthru
    _
  // Predicated region
  $region18: #{fno2d_forward.5} parent=0 // pred_check
    _
  $region19: #{fno2d_forward.5} parent=0 // pred_check_branch
    %994 = sbr.rel (0) target = $region21
  $region20: #{fno2d_forward.5} parent=0 // pred_region
    _
  $region21: #{fno2d_forward.5} parent=0 // pred_fallthru
    _

// kernel: fno2d_forward.6
$region0: #{fno2d_forward.6}
  #allocation0 [shape = 'u32[]', space=smem, size = 0x4, offset = 0x4, fixed_abs, tag = 'smem constant byte address 0x4 - core index']
  #allocation1 [shape = 'u32[144,128]{1,0:T(1,128)}', space=vmem, size = 0x12000, scoped, tag = 'internal scratch']
  %s0 = inlined_call_operand.vmem [shape: f32[2,16,2,64], index: 0, kind: input, shape index: {}]
  %s1 = inlined_call_operand.vmem [shape: f32[2,16,64,64], index: 1, kind: input, shape index: {}]
  %s2 = inlined_call_operand.vmem [shape: f32[2,16,2,64], index: 2, kind: output, shape index: {}]
  %s3 = sld [smem:[#allocation0]]
  $region41: #{fno2d_forward.6} parent=0
    _
  %s5 = ssub.s32 1, %s3
  %s6 = scalar_select 0, %s5, %s3
  loop: start=0, step=1, limit=4
  $region2: #{fno2d_forward.6} parent=0 // loop_pre_header
    _
  $region3: #{fno2d_forward.6} parent=0 // loop_header
    %s8 = sphi 0, %s12
    %p9 = scmp.ge.s32.totalorder %s8, 4
    %s15 = sphi 0, %s27
    %s16 = sphi 0, %s23
    %s17 = sphi 0, %s15
    %s18 = sphi 0, %s16
    %s19 = sphi 0, %s17
    %s20 = sphi 0, %s18
    %s32 = sphi 0, %s34
    %s35 = sphi 0, %s32
    %s36 = sphi 0, %s35
    %s52 = sphi 0, %s36
    %s60 = sphi 0, %s62
    %s63 = sphi 0, %s60
    %s64 = sphi 0, %s63
    %s80 = sphi 0, %s64
    %s88 = sphi 0, %s90
    %s91 = sphi 0, %s88
    %s92 = sphi 0, %s91
    %s108 = sphi 0, %s92
  $region4: #{fno2d_forward.6} parent=0 // loop_header_branch
    %11 = sbr.rel (%p9) target = $region8
  $region5: #{fno2d_forward.6} parent=0 // loop_body
    %s13 = ssub.s32 %s8, 1
    %s14 = ssub.s32 %s8, 2
    %s21 = sadd.s32 1, %s16
    %p22 = scmp.ge.s32.totalorder %s21, 1
    %s23 = scalar_select %p22, 0, %s21
    %s24 = sadd.s32 1, %s15
    %s25 = scalar_select %p22, %s24, %s15
    %p26 = scmp.ge.s32.totalorder %s25, 2
    %s27 = scalar_select %p26, 0, %s25
    %s28 = ssub.s32 %s15, %s27
    %s29 = ssub.s32 %s16, %s23
    %s30 = sor.u32 %s28, %s29
    %p31 = scmp.eq.s32.totalorder %s30, 0
    %s33 = sadd.s32 %s32, 1
    %s34 = scalar_select %p31, %s32, %s33
    %p37 = pneg %p31
    %p38 = scmp.eq.s32.totalorder %s8, 1
    %p39 = por %p37, %p38
    %p40 = scmp.ne.s32.totalorder %s32, %s35
    %p41 = scmp.eq.s32.totalorder %s8, 0
    %p42 = por %p40, %p41
    %p43 = scmp.ne.s32.totalorder %s32, %s35
    %p44 = scmp.eq.s32.totalorder %s13, 1
    %p45 = por %p43, %p44
    %p46 = scmp.ne.s32.totalorder %s35, %s36
    %p47 = scmp.eq.s32.totalorder %s13, 0
    %p48 = por %p46, %p47
    %p49 = scmp.ne.s32.totalorder %s35, %s36
    %p50 = scmp.eq.s32.totalorder %s14, 1
    %p51 = por %p49, %p50
    %p53 = scmp.ne.s32.totalorder %s36, %s52
    %p54 = scmp.eq.s32.totalorder %s14, 0
    %p55 = por %p53, %p54
    %s56 = ssub.s32 %s15, %s27
    %s57 = ssub.s32 %s16, %s23
    %s58 = sor.u32 %s56, %s57
    %p59 = scmp.eq.s32.totalorder %s58, 0
    %s61 = sadd.s32 %s60, 1
    %s62 = scalar_select %p59, %s60, %s61
    %p65 = pneg %p59
    %p66 = scmp.eq.s32.totalorder %s8, 1
    %p67 = por %p65, %p66
    %p68 = scmp.ne.s32.totalorder %s60, %s63
    %p69 = scmp.eq.s32.totalorder %s8, 0
    %p70 = por %p68, %p69
    %p71 = scmp.ne.s32.totalorder %s60, %s63
    %p72 = scmp.eq.s32.totalorder %s13, 1
    %p73 = por %p71, %p72
    %p74 = scmp.ne.s32.totalorder %s63, %s64
    %p75 = scmp.eq.s32.totalorder %s13, 0
    %p76 = por %p74, %p75
    %p77 = scmp.ne.s32.totalorder %s63, %s64
    %p78 = scmp.eq.s32.totalorder %s14, 1
    %p79 = por %p77, %p78
    %p81 = scmp.ne.s32.totalorder %s64, %s80
    %p82 = scmp.eq.s32.totalorder %s14, 0
    %p83 = por %p81, %p82
    %s84 = ssub.s32 %s15, %s27
    %s85 = ssub.s32 %s16, %s23
    %s86 = sor.u32 %s84, %s85
    %p87 = scmp.eq.s32.totalorder %s86, 0
    %s89 = sadd.s32 %s88, 1
    %s90 = scalar_select %p87, %s88, %s89
    %p93 = pneg %p87
    %p94 = scmp.eq.s32.totalorder %s8, 1
    %p95 = por %p93, %p94
    %p96 = scmp.ne.s32.totalorder %s88, %s91
    %p97 = scmp.eq.s32.totalorder %s8, 0
    %p98 = por %p96, %p97
    %p99 = scmp.ne.s32.totalorder %s88, %s91
    %p100 = scmp.eq.s32.totalorder %s13, 1
    %p101 = por %p99, %p100
    %p102 = scmp.ne.s32.totalorder %s91, %s92
    %p103 = scmp.eq.s32.totalorder %s13, 0
    %p104 = por %p102, %p103
    %p105 = scmp.ne.s32.totalorder %s91, %s92
    %p106 = scmp.eq.s32.totalorder %s14, 1
    %p107 = por %p105, %p106
    %p109 = scmp.ne.s32.totalorder %s92, %s108
    %p110 = scmp.eq.s32.totalorder %s14, 0
    %p111 = por %p109, %p110
    %p112 = scmp.le.s32.totalorder 1, %s8
    %p113 = scmp.lt.s32.totalorder %s8, 3
    %p114 = pnand %p112, %p113
    %p115 = pneg %p114
    // Predicated region
    $region9: #{fno2d_forward.6} parent=5 // pred_check
      _
    $region10: #{fno2d_forward.6} parent=5 // pred_check_branch
      %117 = sbr.rel (%p114) target = $region12
    $region11: #{fno2d_forward.6} parent=5 // pred_region
      %s118 = ssub.s32 %s8, 1
    $region12: #{fno2d_forward.6} parent=5 // pred_fallthru
      _
    %p119 = scmp.lt.s32.totalorder %s8, 2
    // Predicated region
    $region13: #{fno2d_forward.6} parent=5 // pred_check
      %p120 = pneg %p119
    $region14: #{fno2d_forward.6} parent=5 // pred_check_branch
      %122 = sbr.rel (%p120) target = $region16
    $region15: #{fno2d_forward.6} parent=5 // pred_region
      // Predicated region
      $region17: #{fno2d_forward.6} parent=15 // pred_check
        %p123 = pneg %p42
      $region18: #{fno2d_forward.6} parent=15 // pred_check_branch
        %125 = sbr.rel (%p123) target = $region20
      $region19: #{fno2d_forward.6} parent=15 // pred_region
        %s126 = smul.u32 16, %s16
        %p127 = scmp.lt.s32.totalorder %s15, 1
        %s128 = scalar_select %p127, %s15, 1
        %p129 = scmp.lt.s32.totalorder %s126, 15
        %s130 = scalar_select %p129, %s126, 15
        %s131 = smul.addr %s128, 16
        %s132 = sadd.s32 %s130, %s131
        %s133 = smul.addr %s132, 2
        %s134 = scalar_lea.vmem %s0, %s133
        %s135 = smul.u32 16, %s16
      $region20: #{fno2d_forward.6} parent=15 // pred_fallthru
        _
      // Predicated region
      $region21: #{fno2d_forward.6} parent=15 // pred_check
        %p136 = pneg %p70
      $region22: #{fno2d_forward.6} parent=15 // pred_check_branch
        %138 = sbr.rel (%p136) target = $region24
      $region23: #{fno2d_forward.6} parent=15 // pred_region
        %s139 = smul.u32 16, %s16
        %p140 = scmp.lt.s32.totalorder %s15, 1
        %s141 = scalar_select %p140, %s15, 1
        %p142 = scmp.lt.s32.totalorder %s139, 15
        %s143 = scalar_select %p142, %s139, 15
        %s144 = smul.addr %s143, 8
        %s145 = smul.addr %s141, 128
        %s146 = sadd.s32 %s144, %s145
        %s147 = smul.addr %s146, 8
        %s148 = scalar_lea.vmem %s1, %s147
        %s149 = smul.u32 16, %s16
      $region24: #{fno2d_forward.6} parent=15 // pred_fallthru
        _
    $region16: #{fno2d_forward.6} parent=5 // pred_fallthru
      _
    %p150 = scmp.le.s32.totalorder 1, %s8
    %p151 = scmp.lt.s32.totalorder %s8, 3
    %p152 = pnand %p150, %p151
    %p153 = pneg %p152
    // Predicated region
    $region25: #{fno2d_forward.6} parent=5 // pred_check
      _
    $region26: #{fno2d_forward.6} parent=5 // pred_check_branch
      %155 = sbr.rel (%p152) target = $region28
    $region27: #{fno2d_forward.6} parent=5 // pred_region
      %s156 = ssub.s32 %s8, 1
      %s157 = smul.u32 16, %s18
      %p158 = scmp.lt.s32.totalorder %s17, 1
      %s159 = scalar_select %p158, %s17, 1
      %p160 = scmp.lt.s32.totalorder %s157, 15
      %s161 = scalar_select %p160, %s157, 15
      %s162 = smul.addr %s159, 16
      %s163 = sadd.s32 %s161, %s162
      %s164 = smul.addr %s163, 2
      %s165 = scalar_lea.vmem %s0, %s164
      %p166 = pneg %p48
      %p167 = pneg %p45
      %s168 = smul.u32 16, %s18
      %p169 = scmp.lt.s32.totalorder %s17, 1
      %s170 = scalar_select %p169, %s17, 1
      %p171 = scmp.lt.s32.totalorder %s168, 15
      %s172 = scalar_select %p171, %s168, 15
      %s173 = smul.addr %s172, 8
      %s174 = smul.addr %s170, 128
      %s175 = sadd.s32 %s173, %s174
      %s176 = smul.addr %s175, 8
      %s177 = scalar_lea.vmem %s1, %s176
      %p178 = pneg %p76
      %p179 = pneg %p73
      %p180 = pneg %p104
      %p181 = pneg %p101
      %s182 = smul.u32 16, %s18
      %p183 = scmp.lt.s32.totalorder %s17, 1
      %s184 = scalar_select %p183, %s17, 1
      %p185 = scmp.lt.s32.totalorder %s182, 15
      %s186 = scalar_select %p185, %s182, 15
      %s187 = smul.addr %s184, 16
      %s188 = sadd.s32 %s186, %s187
      %s189 = smul.addr %s188, 2
      %s190 = scalar_lea.vmem %s2, %s189
      %s191 = smul.u32 16, %s18
      %p192 = scmp.lt.s32.totalorder %s17, 1
      %s193 = scalar_select %p192, %s17, 1
      %p194 = scmp.lt.s32.totalorder %s191, 15
      %s195 = scalar_select %p194, %s191, 15
      %s196 = smul.addr %s193, 16
      %s197 = sadd.s32 %s195, %s196
      %s198 = smul.addr %s197, 2
      %s199 = scalar_lea.vmem %s0, %s198
      %s200 = smul.u32 16, %s18
      %s201 = smul.u32 16, %s18
      %p202 = scmp.lt.s32.totalorder %s17, 1
      %s203 = scalar_select %p202, %s17, 1
      %p204 = scmp.lt.s32.totalorder %s201, 15
      %s205 = scalar_select %p204, %s201, 15
      %s206 = smul.addr %s205, 8
      %s207 = smul.addr %s203, 128
      %s208 = sadd.s32 %s206, %s207
      %s209 = smul.addr %s208, 8
      %s210 = scalar_lea.vmem %s1, %s209
      %s211 = smul.u32 16, %s18
      %s212 = smul.u32 16, %s18
      %p213 = scmp.lt.s32.totalorder %s17, 1
      %s214 = scalar_select %p213, %s17, 1
      %p215 = scmp.lt.s32.totalorder %s212, 15
      %s216 = scalar_select %p215, %s212, 15
      %s217 = smul.addr %s214, 16
      %s218 = sadd.s32 %s216, %s217
      %s219 = smul.addr %s218, 2
      %s220 = scalar_lea.vmem %s2, %s219
      %s221 = smul.u32 16, %s18
      %v222 = vld [vmem:[%s199] sm:$0x3]
      %v223 = vld [vmem:[%s199 + $0x2] sm:$0x3]
      %v224 = vld [vmem:[%s199 + $0x4] sm:$0x3]
      %v225 = vld [vmem:[%s199 + $0x6] sm:$0x3]
      %v226 = vld [vmem:[%s199 + $0x8] sm:$0x3]
      %v227 = vld [vmem:[%s199 + $0xa] sm:$0x3]
      %v228 = vld [vmem:[%s199 + $0xc] sm:$0x3]
      %v229 = vld [vmem:[%s199 + $0xe] sm:$0x3]
      %v230 = vld [vmem:[%s199 + $0x10] sm:$0x3]
      %v231 = vld [vmem:[%s199 + $0x12] sm:$0x3]
      %v232 = vld [vmem:[%s199 + $0x14] sm:$0x3]
      %v233 = vld [vmem:[%s199 + $0x16] sm:$0x3]
      %v234 = vld [vmem:[%s199 + $0x18] sm:$0x3]
      %v235 = vld [vmem:[%s199 + $0x1a] sm:$0x3]
      %v236 = vld [vmem:[%s199 + $0x1c] sm:$0x3]
      %v237 = vld [vmem:[%s199 + $0x1e] sm:$0x3]
      %v238 = vld [vmem:[%s210] sm:$0xff]
      %v239 = vld [vmem:[%s210 + $0x8] sm:$0xff]
      %v240 = vld [vmem:[%s210 + $0x10] sm:$0xff]
      %v241 = vld [vmem:[%s210 + $0x18] sm:$0xff]
      %v242 = vld [vmem:[%s210 + $0x20] sm:$0xff]
      %v243 = vld [vmem:[%s210 + $0x28] sm:$0xff]
      %v244 = vld [vmem:[%s210 + $0x30] sm:$0xff]
      %v245 = vld [vmem:[%s210 + $0x38] sm:$0xff]
      %v246 = vld [vmem:[%s210 + $0x40] sm:$0xff]
      %v247 = vld [vmem:[%s210 + $0x48] sm:$0xff]
      %v248 = vld [vmem:[%s210 + $0x50] sm:$0xff]
      %v249 = vld [vmem:[%s210 + $0x58] sm:$0xff]
      %v250 = vld [vmem:[%s210 + $0x60] sm:$0xff]
      %v251 = vld [vmem:[%s210 + $0x68] sm:$0xff]
      %v252 = vld [vmem:[%s210 + $0x70] sm:$0xff]
      %v253 = vld [vmem:[%s210 + $0x78] sm:$0xff]
      %v254 = vld [vmem:[%s210 + $0x80] sm:$0xff]
      %v255 = vld [vmem:[%s210 + $0x88] sm:$0xff]
      %v256 = vld [vmem:[%s210 + $0x90] sm:$0xff]
      %v257 = vld [vmem:[%s210 + $0x98] sm:$0xff]
      %v258 = vld [vmem:[%s210 + $0xa0] sm:$0xff]
      %v259 = vld [vmem:[%s210 + $0xa8] sm:$0xff]
      %v260 = vld [vmem:[%s210 + $0xb0] sm:$0xff]
      %v261 = vld [vmem:[%s210 + $0xb8] sm:$0xff]
      %v262 = vld [vmem:[%s210 + $0xc0] sm:$0xff]
      %v263 = vld [vmem:[%s210 + $0xc8] sm:$0xff]
      %v264 = vld [vmem:[%s210 + $0xd0] sm:$0xff]
      %v265 = vld [vmem:[%s210 + $0xd8] sm:$0xff]
      %v266 = vld [vmem:[%s210 + $0xe0] sm:$0xff]
      %v267 = vld [vmem:[%s210 + $0xe8] sm:$0xff]
      %v268 = vld [vmem:[%s210 + $0xf0] sm:$0xff]
      %v269 = vld [vmem:[%s210 + $0xf8] sm:$0xff]
      %v270 = vld [vmem:[%s210 + $0x100] sm:$0xff]
      %v271 = vld [vmem:[%s210 + $0x108] sm:$0xff]
      %v272 = vld [vmem:[%s210 + $0x110] sm:$0xff]
      %v273 = vld [vmem:[%s210 + $0x118] sm:$0xff]
      %v274 = vld [vmem:[%s210 + $0x120] sm:$0xff]
      %v275 = vld [vmem:[%s210 + $0x128] sm:$0xff]
      %v276 = vld [vmem:[%s210 + $0x130] sm:$0xff]
      %v277 = vld [vmem:[%s210 + $0x138] sm:$0xff]
      %v278 = vld [vmem:[%s210 + $0x140] sm:$0xff]
      %v279 = vld [vmem:[%s210 + $0x148] sm:$0xff]
      %v280 = vld [vmem:[%s210 + $0x150] sm:$0xff]
      %v281 = vld [vmem:[%s210 + $0x158] sm:$0xff]
      %v282 = vld [vmem:[%s210 + $0x160] sm:$0xff]
      %v283 = vld [vmem:[%s210 + $0x168] sm:$0xff]
      %v284 = vld [vmem:[%s210 + $0x170] sm:$0xff]
      %v285 = vld [vmem:[%s210 + $0x178] sm:$0xff]
      %v286 = vld [vmem:[%s210 + $0x180] sm:$0xff]
      %v287 = vld [vmem:[%s210 + $0x188] sm:$0xff]
      %v288 = vld [vmem:[%s210 + $0x190] sm:$0xff]
      %v289 = vld [vmem:[%s210 + $0x198] sm:$0xff]
      %v290 = vld [vmem:[%s210 + $0x1a0] sm:$0xff]
      %v291 = vld [vmem:[%s210 + $0x1a8] sm:$0xff]
      %v292 = vld [vmem:[%s210 + $0x1b0] sm:$0xff]
      %v293 = vld [vmem:[%s210 + $0x1b8] sm:$0xff]
      %v294 = vld [vmem:[%s210 + $0x1c0] sm:$0xff]
      %v295 = vld [vmem:[%s210 + $0x1c8] sm:$0xff]
      %v296 = vld [vmem:[%s210 + $0x1d0] sm:$0xff]
      %v297 = vld [vmem:[%s210 + $0x1d8] sm:$0xff]
      %v298 = vld [vmem:[%s210 + $0x1e0] sm:$0xff]
      %v299 = vld [vmem:[%s210 + $0x1e8] sm:$0xff]
      %v300 = vld [vmem:[%s210 + $0x1f0] sm:$0xff]
      %v301 = vld [vmem:[%s210 + $0x1f8] sm:$0xff]
      %v302 = vld [vmem:[%s210 + $0x200] sm:$0xff]
      %v303 = vld [vmem:[%s210 + $0x208] sm:$0xff]
      %v304 = vld [vmem:[%s210 + $0x210] sm:$0xff]
      %v305 = vld [vmem:[%s210 + $0x218] sm:$0xff]
      %v306 = vld [vmem:[%s210 + $0x220] sm:$0xff]
      %v307 = vld [vmem:[%s210 + $0x228] sm:$0xff]
      %v308 = vld [vmem:[%s210 + $0x230] sm:$0xff]
      %v309 = vld [vmem:[%s210 + $0x238] sm:$0xff]
      %v310 = vld [vmem:[%s210 + $0x240] sm:$0xff]
      %v311 = vld [vmem:[%s210 + $0x248] sm:$0xff]
      %v312 = vld [vmem:[%s210 + $0x250] sm:$0xff]
      %v313 = vld [vmem:[%s210 + $0x258] sm:$0xff]
      %v314 = vld [vmem:[%s210 + $0x260] sm:$0xff]
      %v315 = vld [vmem:[%s210 + $0x268] sm:$0xff]
      %v316 = vld [vmem:[%s210 + $0x270] sm:$0xff]
      %v317 = vld [vmem:[%s210 + $0x278] sm:$0xff]
      %v318 = vld [vmem:[%s210 + $0x280] sm:$0xff]
      %v319 = vld [vmem:[%s210 + $0x288] sm:$0xff]
      %v320 = vld [vmem:[%s210 + $0x290] sm:$0xff]
      %v321 = vld [vmem:[%s210 + $0x298] sm:$0xff]
      %v322 = vld [vmem:[%s210 + $0x2a0] sm:$0xff]
      %v323 = vld [vmem:[%s210 + $0x2a8] sm:$0xff]
      %v324 = vld [vmem:[%s210 + $0x2b0] sm:$0xff]
      %v325 = vld [vmem:[%s210 + $0x2b8] sm:$0xff]
      %v326 = vld [vmem:[%s210 + $0x2c0] sm:$0xff]
      %v327 = vld [vmem:[%s210 + $0x2c8] sm:$0xff]
      %v328 = vld [vmem:[%s210 + $0x2d0] sm:$0xff]
      %v329 = vld [vmem:[%s210 + $0x2d8] sm:$0xff]
      %v330 = vld [vmem:[%s210 + $0x2e0] sm:$0xff]
      %v331 = vld [vmem:[%s210 + $0x2e8] sm:$0xff]
      %v332 = vld [vmem:[%s210 + $0x2f0] sm:$0xff]
      %v333 = vld [vmem:[%s210 + $0x2f8] sm:$0xff]
      %v334 = vld [vmem:[%s210 + $0x300] sm:$0xff]
      %v335 = vld [vmem:[%s210 + $0x308] sm:$0xff]
      %v336 = vld [vmem:[%s210 + $0x310] sm:$0xff]
      %v337 = vld [vmem:[%s210 + $0x318] sm:$0xff]
      %v338 = vld [vmem:[%s210 + $0x320] sm:$0xff]
      %v339 = vld [vmem:[%s210 + $0x328] sm:$0xff]
      %v340 = vld [vmem:[%s210 + $0x330] sm:$0xff]
      %v341 = vld [vmem:[%s210 + $0x338] sm:$0xff]
      %v342 = vld [vmem:[%s210 + $0x340] sm:$0xff]
      %v343 = vld [vmem:[%s210 + $0x348] sm:$0xff]
      %v344 = vld [vmem:[%s210 + $0x350] sm:$0xff]
      %v345 = vld [vmem:[%s210 + $0x358] sm:$0xff]
      %v346 = vld [vmem:[%s210 + $0x360] sm:$0xff]
      %v347 = vld [vmem:[%s210 + $0x368] sm:$0xff]
      %v348 = vld [vmem:[%s210 + $0x370] sm:$0xff]
      %v349 = vld [vmem:[%s210 + $0x378] sm:$0xff]
      %v350 = vld [vmem:[%s210 + $0x380] sm:$0xff]
      %v351 = vld [vmem:[%s210 + $0x388] sm:$0xff]
      %v352 = vld [vmem:[%s210 + $0x390] sm:$0xff]
      %v353 = vld [vmem:[%s210 + $0x398] sm:$0xff]
      %v354 = vld [vmem:[%s210 + $0x3a0] sm:$0xff]
      %v355 = vld [vmem:[%s210 + $0x3a8] sm:$0xff]
      %v356 = vld [vmem:[%s210 + $0x3b0] sm:$0xff]
      %v357 = vld [vmem:[%s210 + $0x3b8] sm:$0xff]
      %v358 = vld [vmem:[%s210 + $0x3c0] sm:$0xff]
      %v359 = vld [vmem:[%s210 + $0x3c8] sm:$0xff]
      %v360 = vld [vmem:[%s210 + $0x3d0] sm:$0xff]
      %v361 = vld [vmem:[%s210 + $0x3d8] sm:$0xff]
      %v362 = vld [vmem:[%s210 + $0x3e0] sm:$0xff]
      %v363 = vld [vmem:[%s210 + $0x3e8] sm:$0xff]
      %v364 = vld [vmem:[%s210 + $0x3f0] sm:$0xff]
      %v365 = vld [vmem:[%s210 + $0x3f8] sm:$0xff]
      %vm366 = vcmask 523264
      %v368 = vsel %vm366, %v222, 0
      %370 = vmatprep.subr.mxu0 0.0
      %371 = vmatpush1.msra.mxu0 %v238
      %372 = vmatprep.subr.mxu0 0.0
      %373 = vmatpush1.msra.mxu0 %v239
      %374 = vmatprep.subr.mxu0 0.0
      %375 = vmatpush1.msra.mxu0 %v240
      %376 = vmatprep.subr.mxu0 0.0
      %377 = vmatpush1.msra.mxu0 %v241
      %378 = vmatprep.subr.mxu0 0.0
      %379 = vmatpush1.msra.mxu0 %v242
      %380 = vmatprep.subr.mxu0 0.0
      %381 = vmatpush1.msra.mxu0 %v243
      %382 = vmatprep.subr.mxu0 0.0
      %383 = vmatpush1.msra.mxu0 %v244
      %384 = vmatprep.subr.mxu0 0.0
      %385 = vmatpush1.msra.mxu0 %v245
      %386 = vmatprep.subr.mxu0 0.0
      %387 = vmatpush1.msra.mxu0 0.0
      %388 = vmatprep.subr.mxu0 0.0
      %389 = vmatpush1.msra.mxu0 0.0
      %390 = vmatprep.subr.mxu0 0.0
      %391 = vmatpush1.msra.mxu0 0.0
      %392 = vmatprep.subr.mxu0 0.0
      %393 = vmatpush1.msra.mxu0 0.0
      %394 = vmatprep.subr.mxu0 0.0
      %395 = vmatpush1.msra.mxu0 0.0
      %396 = vmatprep.subr.mxu0 0.0
      %397 = vmatpush1.msra.mxu0 0.0
      %398 = vmatprep.subr.mxu0 0.0
      %399 = vmatpush1.msra.mxu0 0.0
      %400 = vmatprep.subr.mxu0 0.0
      %401 = vmatpush1.msra.mxu0 0.0
      %402 = vmatprep.subr.mxu0 0.0
      %403 = vmatpush1.msra.mxu0 0.0
      %404 = vmatprep.subr.mxu0 0.0
      %405 = vmatpush1.msra.mxu0 0.0
      %406 = vmatprep.subr.mxu0 0.0
      %407 = vmatpush1.msra.mxu0 0.0
      %408 = vmatprep.subr.mxu0 0.0
      %409 = vmatpush1.msra.mxu0 0.0
      %410 = vmatprep.subr.mxu0 0.0
      %411 = vmatpush1.msra.mxu0 0.0
      %412 = vmatprep.subr.mxu0 0.0
      %413 = vmatpush1.msra.mxu0 0.0
      %414 = vmatprep.subr.mxu0 0.0
      %415 = vmatpush1.msra.mxu0 0.0
      %416 = vmatprep.subr.mxu0 0.0
      %417 = vmatpush1.msra.mxu0 0.0
      %418 = vmatprep.subr.mxu0 0.0
      %419 = vmatpush1.msra.mxu0 0.0
      %420 = vmatprep.subr.mxu0 0.0
      %421 = vmatpush1.msra.mxu0 0.0
      %422 = vmatprep.subr.mxu0 0.0
      %423 = vmatpush1.msra.mxu0 0.0
      %424 = vmatprep.subr.mxu0 0.0
      %425 = vmatpush1.msra.mxu0 0.0
      %426 = vmatprep.subr.mxu0 0.0
      %427 = vmatpush1.msra.mxu0 0.0
      %428 = vmatprep.subr.mxu0 0.0
      %429 = vmatpush1.msra.mxu0 0.0
      %430 = vmatprep.subr.mxu0 0.0
      %431 = vmatpush1.msra.mxu0 0.0
      %432 = vmatprep.subr.mxu0 0.0
      %433 = vmatpush1.msra.mxu0 0.0
      %434 = vmatprep.mubr.f32.mxu0 0.0
      %435 = vmatmul.mubr.f32.gmra.mrb[0].mxu0 %v368
      %v436 = vpop.f32.mrb[0].mxu0
      %v437 = vadd.f32 0.0, %v436
      %v438 = vpop.f32.mrb[0].mxu0
      %439 = vdwg.mxu0
      %v441 = vsel %vm366, %v223, 0
      %443 = vmatprep.subr.mxu0 0.0
      %444 = vmatpush1.msra.mxu0 %v246
      %445 = vmatprep.subr.mxu0 0.0
      %446 = vmatpush1.msra.mxu0 %v247
      %447 = vmatprep.subr.mxu0 0.0
      %448 = vmatpush1.msra.mxu0 %v248
      %449 = vmatprep.subr.mxu0 0.0
      %450 = vmatpush1.msra.mxu0 %v249
      %451 = vmatprep.subr.mxu0 0.0
      %452 = vmatpush1.msra.mxu0 %v250
      %453 = vmatprep.subr.mxu0 0.0
      %454 = vmatpush1.msra.mxu0 %v251
      %455 = vmatprep.subr.mxu0 0.0
      %456 = vmatpush1.msra.mxu0 %v252
      %457 = vmatprep.subr.mxu0 0.0
      %458 = vmatpush1.msra.mxu0 %v253
      %459 = vmatprep.subr.mxu0 0.0
      %460 = vmatpush1.msra.mxu0 0.0
      %461 = vmatprep.subr.mxu0 0.0
      %462 = vmatpush1.msra.mxu0 0.0
      %463 = vmatprep.subr.mxu0 0.0
      %464 = vmatpush1.msra.mxu0 0.0
      %465 = vmatprep.subr.mxu0 0.0
      %466 = vmatpush1.msra.mxu0 0.0
      %467 = vmatprep.subr.mxu0 0.0
      %468 = vmatpush1.msra.mxu0 0.0
      %469 = vmatprep.subr.mxu0 0.0
      %470 = vmatpush1.msra.mxu0 0.0
      %471 = vmatprep.subr.mxu0 0.0
      %472 = vmatpush1.msra.mxu0 0.0
      %473 = vmatprep.subr.mxu0 0.0
      %474 = vmatpush1.msra.mxu0 0.0
      %475 = vmatprep.subr.mxu0 0.0
      %476 = vmatpush1.msra.mxu0 0.0
      %477 = vmatprep.subr.mxu0 0.0
      %478 = vmatpush1.msra.mxu0 0.0
      %479 = vmatprep.subr.mxu0 0.0
      %480 = vmatpush1.msra.mxu0 0.0
      %481 = vmatprep.subr.mxu0 0.0
      %482 = vmatpush1.msra.mxu0 0.0
      %483 = vmatprep.subr.mxu0 0.0
      %484 = vmatpush1.msra.mxu0 0.0
      %485 = vmatprep.subr.mxu0 0.0
      %486 = vmatpush1.msra.mxu0 0.0
      %487 = vmatprep.subr.mxu0 0.0
      %488 = vmatpush1.msra.mxu0 0.0
      %489 = vmatprep.subr.mxu0 0.0
      %490 = vmatpush1.msra.mxu0 0.0
      %491 = vmatprep.subr.mxu0 0.0
      %492 = vmatpush1.msra.mxu0 0.0
      %493 = vmatprep.subr.mxu0 0.0
      %494 = vmatpush1.msra.mxu0 0.0
      %495 = vmatprep.subr.mxu0 0.0
      %496 = vmatpush1.msra.mxu0 0.0
      %497 = vmatprep.subr.mxu0 0.0
      %498 = vmatpush1.msra.mxu0 0.0
      %499 = vmatprep.subr.mxu0 0.0
      %500 = vmatpush1.msra.mxu0 0.0
      %501 = vmatprep.subr.mxu0 0.0
      %502 = vmatpush1.msra.mxu0 0.0
      %503 = vmatprep.subr.mxu0 0.0
      %504 = vmatpush1.msra.mxu0 0.0
      %505 = vmatprep.subr.mxu0 0.0
      %506 = vmatpush1.msra.mxu0 0.0
      %507 = vmatprep.mubr.f32.mxu0 0.0
      %508 = vmatmul.mubr.f32.gmra.mrb[0].mxu0 %v441
      %v509 = vpop.f32.mrb[0].mxu0
      %v510 = vadd.f32 0.0, %v509
      %v511 = vpop.f32.mrb[0].mxu0
      %512 = vdwg.mxu0
      %v514 = vsel %vm366, %v224, 0
      %516 = vmatprep.subr.mxu0 0.0
      %517 = vmatpush1.msra.mxu0 %v254
      %518 = vmatprep.subr.mxu0 0.0
      %519 = vmatpush1.msra.mxu0 %v255
      %520 = vmatprep.subr.mxu0 0.0
      %521 = vmatpush1.msra.mxu0 %v256
      %522 = vmatprep.subr.mxu0 0.0
      %523 = vmatpush1.msra.mxu0 %v257
      %524 = vmatprep.subr.mxu0 0.0
      %525 = vmatpush1.msra.mxu0 %v258
      %526 = vmatprep.subr.mxu0 0.0
      %527 = vmatpush1.msra.mxu0 %v259
      %528 = vmatprep.subr.mxu0 0.0
      %529 = vmatpush1.msra.mxu0 %v260
      %530 = vmatprep.subr.mxu0 0.0
      %531 = vmatpush1.msra.mxu0 %v261
      %532 = vmatprep.subr.mxu0 0.0
      %533 = vmatpush1.msra.mxu0 0.0
      %534 = vmatprep.subr.mxu0 0.0
      %535 = vmatpush1.msra.mxu0 0.0
      %536 = vmatprep.subr.mxu0 0.0
      %537 = vmatpush1.msra.mxu0 0.0
      %538 = vmatprep.subr.mxu0 0.0
      %539 = vmatpush1.msra.mxu0 0.0
      %540 = vmatprep.subr.mxu0 0.0
      %541 = vmatpush1.msra.mxu0 0.0
      %542 = vmatprep.subr.mxu0 0.0
      %543 = vmatpush1.msra.mxu0 0.0
      %544 = vmatprep.subr.mxu0 0.0
      %545 = vmatpush1.msra.mxu0 0.0
      %546 = vmatprep.subr.mxu0 0.0
      %547 = vmatpush1.msra.mxu0 0.0
      %548 = vmatprep.subr.mxu0 0.0
      %549 = vmatpush1.msra.mxu0 0.0
      %550 = vmatprep.subr.mxu0 0.0
      %551 = vmatpush1.msra.mxu0 0.0
      %552 = vmatprep.subr.mxu0 0.0
      %553 = vmatpush1.msra.mxu0 0.0
      %554 = vmatprep.subr.mxu0 0.0
      %555 = vmatpush1.msra.mxu0 0.0
      %556 = vmatprep.subr.mxu0 0.0
      %557 = vmatpush1.msra.mxu0 0.0
      %558 = vmatprep.subr.mxu0 0.0
      %559 = vmatpush1.msra.mxu0 0.0
      %560 = vmatprep.subr.mxu0 0.0
      %561 = vmatpush1.msra.mxu0 0.0
      %562 = vmatprep.subr.mxu0 0.0
      %563 = vmatpush1.msra.mxu0 0.0
      %564 = vmatprep.subr.mxu0 0.0
      %565 = vmatpush1.msra.mxu0 0.0
      %566 = vmatprep.subr.mxu0 0.0
      %567 = vmatpush1.msra.mxu0 0.0
      %568 = vmatprep.subr.mxu0 0.0
      %569 = vmatpush1.msra.mxu0 0.0
      %570 = vmatprep.subr.mxu0 0.0
      %571 = vmatpush1.msra.mxu0 0.0
      %572 = vmatprep.subr.mxu0 0.0
      %573 = vmatpush1.msra.mxu0 0.0
      %574 = vmatprep.subr.mxu0 0.0
      %575 = vmatpush1.msra.mxu0 0.0
      %576 = vmatprep.subr.mxu0 0.0
      %577 = vmatpush1.msra.mxu0 0.0
      %578 = vmatprep.subr.mxu0 0.0
      %579 = vmatpush1.msra.mxu0 0.0
      %580 = vmatprep.mubr.f32.mxu0 0.0
      %581 = vmatmul.mubr.f32.gmra.mrb[0].mxu0 %v514
      %v582 = vpop.f32.mrb[0].mxu0
      %v583 = vadd.f32 0.0, %v582
      %v584 = vpop.f32.mrb[0].mxu0
      %585 = vdwg.mxu0
      %v587 = vsel %vm366, %v225, 0
      %589 = vmatprep.subr.mxu0 0.0
      %590 = vmatpush1.msra.mxu0 %v262
      %591 = vmatprep.subr.mxu0 0.0
      %592 = vmatpush1.msra.mxu0 %v263
      %593 = vmatprep.subr.mxu0 0.0
      %594 = vmatpush1.msra.mxu0 %v264
      %595 = vmatprep.subr.mxu0 0.0
      %596 = vmatpush1.msra.mxu0 %v265
      %597 = vmatprep.subr.mxu0 0.0
      %598 = vmatpush1.msra.mxu0 %v266
      %599 = vmatprep.subr.mxu0 0.0
      %600 = vmatpush1.msra.mxu0 %v267
      %601 = vmatprep.subr.mxu0 0.0
      %602 = vmatpush1.msra.mxu0 %v268
      %603 = vmatprep.subr.mxu0 0.0
      %604 = vmatpush1.msra.mxu0 %v269
      %605 = vmatprep.subr.mxu0 0.0
      %606 = vmatpush1.msra.mxu0 0.0
      %607 = vmatprep.subr.mxu0 0.0
      %608 = vmatpush1.msra.mxu0 0.0
      %609 = vmatprep.subr.mxu0 0.0
      %610 = vmatpush1.msra.mxu0 0.0
      %611 = vmatprep.subr.mxu0 0.0
      %612 = vmatpush1.msra.mxu0 0.0
      %613 = vmatprep.subr.mxu0 0.0
      %614 = vmatpush1.msra.mxu0 0.0
      %615 = vmatprep.subr.mxu0 0.0
      %616 = vmatpush1.msra.mxu0 0.0
      %617 = vmatprep.subr.mxu0 0.0
      %618 = vmatpush1.msra.mxu0 0.0
      %619 = vmatprep.subr.mxu0 0.0
      %620 = vmatpush1.msra.mxu0 0.0
      %621 = vmatprep.subr.mxu0 0.0
      %622 = vmatpush1.msra.mxu0 0.0
      %623 = vmatprep.subr.mxu0 0.0
      %624 = vmatpush1.msra.mxu0 0.0
      %625 = vmatprep.subr.mxu0 0.0
      %626 = vmatpush1.msra.mxu0 0.0
      %627 = vmatprep.subr.mxu0 0.0
      %628 = vmatpush1.msra.mxu0 0.0
      %629 = vmatprep.subr.mxu0 0.0
      %630 = vmatpush1.msra.mxu0 0.0
      %631 = vmatprep.subr.mxu0 0.0
      %632 = vmatpush1.msra.mxu0 0.0
      %633 = vmatprep.subr.mxu0 0.0
      %634 = vmatpush1.msra.mxu0 0.0
      %635 = vmatprep.subr.mxu0 0.0
      %636 = vmatpush1.msra.mxu0 0.0
      %637 = vmatprep.subr.mxu0 0.0
      %638 = vmatpush1.msra.mxu0 0.0
      %639 = vmatprep.subr.mxu0 0.0
      %640 = vmatpush1.msra.mxu0 0.0
      %641 = vmatprep.subr.mxu0 0.0
      %642 = vmatpush1.msra.mxu0 0.0
      %643 = vmatprep.subr.mxu0 0.0
      %644 = vmatpush1.msra.mxu0 0.0
      %645 = vmatprep.subr.mxu0 0.0
      %646 = vmatpush1.msra.mxu0 0.0
      %647 = vmatprep.subr.mxu0 0.0
      %648 = vmatpush1.msra.mxu0 0.0
      %649 = vmatprep.subr.mxu0 0.0
      %650 = vmatpush1.msra.mxu0 0.0
      %651 = vmatprep.subr.mxu0 0.0
      %652 = vmatpush1.msra.mxu0 0.0
      %653 = vmatprep.mubr.f32.mxu0 0.0
      %654 = vmatmul.mubr.f32.gmra.mrb[0].mxu0 %v587
      %v655 = vpop.f32.mrb[0].mxu0
      %v656 = vadd.f32 0.0, %v655
      %v657 = vpop.f32.mrb[0].mxu0
      %658 = vdwg.mxu0
      %v660 = vsel %vm366, %v226, 0
      %662 = vmatprep.subr.mxu0 0.0
      %663 = vmatpush1.msra.mxu0 %v270
      %664 = vmatprep.subr.mxu0 0.0
      %665 = vmatpush1.msra.mxu0 %v271
      %666 = vmatprep.subr.mxu0 0.0
      %667 = vmatpush1.msra.mxu0 %v272
      %668 = vmatprep.subr.mxu0 0.0
      %669 = vmatpush1.msra.mxu0 %v273
      %670 = vmatprep.subr.mxu0 0.0
      %671 = vmatpush1.msra.mxu0 %v274
      %672 = vmatprep.subr.mxu0 0.0
      %673 = vmatpush1.msra.mxu0 %v275
      %674 = vmatprep.subr.mxu0 0.0
      %675 = vmatpush1.msra.mxu0 %v276
      %676 = vmatprep.subr.mxu0 0.0
      %677 = vmatpush1.msra.mxu0 %v277
      %678 = vmatprep.subr.mxu0 0.0
      %679 = vmatpush1.msra.mxu0 0.0
      %680 = vmatprep.subr.mxu0 0.0
      %681 = vmatpush1.msra.mxu0 0.0
      %682 = vmatprep.subr.mxu0 0.0
      %683 = vmatpush1.msra.mxu0 0.0
      %684 = vmatprep.subr.mxu0 0.0
      %685 = vmatpush1.msra.mxu0 0.0
      %686 = vmatprep.subr.mxu0 0.0
      %687 = vmatpush1.msra.mxu0 0.0
      %688 = vmatprep.subr.mxu0 0.0
      %689 = vmatpush1.msra.mxu0 0.0
      %690 = vmatprep.subr.mxu0 0.0
      %691 = vmatpush1.msra.mxu0 0.0
      %692 = vmatprep.subr.mxu0 0.0
      %693 = vmatpush1.msra.mxu0 0.0
      %694 = vmatprep.subr.mxu0 0.0
      %695 = vmatpush1.msra.mxu0 0.0
      %696 = vmatprep.subr.mxu0 0.0
      %697 = vmatpush1.msra.mxu0 0.0
      %698 = vmatprep.subr.mxu0 0.0
      %699 = vmatpush1.msra.mxu0 0.0
      %700 = vmatprep.subr.mxu0 0.0
      %701 = vmatpush1.msra.mxu0 0.0
      %702 = vmatprep.subr.mxu0 0.0
      %703 = vmatpush1.msra.mxu0 0.0
      %704 = vmatprep.subr.mxu0 0.0
      %705 = vmatpush1.msra.mxu0 0.0
      %706 = vmatprep.subr.mxu0 0.0
      %707 = vmatpush1.msra.mxu0 0.0
      %708 = vmatprep.subr.mxu0 0.0
      %709 = vmatpush1.msra.mxu0 0.0
      %710 = vmatprep.subr.mxu0 0.0
      %711 = vmatpush1.msra.mxu0 0.0
      %712 = vmatprep.subr.mxu0 0.0
      %713 = vmatpush1.msra.mxu0 0.0
      %714 = vmatprep.subr.mxu0 0.0
      %715 = vmatpush1.msra.mxu0 0.0
      %716 = vmatprep.subr.mxu0 0.0
      %717 = vmatpush1.msra.mxu0 0.0
      %718 = vmatprep.subr.mxu0 0.0
      %719 = vmatpush1.msra.mxu0 0.0
      %720 = vmatprep.subr.mxu0 0.0
      %721 = vmatpush1.msra.mxu0 0.0
      %722 = vmatprep.subr.mxu0 0.0
      %723 = vmatpush1.msra.mxu0 0.0
      %724 = vmatprep.subr.mxu0 0.0
      %725 = vmatpush1.msra.mxu0 0.0
      %726 = vmatprep.mubr.f32.mxu0 0.0
      %727 = vmatmul.mubr.f32.gmra.mrb[0].mxu0 %v660
      %v728 = vpop.f32.mrb[0].mxu0
      %v729 = vadd.f32 0.0, %v728
      %v730 = vpop.f32.mrb[0].mxu0
      %731 = vdwg.mxu0
      %v733 = vsel %vm366, %v227, 0
      %735 = vmatprep.subr.mxu0 0.0
      %736 = vmatpush1.msra.mxu0 %v278
      %737 = vmatprep.subr.mxu0 0.0
      %738 = vmatpush1.msra.mxu0 %v279
      %739 = vmatprep.subr.mxu0 0.0
      %740 = vmatpush1.msra.mxu0 %v280
      %741 = vmatprep.subr.mxu0 0.0
      %742 = vmatpush1.msra.mxu0 %v281
      %743 = vmatprep.subr.mxu0 0.0
      %744 = vmatpush1.msra.mxu0 %v282
      %745 = vmatprep.subr.mxu0 0.0
      %746 = vmatpush1.msra.mxu0 %v283
      %747 = vmatprep.subr.mxu0 0.0
      %748 = vmatpush1.msra.mxu0 %v284
      %749 = vmatprep.subr.mxu0 0.0
      %750 = vmatpush1.msra.mxu0 %v285
      %751 = vmatprep.subr.mxu0 0.0
      %752 = vmatpush1.msra.mxu0 0.0
      %753 = vmatprep.subr.mxu0 0.0
      %754 = vmatpush1.msra.mxu0 0.0
      %755 = vmatprep.subr.mxu0 0.0
      %756 = vmatpush1.msra.mxu0 0.0
      %757 = vmatprep.subr.mxu0 0.0
      %758 = vmatpush1.msra.mxu0 0.0
      %759 = vmatprep.subr.mxu0 0.0
      %760 = vmatpush1.msra.mxu0 0.0
      %761 = vmatprep.subr.mxu0 0.0
      %762 = vmatpush1.msra.mxu0 0.0
      %763 = vmatprep.subr.mxu0 0.0
      %764 = vmatpush1.msra.mxu0 0.0
      %765 = vmatprep.subr.mxu0 0.0
      %766 = vmatpush1.msra.mxu0 0.0
      %767 = vmatprep.subr.mxu0 0.0
      %768 = vmatpush1.msra.mxu0 0.0
      %769 = vmatprep.subr.mxu0 0.0
      %770 = vmatpush1.msra.mxu0 0.0
      %771 = vmatprep.subr.mxu0 0.0
      %772 = vmatpush1.msra.mxu0 0.0
      %773 = vmatprep.subr.mxu0 0.0
      %774 = vmatpush1.msra.mxu0 0.0
      %775 = vmatprep.subr.mxu0 0.0
      %776 = vmatpush1.msra.mxu0 0.0
      %777 = vmatprep.subr.mxu0 0.0
      %778 = vmatpush1.msra.mxu0 0.0
      %779 = vmatprep.subr.mxu0 0.0
      %780 = vmatpush1.msra.mxu0 0.0
      %781 = vmatprep.subr.mxu0 0.0
      %782 = vmatpush1.msra.mxu0 0.0
      %783 = vmatprep.subr.mxu0 0.0
      %784 = vmatpush1.msra.mxu0 0.0
      %785 = vmatprep.subr.mxu0 0.0
      %786 = vmatpush1.msra.mxu0 0.0
      %787 = vmatprep.subr.mxu0 0.0
      %788 = vmatpush1.msra.mxu0 0.0
      %789 = vmatprep.subr.mxu0 0.0
      %790 = vmatpush1.msra.mxu0 0.0
      %791 = vmatprep.subr.mxu0 0.0
      %792 = vmatpush1.msra.mxu0 0.0
      %793 = vmatprep.subr.mxu0 0.0
      %794 = vmatpush1.msra.mxu0 0.0
      %795 = vmatprep.subr.mxu0 0.0
      %796 = vmatpush1.msra.mxu0 0.0
      %797 = vmatprep.subr.mxu0 0.0
      %798 = vmatpush1.msra.mxu0 0.0
      %799 = vmatprep.mubr.f32.mxu0 0.0
      %800 = vmatmul.mubr.f32.gmra.mrb[0].mxu0 %v733
      %v801 = vpop.f32.mrb[0].mxu0
      %v802 = vadd.f32 0.0, %v801
      %v803 = vpop.f32.mrb[0].mxu0
      %804 = vdwg.mxu0
      %v806 = vsel %vm366, %v228, 0
      %808 = vmatprep.subr.mxu0 0.0
      %809 = vmatpush1.msra.mxu0 %v286
      %810 = vmatprep.subr.mxu0 0.0
      %811 = vmatpush1.msra.mxu0 %v287
      %812 = vmatprep.subr.mxu0 0.0
      %813 = vmatpush1.msra.mxu0 %v288
      %814 = vmatprep.subr.mxu0 0.0
      %815 = vmatpush1.msra.mxu0 %v289
      %816 = vmatprep.subr.mxu0 0.0
      %817 = vmatpush1.msra.mxu0 %v290
      %818 = vmatprep.subr.mxu0 0.0
      %819 = vmatpush1.msra.mxu0 %v291
      %820 = vmatprep.subr.mxu0 0.0
      %821 = vmatpush1.msra.mxu0 %v292
      %822 = vmatprep.subr.mxu0 0.0
      %823 = vmatpush1.msra.mxu0 %v293
      %824 = vmatprep.subr.mxu0 0.0
      %825 = vmatpush1.msra.mxu0 0.0
      %826 = vmatprep.subr.mxu0 0.0
      %827 = vmatpush1.msra.mxu0 0.0
      %828 = vmatprep.subr.mxu0 0.0
      %829 = vmatpush1.msra.mxu0 0.0
      %830 = vmatprep.subr.mxu0 0.0
      %831 = vmatpush1.msra.mxu0 0.0
      %832 = vmatprep.subr.mxu0 0.0
      %833 = vmatpush1.msra.mxu0 0.0
      %834 = vmatprep.subr.mxu0 0.0
      %835 = vmatpush1.msra.mxu0 0.0
      %836 = vmatprep.subr.mxu0 0.0
      %837 = vmatpush1.msra.mxu0 0.0
      %838 = vmatprep.subr.mxu0 0.0
      %839 = vmatpush1.msra.mxu0 0.0
      %840 = vmatprep.subr.mxu0 0.0
      %841 = vmatpush1.msra.mxu0 0.0
      %842 = vmatprep.subr.mxu0 0.0
      %843 = vmatpush1.msra.mxu0 0.0
      %844 = vmatprep.subr.mxu0 0.0
      %845 = vmatpush1.msra.mxu0 0.0
      %846 = vmatprep.subr.mxu0 0.0
      %847 = vmatpush1.msra.mxu0 0.0
      %848 = vmatprep.subr.mxu0 0.0
      %849 = vmatpush1.msra.mxu0 0.0
      %850 = vmatprep.subr.mxu0 0.0
      %851 = vmatpush1.msra.mxu0 0.0
      %852 = vmatprep.subr.mxu0 0.0
      %853 = vmatpush1.msra.mxu0 0.0
      %854 = vmatprep.subr.mxu0 0.0
      %855 = vmatpush1.msra.mxu0 0.0
      %856 = vmatprep.subr.mxu0 0.0
      %857 = vmatpush1.msra.mxu0 0.0
      %858 = vmatprep.subr.mxu0 0.0
      %859 = vmatpush1.msra.mxu0 0.0
      %860 = vmatprep.subr.mxu0 0.0
      %861 = vmatpush1.msra.mxu0 0.0
      %862 = vmatprep.subr.mxu0 0.0
      %863 = vmatpush1.msra.mxu0 0.0
      %864 = vmatprep.subr.mxu0 0.0
      %865 = vmatpush1.msra.mxu0 0.0
      %866 = vmatprep.subr.mxu0 0.0
      %867 = vmatpush1.msra.mxu0 0.0
      %868 = vmatprep.subr.mxu0 0.0
      %869 = vmatpush1.msra.mxu0 0.0
      %870 = vmatprep.subr.mxu0 0.0
      %871 = vmatpush1.msra.mxu0 0.0
      %872 = vmatprep.mubr.f32.mxu0 0.0
      %873 = vmatmul.mubr.f32.gmra.mrb[0].mxu0 %v806
      %v874 = vpop.f32.mrb[0].mxu0
      %v875 = vadd.f32 0.0, %v874
      %v876 = vpop.f32.mrb[0].mxu0
      %877 = vdwg.mxu0
      %v879 = vsel %vm366, %v229, 0
      %881 = vmatprep.subr.mxu0 0.0
      %882 = vmatpush1.msra.mxu0 %v294
      %883 = vmatprep.subr.mxu0 0.0
      %884 = vmatpush1.msra.mxu0 %v295
      %885 = vmatprep.subr.mxu0 0.0
      %886 = vmatpush1.msra.mxu0 %v296
      %887 = vmatprep.subr.mxu0 0.0
      %888 = vmatpush1.msra.mxu0 %v297
      %889 = vmatprep.subr.mxu0 0.0
      %890 = vmatpush1.msra.mxu0 %v298
      %891 = vmatprep.subr.mxu0 0.0
      %892 = vmatpush1.msra.mxu0 %v299
      %893 = vmatprep.subr.mxu0 0.0
      %894 = vmatpush1.msra.mxu0 %v300
      %895 = vmatprep.subr.mxu0 0.0
      %896 = vmatpush1.msra.mxu0 %v301
      %897 = vmatprep.subr.mxu0 0.0
      %898 = vmatpush1.msra.mxu0 0.0
      %899 = vmatprep.subr.mxu0 0.0
      %900 = vmatpush1.msra.mxu0 0.0
      %901 = vmatprep.subr.mxu0 0.0
      %902 = vmatpush1.msra.mxu0 0.0
      %903 = vmatprep.subr.mxu0 0.0
      %904 = vmatpush1.msra.mxu0 0.0
      %905 = vmatprep.subr.mxu0 0.0
      %906 = vmatpush1.msra.mxu0 0.0
      %907 = vmatprep.subr.mxu0 0.0
      %908 = vmatpush1.msra.mxu0 0.0
      %909 = vmatprep.subr.mxu0 0.0
      %910 = vmatpush1.msra.mxu0 0.0
      %911 = vmatprep.subr.mxu0 0.0
      %912 = vmatpush1.msra.mxu0 0.0
      %913 = vmatprep.subr.mxu0 0.0
      %914 = vmatpush1.msra.mxu0 0.0
      %915 = vmatprep.subr.mxu0 0.0
      %916 = vmatpush1.msra.mxu0 0.0
      %917 = vmatprep.subr.mxu0 0.0
      %918 = vmatpush1.msra.mxu0 0.0
      %919 = vmatprep.subr.mxu0 0.0
      %920 = vmatpush1.msra.mxu0 0.0
      %921 = vmatprep.subr.mxu0 0.0
      %922 = vmatpush1.msra.mxu0 0.0
      %923 = vmatprep.subr.mxu0 0.0
      %924 = vmatpush1.msra.mxu0 0.0
      %925 = vmatprep.subr.mxu0 0.0
      %926 = vmatpush1.msra.mxu0 0.0
      %927 = vmatprep.subr.mxu0 0.0
      %928 = vmatpush1.msra.mxu0 0.0
      %929 = vmatprep.subr.mxu0 0.0
      %930 = vmatpush1.msra.mxu0 0.0
      %931 = vmatprep.subr.mxu0 0.0
      %932 = vmatpush1.msra.mxu0 0.0
      %933 = vmatprep.subr.mxu0 0.0
      %934 = vmatpush1.msra.mxu0 0.0
      %935 = vmatprep.subr.mxu0 0.0
      %936 = vmatpush1.msra.mxu0 0.0
      %937 = vmatprep.subr.mxu0 0.0
      %938 = vmatpush1.msra.mxu0 0.0
      %939 = vmatprep.subr.mxu0 0.0
      %940 = vmatpush1.msra.mxu0 0.0
      %941 = vmatprep.subr.mxu0 0.0
      %942 = vmatpush1.msra.mxu0 0.0
      %943 = vmatprep.subr.mxu0 0.0
      %944 = vmatpush1.msra.mxu0 0.0
      %945 = vmatprep.mubr.f32.mxu0 0.0
      %946 = vmatmul.mubr.f32.gmra.mrb[0].mxu0 %v879
      %v947 = vpop.f32.mrb[0].mxu0
      %v948 = vadd.f32 0.0, %v947
      %v949 = vpop.f32.mrb[0].mxu0
      %950 = vdwg.mxu0
      %v952 = vsel %vm366, %v230, 0
      %954 = vmatprep.subr.mxu0 0.0
      %955 = vmatpush1.msra.mxu0 %v302
      %956 = vmatprep.subr.mxu0 0.0
      %957 = vmatpush1.msra.mxu0 %v303
      %958 = vmatprep.subr.mxu0 0.0
      %959 = vmatpush1.msra.mxu0 %v304
      %960 = vmatprep.subr.mxu0 0.0
      %961 = vmatpush1.msra.mxu0 %v305
      %962 = vmatprep.subr.mxu0 0.0
      %963 = vmatpush1.msra.mxu0 %v306
      %964 = vmatprep.subr.mxu0 0.0
      %965 = vmatpush1.msra.mxu0 %v307
      %966 = vmatprep.subr.mxu0 0.0
      %967 = vmatpush1.msra.mxu0 %v308
      %968 = vmatprep.subr.mxu0 0.0
      %969 = vmatpush1.msra.mxu0 %v309
      %970 = vmatprep.subr.mxu0 0.0
      %971 = vmatpush1.msra.mxu0 0.0
      %972 = vmatprep.subr.mxu0 0.0
      %973 = vmatpush1.msra.mxu0 0.0
      %974 = vmatprep.subr.mxu0 0.0
      %975 = vmatpush1.msra.mxu0 0.0
      %976 = vmatprep.subr.mxu0 0.0
      %977 = vmatpush1.msra.mxu0 0.0
      %978 = vmatprep.subr.mxu0 0.0
      %979 = vmatpush1.msra.mxu0 0.0
      %980 = vmatprep.subr.mxu0 0.0
      %981 = vmatpush1.msra.mxu0 0.0
      %982 = vmatprep.subr.mxu0 0.0
      %983 = vmatpush1.msra.mxu0 0.0
      %984 = vmatprep.subr.mxu0 0.0
      %985 = vmatpush1.msra.mxu0 0.0
      %986 = vmatprep.subr.mxu0 0.0
      %987 = vmatpush1.msra.mxu0 0.0
      %988 = vmatprep.subr.mxu0 0.0
      %989 = vmatpush1.msra.mxu0 0.0
      %990 = vmatprep.subr.mxu0 0.0
      %991 = vmatpush1.msra.mxu0 0.0
      %992 = vmatprep.subr.mxu0 0.0
      %993 = vmatpush1.msra.mxu0 0.0
      %994 = vmatprep.subr.mxu0 0.0
      %995 = vmatpush1.msra.mxu0 0.0
      %996 = vmatprep.subr.mxu0 0.0
      %997 = vmatpush1.msra.mxu0 0.0
      %998 = vmatprep.subr.mxu0 0.0
      %999 = vmatpush1.msra.mxu0 0.0
      %1000 = vmatprep.subr.mxu0 0.0
      %1001 = vmatpush1.msra.mxu0 0.0
      %1002 = vmatprep.subr.mxu0 0.0
      %1003 = vmatpush1.msra.mxu0 0.0
      %1004 = vmatprep.subr.mxu0 0.0
      %1005 = vmatpush1.msra.mxu0 0.0
      %1006 = vmatprep.subr.mxu0 0.0
      %1007 = vmatpush1.msra.mxu0 0.0
      %1008 = vmatprep.subr.mxu0 0.0
      %1009 = vmatpush1.msra.mxu0 0.0
      %1010 = vmatprep.subr.mxu0 0.0
      %1011 = vmatpush1.msra.mxu0 0.0
      %1012 = vmatprep.subr.mxu0 0.0
      %1013 = vmatpush1.msra.mxu0 0.0
      %1014 = vmatprep.subr.mxu0 0.0
      %1015 = vmatpush1.msra.mxu0 0.0
      %1016 = vmatprep.subr.mxu0 0.0
      %1017 = vmatpush1.msra.mxu0 0.0
      %1018 = vmatprep.mubr.f32.mxu0 0.0
      %1019 = vmatmul.mubr.f32.gmra.mrb[0].mxu0 %v952
      %v1020 = vpop.f32.mrb[0].mxu0
      %v1021 = vadd.f32 0.0, %v1020
      %v1022 = vpop.f32.mrb[0].mxu0
      %1023 = vdwg.mxu0
      %v1025 = vsel %vm366, %v231, 0
      %1027 = vmatprep.subr.mxu0 0.0
      %1028 = vmatpush1.msra.mxu0 %v310
      %1029 = vmatprep.subr.mxu0 0.0
      %1030 = vmatpush1.msra.mxu0 %v311
      %1031 = vmatprep.subr.mxu0 0.0
      %1032 = vmatpush1.msra.mxu0 %v312
      %1033 = vmatprep.subr.mxu0 0.0
      %1034 = vmatpush1.msra.mxu0 %v313
      %1035 = vmatprep.subr.mxu0 0.0
      %1036 = vmatpush1.msra.mxu0 %v314
      %1037 = vmatprep.subr.mxu0 0.0
      %1038 = vmatpush1.msra.mxu0 %v315
      %1039 = vmatprep.subr.mxu0 0.0
      %1040 = vmatpush1.msra.mxu0 %v316
      %1041 = vmatprep.subr.mxu0 0.0
      %1042 = vmatpush1.msra.mxu0 %v317
      %1043 = vmatprep.subr.mxu0 0.0
      %1044 = vmatpush1.msra.mxu0 0.0
      %1045 = vmatprep.subr.mxu0 0.0
      %1046 = vmatpush1.msra.mxu0 0.0
      %1047 = vmatprep.subr.mxu0 0.0
      %1048 = vmatpush1.msra.mxu0 0.0
      %1049 = vmatprep.subr.mxu0 0.0
      %1050 = vmatpush1.msra.mxu0 0.0
      %1051 = vmatprep.subr.mxu0 0.0
      %1052 = vmatpush1.msra.mxu0 0.0
      %1053 = vmatprep.subr.mxu0 0.0
      %1054 = vmatpush1.msra.mxu0 0.0
      %1055 = vmatprep.subr.mxu0 0.0
      %1056 = vmatpush1.msra.mxu0 0.0
      %1057 = vmatprep.subr.mxu0 0.0
      %1058 = vmatpush1.msra.mxu0 0.0
      %1059 = vmatprep.subr.mxu0 0.0
      %1060 = vmatpush1.msra.mxu0 0.0
      %1061 = vmatprep.subr.mxu0 0.0
      %1062 = vmatpush1.msra.mxu0 0.0
      %1063 = vmatprep.subr.mxu0 0.0
      %1064 = vmatpush1.msra.mxu0 0.0
      %1065 = vmatprep.subr.mxu0 0.0
      %1066 = vmatpush1.msra.mxu0 0.0
      %1067 = vmatprep.subr.mxu0 0.0
      %1068 = vmatpush1.msra.mxu0 0.0
      %1069 = vmatprep.subr.mxu0 0.0
      %1070 = vmatpush1.msra.mxu0 0.0
      %1071 = vmatprep.subr.mxu0 0.0
      %1072 = vmatpush1.msra.mxu0 0.0
      %1073 = vmatprep.subr.mxu0 0.0
      %1074 = vmatpush1.msra.mxu0 0.0
      %1075 = vmatprep.subr.mxu0 0.0
      %1076 = vmatpush1.msra.mxu0 0.0
      %1077 = vmatprep.subr.mxu0 0.0
      %1078 = vmatpush1.msra.mxu0 0.0
      %1079 = vmatprep.subr.mxu0 0.0
      %1080 = vmatpush1.msra.mxu0 0.0
      %1081 = vmatprep.subr.mxu0 0.0
      %1082 = vmatpush1.msra.mxu0 0.0
      %1083 = vmatprep.subr.mxu0 0.0
      %1084 = vmatpush1.msra.mxu0 0.0
      %1085 = vmatprep.subr.mxu0 0.0
      %1086 = vmatpush1.msra.mxu0 0.0
      %1087 = vmatprep.subr.mxu0 0.0
      %1088 = vmatpush1.msra.mxu0 0.0
      %1089 = vmatprep.subr.mxu0 0.0
      %1090 = vmatpush1.msra.mxu0 0.0
      %1091 = vmatprep.mubr.f32.mxu0 0.0
      %1092 = vmatmul.mubr.f32.gmra.mrb[0].mxu0 %v1025
      %v1093 = vpop.f32.mrb[0].mxu0
      %v1094 = vadd.f32 0.0, %v1093
      %v1095 = vpop.f32.mrb[0].mxu0
      %1096 = vdwg.mxu0
      %v1098 = vsel %vm366, %v232, 0
      %1100 = vmatprep.subr.mxu0 0.0
      %1101 = vmatpush1.msra.mxu0 %v318
      %1102 = vmatprep.subr.mxu0 0.0
      %1103 = vmatpush1.msra.mxu0 %v319
      %1104 = vmatprep.subr.mxu0 0.0
      %1105 = vmatpush1.msra.mxu0 %v320
      %1106 = vmatprep.subr.mxu0 0.0
      %1107 = vmatpush1.msra.mxu0 %v321
      %1108 = vmatprep.subr.mxu0 0.0
      %1109 = vmatpush1.msra.mxu0 %v322
      %1110 = vmatprep.subr.mxu0 0.0
      %1111 = vmatpush1.msra.mxu0 %v323
      %1112 = vmatprep.subr.mxu0 0.0
      %1113 = vmatpush1.msra.mxu0 %v324
      %1114 = vmatprep.subr.mxu0 0.0
      %1115 = vmatpush1.msra.mxu0 %v325
      %1116 = vmatprep.subr.mxu0 0.0
      %1117 = vmatpush1.msra.mxu0 0.0
      %1118 = vmatprep.subr.mxu0 0.0
      %1119 = vmatpush1.msra.mxu0 0.0
      %1120 = vmatprep.subr.mxu0 0.0
      %1121 = vmatpush1.msra.mxu0 0.0
      %1122 = vmatprep.subr.mxu0 0.0
      %1123 = vmatpush1.msra.mxu0 0.0
      %1124 = vmatprep.subr.mxu0 0.0
      %1125 = vmatpush1.msra.mxu0 0.0
      %1126 = vmatprep.subr.mxu0 0.0
      %1127 = vmatpush1.msra.mxu0 0.0
      %1128 = vmatprep.subr.mxu0 0.0
      %1129 = vmatpush1.msra.mxu0 0.0
      %1130 = vmatprep.subr.mxu0 0.0
      %1131 = vmatpush1.msra.mxu0 0.0
      %1132 = vmatprep.subr.mxu0 0.0
      %1133 = vmatpush1.msra.mxu0 0.0
      %1134 = vmatprep.subr.mxu0 0.0
      %1135 = vmatpush1.msra.mxu0 0.0
      %1136 = vmatprep.subr.mxu0 0.0
      %1137 = vmatpush1.msra.mxu0 0.0
      %1138 = vmatprep.subr.mxu0 0.0
      %1139 = vmatpush1.msra.mxu0 0.0
      %1140 = vmatprep.subr.mxu0 0.0
      %1141 = vmatpush1.msra.mxu0 0.0
      %1142 = vmatprep.subr.mxu0 0.0
      %1143 = vmatpush1.msra.mxu0 0.0
      %1144 = vmatprep.subr.mxu0 0.0
      %1145 = vmatpush1.msra.mxu0 0.0
      %1146 = vmatprep.subr.mxu0 0.0
      %1147 = vmatpush1.msra.mxu0 0.0
      %1148 = vmatprep.subr.mxu0 0.0
      %1149 = vmatpush1.msra.mxu0 0.0
      %1150 = vmatprep.subr.mxu0 0.0
      %1151 = vmatpush1.msra.mxu0 0.0
      %1152 = vmatprep.subr.mxu0 0.0
      %1153 = vmatpush1.msra.mxu0 0.0
      %1154 = vmatprep.subr.mxu0 0.0
      %1155 = vmatpush1.msra.mxu0 0.0
      %1156 = vmatprep.subr.mxu0 0.0
      %1157 = vmatpush1.msra.mxu0 0.0
      %1158 = vmatprep.subr.mxu0 0.0
      %1159 = vmatpush1.msra.mxu0 0.0
      %1160 = vmatprep.subr.mxu0 0.0
      %1161 = vmatpush1.msra.mxu0 0.0
      %1162 = vmatprep.subr.mxu0 0.0
      %1163 = vmatpush1.msra.mxu0 0.0
      %1164 = vmatprep.mubr.f32.mxu0 0.0
      %1165 = vmatmul.mubr.f32.gmra.mrb[0].mxu0 %v1098
      %v1166 = vpop.f32.mrb[0].mxu0
      %v1167 = vadd.f32 0.0, %v1166
      %v1168 = vpop.f32.mrb[0].mxu0
      %1169 = vdwg.mxu0
      %v1171 = vsel %vm366, %v233, 0
      %1173 = vmatprep.subr.mxu0 0.0
      %1174 = vmatpush1.msra.mxu0 %v326
      %1175 = vmatprep.subr.mxu0 0.0
      %1176 = vmatpush1.msra.mxu0 %v327
      %1177 = vmatprep.subr.mxu0 0.0
      %1178 = vmatpush1.msra.mxu0 %v328
      %1179 = vmatprep.subr.mxu0 0.0
      %1180 = vmatpush1.msra.mxu0 %v329
      %1181 = vmatprep.subr.mxu0 0.0
      %1182 = vmatpush1.msra.mxu0 %v330
      %1183 = vmatprep.subr.mxu0 0.0
      %1184 = vmatpush1.msra.mxu0 %v331
      %1185 = vmatprep.subr.mxu0 0.0
      %1186 = vmatpush1.msra.mxu0 %v332
      %1187 = vmatprep.subr.mxu0 0.0
      %1188 = vmatpush1.msra.mxu0 %v333
      %1189 = vmatprep.subr.mxu0 0.0
      %1190 = vmatpush1.msra.mxu0 0.0
      %1191 = vmatprep.subr.mxu0 0.0
      %1192 = vmatpush1.msra.mxu0 0.0
      %1193 = vmatprep.subr.mxu0 0.0
      %1194 = vmatpush1.msra.mxu0 0.0
      %1195 = vmatprep.subr.mxu0 0.0
      %1196 = vmatpush1.msra.mxu0 0.0
      %1197 = vmatprep.subr.mxu0 0.0
      %1198 = vmatpush1.msra.mxu0 0.0
      %1199 = vmatprep.subr.mxu0 0.0
      %1200 = vmatpush1.msra.mxu0 0.0
      %1201 = vmatprep.subr.mxu0 0.0
      %1202 = vmatpush1.msra.mxu0 0.0
      %1203 = vmatprep.subr.mxu0 0.0
      %1204 = vmatpush1.msra.mxu0 0.0
      %1205 = vmatprep.subr.mxu0 0.0
      %1206 = vmatpush1.msra.mxu0 0.0
      %1207 = vmatprep.subr.mxu0 0.0
      %1208 = vmatpush1.msra.mxu0 0.0
      %1209 = vmatprep.subr.mxu0 0.0
      %1210 = vmatpush1.msra.mxu0 0.0
      %1211 = vmatprep.subr.mxu0 0.0
      %1212 = vmatpush1.msra.mxu0 0.0
      %1213 = vmatprep.subr.mxu0 0.0
      %1214 = vmatpush1.msra.mxu0 0.0
      %1215 = vmatprep.subr.mxu0 0.0
      %1216 = vmatpush1.msra.mxu0 0.0
      %1217 = vmatprep.subr.mxu0 0.0
      %1218 = vmatpush1.msra.mxu0 0.0
      %1219 = vmatprep.subr.mxu0 0.0
      %1220 = vmatpush1.msra.mxu0 0.0
      %1221 = vmatprep.subr.mxu0 0.0
      %1222 = vmatpush1.msra.mxu0 0.0
      %1223 = vmatprep.subr.mxu0 0.0
      %1224 = vmatpush1.msra.mxu0 0.0
      %1225 = vmatprep.subr.mxu0 0.0
      %1226 = vmatpush1.msra.mxu0 0.0
      %1227 = vmatprep.subr.mxu0 0.0
      %1228 = vmatpush1.msra.mxu0 0.0
      %1229 = vmatprep.subr.mxu0 0.0
      %1230 = vmatpush1.msra.mxu0 0.0
      %1231 = vmatprep.subr.mxu0 0.0
      %1232 = vmatpush1.msra.mxu0 0.0
      %1233 = vmatprep.subr.mxu0 0.0
      %1234 = vmatpush1.msra.mxu0 0.0
      %1235 = vmatprep.subr.mxu0 0.0
      %1236 = vmatpush1.msra.mxu0 0.0
      %1237 = vmatprep.mubr.f32.mxu0 0.0
      %1238 = vmatmul.mubr.f32.gmra.mrb[0].mxu0 %v1171
      %v1239 = vpop.f32.mrb[0].mxu0
      %v1240 = vadd.f32 0.0, %v1239
      %v1241 = vpop.f32.mrb[0].mxu0
      %1242 = vdwg.mxu0
      %v1244 = vsel %vm366, %v234, 0
      %1246 = vmatprep.subr.mxu0 0.0
      %1247 = vmatpush1.msra.mxu0 %v334
      %1248 = vmatprep.subr.mxu0 0.0
      %1249 = vmatpush1.msra.mxu0 %v335
      %1250 = vmatprep.subr.mxu0 0.0
      %1251 = vmatpush1.msra.mxu0 %v336
      %1252 = vmatprep.subr.mxu0 0.0
      %1253 = vmatpush1.msra.mxu0 %v337
      %1254 = vmatprep.subr.mxu0 0.0
      %1255 = vmatpush1.msra.mxu0 %v338
      %1256 = vmatprep.subr.mxu0 0.0
      %1257 = vmatpush1.msra.mxu0 %v339
      %1258 = vmatprep.subr.mxu0 0.0
      %1259 = vmatpush1.msra.mxu0 %v340
      %1260 = vmatprep.subr.mxu0 0.0
      %1261 = vmatpush1.msra.mxu0 %v341
      %1262 = vmatprep.subr.mxu0 0.0
      %1263 = vmatpush1.msra.mxu0 0.0
      %1264 = vmatprep.subr.mxu0 0.0
      %1265 = vmatpush1.msra.mxu0 0.0
      %1266 = vmatprep.subr.mxu0 0.0
      %1267 = vmatpush1.msra.mxu0 0.0
      %1268 = vmatprep.subr.mxu0 0.0
      %1269 = vmatpush1.msra.mxu0 0.0
      %1270 = vmatprep.subr.mxu0 0.0
      %1271 = vmatpush1.msra.mxu0 0.0
      %1272 = vmatprep.subr.mxu0 0.0
      %1273 = vmatpush1.msra.mxu0 0.0
      %1274 = vmatprep.subr.mxu0 0.0
      %1275 = vmatpush1.msra.mxu0 0.0
      %1276 = vmatprep.subr.mxu0 0.0
      %1277 = vmatpush1.msra.mxu0 0.0
      %1278 = vmatprep.subr.mxu0 0.0
      %1279 = vmatpush1.msra.mxu0 0.0
      %1280 = vmatprep.subr.mxu0 0.0
      %1281 = vmatpush1.msra.mxu0 0.0
      %1282 = vmatprep.subr.mxu0 0.0
      %1283 = vmatpush1.msra.mxu0 0.0
      %1284 = vmatprep.subr.mxu0 0.0
      %1285 = vmatpush1.msra.mxu0 0.0
      %1286 = vmatprep.subr.mxu0 0.0
      %1287 = vmatpush1.msra.mxu0 0.0
      %1288 = vmatprep.subr.mxu0 0.0
      %1289 = vmatpush1.msra.mxu0 0.0
      %1290 = vmatprep.subr.mxu0 0.0
      %1291 = vmatpush1.msra.mxu0 0.0
      %1292 = vmatprep.subr.mxu0 0.0
      %1293 = vmatpush1.msra.mxu0 0.0
      %1294 = vmatprep.subr.mxu0 0.0
      %1295 = vmatpush1.msra.mxu0 0.0
      %1296 = vmatprep.subr.mxu0 0.0
      %1297 = vmatpush1.msra.mxu0 0.0
      %1298 = vmatprep.subr.mxu0 0.0
      %1299 = vmatpush1.msra.mxu0 0.0
      %1300 = vmatprep.subr.mxu0 0.0
      %1301 = vmatpush1.msra.mxu0 0.0
      %1302 = vmatprep.subr.mxu0 0.0
      %1303 = vmatpush1.msra.mxu0 0.0
      %1304 = vmatprep.subr.mxu0 0.0
      %1305 = vmatpush1.msra.mxu0 0.0
      %1306 = vmatprep.subr.mxu0 0.0
      %1307 = vmatpush1.msra.mxu0 0.0
      %1308 = vmatprep.subr.mxu0 0.0
      %1309 = vmatpush1.msra.mxu0 0.0
      %1310 = vmatprep.mubr.f32.mxu0 0.0
      %1311 = vmatmul.mubr.f32.gmra.mrb[0].mxu0 %v1244
      %v1312 = vpop.f32.mrb[0].mxu0
      %v1313 = vadd.f32 0.0, %v1312
      %v1314 = vpop.f32.mrb[0].mxu0
      %1315 = vdwg.mxu0
      %v1317 = vsel %vm366, %v235, 0
      %1319 = vmatprep.subr.mxu0 0.0
      %1320 = vmatpush1.msra.mxu0 %v342
      %1321 = vmatprep.subr.mxu0 0.0
      %1322 = vmatpush1.msra.mxu0 %v343
      %1323 = vmatprep.subr.mxu0 0.0
      %1324 = vmatpush1.msra.mxu0 %v344
      %1325 = vmatprep.subr.mxu0 0.0
      %1326 = vmatpush1.msra.mxu0 %v345
      %1327 = vmatprep.subr.mxu0 0.0
      %1328 = vmatpush1.msra.mxu0 %v346
      %1329 = vmatprep.subr.mxu0 0.0
      %1330 = vmatpush1.msra.mxu0 %v347
      %1331 = vmatprep.subr.mxu0 0.0
      %1332 = vmatpush1.msra.mxu0 %v348
      %1333 = vmatprep.subr.mxu0 0.0
      %1334 = vmatpush1.msra.mxu0 %v349
      %1335 = vmatprep.subr.mxu0 0.0
      %1336 = vmatpush1.msra.mxu0 0.0
      %1337 = vmatprep.subr.mxu0 0.0
      %1338 = vmatpush1.msra.mxu0 0.0
      %1339 = vmatprep.subr.mxu0 0.0
      %1340 = vmatpush1.msra.mxu0 0.0
      %1341 = vmatprep.subr.mxu0 0.0
      %1342 = vmatpush1.msra.mxu0 0.0
      %1343 = vmatprep.subr.mxu0 0.0
      %1344 = vmatpush1.msra.mxu0 0.0
      %1345 = vmatprep.subr.mxu0 0.0
      %1346 = vmatpush1.msra.mxu0 0.0
      %1347 = vmatprep.subr.mxu0 0.0
      %1348 = vmatpush1.msra.mxu0 0.0
      %1349 = vmatprep.subr.mxu0 0.0
      %1350 = vmatpush1.msra.mxu0 0.0
      %1351 = vmatprep.subr.mxu0 0.0
      %1352 = vmatpush1.msra.mxu0 0.0
      %1353 = vmatprep.subr.mxu0 0.0
      %1354 = vmatpush1.msra.mxu0 0.0
      %1355 = vmatprep.subr.mxu0 0.0
      %1356 = vmatpush1.msra.mxu0 0.0
      %1357 = vmatprep.subr.mxu0 0.0
      %1358 = vmatpush1.msra.mxu0 0.0
      %1359 = vmatprep.subr.mxu0 0.0
      %1360 = vmatpush1.msra.mxu0 0.0
      %1361 = vmatprep.subr.mxu0 0.0
      %1362 = vmatpush1.msra.mxu0 0.0
      %1363 = vmatprep.subr.mxu0 0.0
      %1364 = vmatpush1.msra.mxu0 0.0
      %1365 = vmatprep.subr.mxu0 0.0
      %1366 = vmatpush1.msra.mxu0 0.0
      %1367 = vmatprep.subr.mxu0 0.0
      %1368 = vmatpush1.msra.mxu0 0.0
      %1369 = vmatprep.subr.mxu0 0.0
      %1370 = vmatpush1.msra.mxu0 0.0
      %1371 = vmatprep.subr.mxu0 0.0
      %1372 = vmatpush1.msra.mxu0 0.0
      %1373 = vmatprep.subr.mxu0 0.0
      %1374 = vmatpush1.msra.mxu0 0.0
      %1375 = vmatprep.subr.mxu0 0.0
      %1376 = vmatpush1.msra.mxu0 0.0
      %1377 = vmatprep.subr.mxu0 0.0
      %1378 = vmatpush1.msra.mxu0 0.0
      %1379 = vmatprep.subr.mxu0 0.0
      %1380 = vmatpush1.msra.mxu0 0.0
      %1381 = vmatprep.subr.mxu0 0.0
      %1382 = vmatpush1.msra.mxu0 0.0
      %1383 = vmatprep.mubr.f32.mxu0 0.0
      %1384 = vmatmul.mubr.f32.gmra.mrb[0].mxu0 %v1317
      %v1385 = vpop.f32.mrb[0].mxu0
      %v1386 = vadd.f32 0.0, %v1385
      %v1387 = vpop.f32.mrb[0].mxu0
      %1388 = vdwg.mxu0
      %v1390 = vsel %vm366, %v236, 0
      %1392 = vmatprep.subr.mxu0 0.0
      %1393 = vmatpush1.msra.mxu0 %v350
      %1394 = vmatprep.subr.mxu0 0.0
      %1395 = vmatpush1.msra.mxu0 %v351
      %1396 = vmatprep.subr.mxu0 0.0
      %1397 = vmatpush1.msra.mxu0 %v352
      %1398 = vmatprep.subr.mxu0 0.0
      %1399 = vmatpush1.msra.mxu0 %v353
      %1400 = vmatprep.subr.mxu0 0.0
      %1401 = vmatpush1.msra.mxu0 %v354
      %1402 = vmatprep.subr.mxu0 0.0
      %1403 = vmatpush1.msra.mxu0 %v355
      %1404 = vmatprep.subr.mxu0 0.0
      %1405 = vmatpush1.msra.mxu0 %v356
      %1406 = vmatprep.subr.mxu0 0.0
      %1407 = vmatpush1.msra.mxu0 %v357
      %1408 = vmatprep.subr.mxu0 0.0
      %1409 = vmatpush1.msra.mxu0 0.0
      %1410 = vmatprep.subr.mxu0 0.0
      %1411 = vmatpush1.msra.mxu0 0.0
      %1412 = vmatprep.subr.mxu0 0.0
      %1413 = vmatpush1.msra.mxu0 0.0
      %1414 = vmatprep.subr.mxu0 0.0
      %1415 = vmatpush1.msra.mxu0 0.0
      %1416 = vmatprep.subr.mxu0 0.0
      %1417 = vmatpush1.msra.mxu0 0.0
      %1418 = vmatprep.subr.mxu0 0.0
      %1419 = vmatpush1.msra.mxu0 0.0
      %1420 = vmatprep.subr.mxu0 0.0
      %1421 = vmatpush1.msra.mxu0 0.0
      %1422 = vmatprep.subr.mxu0 0.0
      %1423 = vmatpush1.msra.mxu0 0.0
      %1424 = vmatprep.subr.mxu0 0.0
      %1425 = vmatpush1.msra.mxu0 0.0
      %1426 = vmatprep.subr.mxu0 0.0
      %1427 = vmatpush1.msra.mxu0 0.0
      %1428 = vmatprep.subr.mxu0 0.0
      %1429 = vmatpush1.msra.mxu0 0.0
      %1430 = vmatprep.subr.mxu0 0.0
      %1431 = vmatpush1.msra.mxu0 0.0
      %1432 = vmatprep.subr.mxu0 0.0
      %1433 = vmatpush1.msra.mxu0 0.0
      %1434 = vmatprep.subr.mxu0 0.0
      %1435 = vmatpush1.msra.mxu0 0.0
      %1436 = vmatprep.subr.mxu0 0.0
      %1437 = vmatpush1.msra.mxu0 0.0
      %1438 = vmatprep.subr.mxu0 0.0
      %1439 = vmatpush1.msra.mxu0 0.0
      %1440 = vmatprep.subr.mxu0 0.0
      %1441 = vmatpush1.msra.mxu0 0.0
      %1442 = vmatprep.subr.mxu0 0.0
      %1443 = vmatpush1.msra.mxu0 0.0
      %1444 = vmatprep.subr.mxu0 0.0
      %1445 = vmatpush1.msra.mxu0 0.0
      %1446 = vmatprep.subr.mxu0 0.0
      %1447 = vmatpush1.msra.mxu0 0.0
      %1448 = vmatprep.subr.mxu0 0.0
      %1449 = vmatpush1.msra.mxu0 0.0
      %1450 = vmatprep.subr.mxu0 0.0
      %1451 = vmatpush1.msra.mxu0 0.0
      %1452 = vmatprep.subr.mxu0 0.0
      %1453 = vmatpush1.msra.mxu0 0.0
      %1454 = vmatprep.subr.mxu0 0.0
      %1455 = vmatpush1.msra.mxu0 0.0
      %1456 = vmatprep.mubr.f32.mxu0 0.0
      %1457 = vmatmul.mubr.f32.gmra.mrb[0].mxu0 %v1390
      %v1458 = vpop.f32.mrb[0].mxu0
      %v1459 = vadd.f32 0.0, %v1458
      %v1460 = vpop.f32.mrb[0].mxu0
      %1461 = vdwg.mxu0
      %v1463 = vsel %vm366, %v237, 0
      %1465 = vmatprep.subr.mxu0 0.0
      %1466 = vmatpush1.msra.mxu0 %v358
      %1467 = vmatprep.subr.mxu0 0.0
      %1468 = vmatpush1.msra.mxu0 %v359
      %1469 = vmatprep.subr.mxu0 0.0
      %1470 = vmatpush1.msra.mxu0 %v360
      %1471 = vmatprep.subr.mxu0 0.0
      %1472 = vmatpush1.msra.mxu0 %v361
      %1473 = vmatprep.subr.mxu0 0.0
      %1474 = vmatpush1.msra.mxu0 %v362
      %1475 = vmatprep.subr.mxu0 0.0
      %1476 = vmatpush1.msra.mxu0 %v363
      %1477 = vmatprep.subr.mxu0 0.0
      %1478 = vmatpush1.msra.mxu0 %v364
      %1479 = vmatprep.subr.mxu0 0.0
      %1480 = vmatpush1.msra.mxu0 %v365
      %1481 = vmatprep.subr.mxu0 0.0
      %1482 = vmatpush1.msra.mxu0 0.0
      %1483 = vmatprep.subr.mxu0 0.0
      %1484 = vmatpush1.msra.mxu0 0.0
      %1485 = vmatprep.subr.mxu0 0.0
      %1486 = vmatpush1.msra.mxu0 0.0
      %1487 = vmatprep.subr.mxu0 0.0
      %1488 = vmatpush1.msra.mxu0 0.0
      %1489 = vmatprep.subr.mxu0 0.0
      %1490 = vmatpush1.msra.mxu0 0.0
      %1491 = vmatprep.subr.mxu0 0.0
      %1492 = vmatpush1.msra.mxu0 0.0
      %1493 = vmatprep.subr.mxu0 0.0
      %1494 = vmatpush1.msra.mxu0 0.0
      %1495 = vmatprep.subr.mxu0 0.0
      %1496 = vmatpush1.msra.mxu0 0.0
      %1497 = vmatprep.subr.mxu0 0.0
      %1498 = vmatpush1.msra.mxu0 0.0
      %1499 = vmatprep.subr.mxu0 0.0
      %1500 = vmatpush1.msra.mxu0 0.0
      %1501 = vmatprep.subr.mxu0 0.0
      %1502 = vmatpush1.msra.mxu0 0.0
      %1503 = vmatprep.subr.mxu0 0.0
      %1504 = vmatpush1.msra.mxu0 0.0
      %1505 = vmatprep.subr.mxu0 0.0
      %1506 = vmatpush1.msra.mxu0 0.0
      %1507 = vmatprep.subr.mxu0 0.0
      %1508 = vmatpush1.msra.mxu0 0.0
      %1509 = vmatprep.subr.mxu0 0.0
      %1510 = vmatpush1.msra.mxu0 0.0
      %1511 = vmatprep.subr.mxu0 0.0
      %1512 = vmatpush1.msra.mxu0 0.0
      %1513 = vmatprep.subr.mxu0 0.0
      %1514 = vmatpush1.msra.mxu0 0.0
      %1515 = vmatprep.subr.mxu0 0.0
      %1516 = vmatpush1.msra.mxu0 0.0
      %1517 = vmatprep.subr.mxu0 0.0
      %1518 = vmatpush1.msra.mxu0 0.0
      %1519 = vmatprep.subr.mxu0 0.0
      %1520 = vmatpush1.msra.mxu0 0.0
      %1521 = vmatprep.subr.mxu0 0.0
      %1522 = vmatpush1.msra.mxu0 0.0
      %1523 = vmatprep.subr.mxu0 0.0
      %1524 = vmatpush1.msra.mxu0 0.0
      %1525 = vmatprep.subr.mxu0 0.0
      %1526 = vmatpush1.msra.mxu0 0.0
      %1527 = vmatprep.subr.mxu0 0.0
      %1528 = vmatpush1.msra.mxu0 0.0
      %1529 = vmatprep.mubr.f32.mxu0 0.0
      %1530 = vmatmul.mubr.f32.gmra.mrb[0].mxu0 %v1463
      %v1531 = vpop.f32.mrb[0].mxu0
      %v1532 = vadd.f32 0.0, %v1531
      %v1533 = vpop.f32.mrb[0].mxu0
      %1534 = vdwg.mxu0
      %vm1535 = vcmask 517120
      %1536 = vst.msk [vmem:[%s220] sm:$0x3] %vm1535, %v437
      %1537 = vst.msk [vmem:[%s220 + $0x2] sm:$0x3] %vm1535, %v510
      %1538 = vst.msk [vmem:[%s220 + $0x4] sm:$0x3] %vm1535, %v583
      %1539 = vst.msk [vmem:[%s220 + $0x6] sm:$0x3] %vm1535, %v656
      %1540 = vst.msk [vmem:[%s220 + $0x8] sm:$0x3] %vm1535, %v729
      %1541 = vst.msk [vmem:[%s220 + $0xa] sm:$0x3] %vm1535, %v802
      %1542 = vst.msk [vmem:[%s220 + $0xc] sm:$0x3] %vm1535, %v875
      %1543 = vst.msk [vmem:[%s220 + $0xe] sm:$0x3] %vm1535, %v948
      %1544 = vst.msk [vmem:[%s220 + $0x10] sm:$0x3] %vm1535, %v1021
      %1545 = vst.msk [vmem:[%s220 + $0x12] sm:$0x3] %vm1535, %v1094
      %1546 = vst.msk [vmem:[%s220 + $0x14] sm:$0x3] %vm1535, %v1167
      %1547 = vst.msk [vmem:[%s220 + $0x16] sm:$0x3] %vm1535, %v1240
      %1548 = vst.msk [vmem:[%s220 + $0x18] sm:$0x3] %vm1535, %v1313
      %1549 = vst.msk [vmem:[%s220 + $0x1a] sm:$0x3] %vm1535, %v1386
      %1550 = vst.msk [vmem:[%s220 + $0x1c] sm:$0x3] %vm1535, %v1459
      %1551 = vst.msk [vmem:[%s220 + $0x1e] sm:$0x3] %vm1535, %v1532
      %s1552 = smul.u32 16, %s18
      %p1553 = scmp.lt.s32.totalorder %s17, 1
      %s1554 = scalar_select %p1553, %s17, 1
      %p1555 = scmp.lt.s32.totalorder %s1552, 15
      %s1556 = scalar_select %p1555, %s1552, 15
      %s1557 = smul.addr %s1554, 16
      %s1558 = sadd.s32 %s1556, %s1557
      %s1559 = smul.addr %s1558, 2
      %s1560 = scalar_lea.vmem %s2, %s1559
      // Predicated region
      $region29: #{fno2d_forward.6} parent=27 // pred_check
        %p1561 = pneg %p101
      $region30: #{fno2d_forward.6} parent=27 // pred_check_branch
        %1563 = sbr.rel (%p1561) target = $region32
      $region31: #{fno2d_forward.6} parent=27 // pred_region
        %s1564 = smul.u32 16, %s18
      $region32: #{fno2d_forward.6} parent=27 // pred_fallthru
        _
    $region28: #{fno2d_forward.6} parent=5 // pred_fallthru
      _
    %p1565 = scmp.le.s32.totalorder 2, %s8
    // Predicated region
    $region33: #{fno2d_forward.6} parent=5 // pred_check
      %p1566 = pneg %p1565
    $region34: #{fno2d_forward.6} parent=5 // pred_check_branch
      %1568 = sbr.rel (%p1566) target = $region36
    $region35: #{fno2d_forward.6} parent=5 // pred_region
      %s1569 = ssub.s32 %s8, 2
      // Predicated region
      $region37: #{fno2d_forward.6} parent=35 // pred_check
        %p1570 = pneg %p107
      $region38: #{fno2d_forward.6} parent=35 // pred_check_branch
        %1572 = sbr.rel (%p1570) target = $region40
      $region39: #{fno2d_forward.6} parent=35 // pred_region
        %s1573 = smul.u32 16, %s20
        %p1574 = scmp.lt.s32.totalorder %s19, 1
        %s1575 = scalar_select %p1574, %s19, 1
        %p1576 = scmp.lt.s32.totalorder %s1573, 15
        %s1577 = scalar_select %p1576, %s1573, 15
        %s1578 = smul.addr %s1575, 16
        %s1579 = sadd.s32 %s1577, %s1578
        %s1580 = smul.addr %s1579, 2
        %s1581 = scalar_lea.vmem %s2, %s1580
      $region40: #{fno2d_forward.6} parent=35 // pred_fallthru
        _
    $region36: #{fno2d_forward.6} parent=5 // pred_fallthru
      _
  $region6: #{fno2d_forward.6} parent=0 // loop_footer
    %s12 = sadd.s32 1, %s8
  $region7: #{fno2d_forward.6} parent=0 // loop_footer_branch
    %7 = sbr.rel target = $region3
  $region8: #{fno2d_forward.6} parent=0 // loop_exit
    _

// kernel: reverse.4
$region0: #{reverse.4}
  #allocation0 [shape = 's32[1]{0}', space=sflag, size = 0x4, scoped, tag = 'scoped memory for reverse.4']
  %s0 = inlined_call_operand.vmem [shape: f32[2,32,16,7], index: 0, kind: input, shape index: {}]
  %s1 = inlined_call_operand.vmem [shape: f32[2,32,16,7], index: 1, kind: output, shape index: {}]
  %s2 = scalar_lea.vmem %s0, 96
  %v3 = vld [vmem:[%s2] sm:$0xff]
  %4 = vst [vmem:[%s1] sm:$0xff] %v3
  %s5 = scalar_lea.vmem %s0, 208
  %v6 = vld [vmem:[%s5] sm:$0xff]
  %s7 = scalar_lea.vmem %s1, 112
  %8 = vst [vmem:[%s7] sm:$0xff] %v6
  %s9 = scalar_lea.vmem %s0, 80
  %v10 = vld [vmem:[%s9] sm:$0xff]
  %s11 = scalar_lea.vmem %s1, 16
  %12 = vst [vmem:[%s11] sm:$0xff] %v10
  %s13 = scalar_lea.vmem %s0, 192
  %v14 = vld [vmem:[%s13] sm:$0xff]
  %s15 = scalar_lea.vmem %s1, 128
  %16 = vst [vmem:[%s15] sm:$0xff] %v14
  %s17 = scalar_lea.vmem %s0, 64
  %v18 = vld [vmem:[%s17] sm:$0xff]
  %s19 = scalar_lea.vmem %s1, 32
  %20 = vst [vmem:[%s19] sm:$0xff] %v18
  %s21 = scalar_lea.vmem %s0, 176
  %v22 = vld [vmem:[%s21] sm:$0xff]
  %s23 = scalar_lea.vmem %s1, 144
  %24 = vst [vmem:[%s23] sm:$0xff] %v22
  %s25 = scalar_lea.vmem %s0, 48
  %v26 = vld [vmem:[%s25] sm:$0xff]
  %s27 = scalar_lea.vmem %s1, 48
  %28 = vst [vmem:[%s27] sm:$0xff] %v26
  %s29 = scalar_lea.vmem %s0, 160
  %v30 = vld [vmem:[%s29] sm:$0xff]
  %s31 = scalar_lea.vmem %s1, 160
  %32 = vst [vmem:[%s31] sm:$0xff] %v30
  %s33 = scalar_lea.vmem %s0, 32
  %v34 = vld [vmem:[%s33] sm:$0xff]
  %s35 = scalar_lea.vmem %s1, 64
  %36 = vst [vmem:[%s35] sm:$0xff] %v34
  %s37 = scalar_lea.vmem %s0, 144
  %v38 = vld [vmem:[%s37] sm:$0xff]
  %s39 = scalar_lea.vmem %s1, 176
  %40 = vst [vmem:[%s39] sm:$0xff] %v38
  %s41 = scalar_lea.vmem %s0, 16
  %v42 = vld [vmem:[%s41] sm:$0xff]
  %s43 = scalar_lea.vmem %s1, 80
  %44 = vst [vmem:[%s43] sm:$0xff] %v42
  %s45 = scalar_lea.vmem %s0, 128
  %v46 = vld [vmem:[%s45] sm:$0xff]
  %s47 = scalar_lea.vmem %s1, 192
  %48 = vst [vmem:[%s47] sm:$0xff] %v46
  %v49 = vld [vmem:[%s0] sm:$0xff]
  %s50 = scalar_lea.vmem %s1, 96
  %51 = vst [vmem:[%s50] sm:$0xff] %v49
  %s52 = scalar_lea.vmem %s0, 112
  %v53 = vld [vmem:[%s52] sm:$0xff]
  %s54 = scalar_lea.vmem %s1, 208
  %55 = vst [vmem:[%s54] sm:$0xff] %v53
  %s56 = scalar_lea.vmem %s0, 104
  %v57 = vld [vmem:[%s56] sm:$0xff]
  %s58 = scalar_lea.vmem %s1, 8
  %59 = vst [vmem:[%s58] sm:$0xff] %v57
  %s60 = scalar_lea.vmem %s0, 216
  %v61 = vld [vmem:[%s60] sm:$0xff]
  %s62 = scalar_lea.vmem %s1, 120
  %63 = vst [vmem:[%s62] sm:$0xff] %v61
  %s64 = scalar_lea.vmem %s0, 88
  %v65 = vld [vmem:[%s64] sm:$0xff]
  %s66 = scalar_lea.vmem %s1, 24
  %67 = vst [vmem:[%s66] sm:$0xff] %v65
  %s68 = scalar_lea.vmem %s0, 200
  %v69 = vld [vmem:[%s68] sm:$0xff]
  %s70 = scalar_lea.vmem %s1, 136
  %71 = vst [vmem:[%s70] sm:$0xff] %v69
  %s72 = scalar_lea.vmem %s0, 72
  %v73 = vld [vmem:[%s72] sm:$0xff]
  %s74 = scalar_lea.vmem %s1, 40
  %75 = vst [vmem:[%s74] sm:$0xff] %v73
  %s76 = scalar_lea.vmem %s0, 184
  %v77 = vld [vmem:[%s76] sm:$0xff]
  %s78 = scalar_lea.vmem %s1, 152
  %79 = vst [vmem:[%s78] sm:$0xff] %v77
  %s80 = scalar_lea.vmem %s0, 56
  %v81 = vld [vmem:[%s80] sm:$0xff]
  %s82 = scalar_lea.vmem %s1, 56
  %83 = vst [vmem:[%s82] sm:$0xff] %v81
  %s84 = scalar_lea.vmem %s0, 168
  %v85 = vld [vmem:[%s84] sm:$0xff]
  %s86 = scalar_lea.vmem %s1, 168
  %87 = vst [vmem:[%s86] sm:$0xff] %v85
  %s88 = scalar_lea.vmem %s0, 40
  %v89 = vld [vmem:[%s88] sm:$0xff]
  %s90 = scalar_lea.vmem %s1, 72
  %91 = vst [vmem:[%s90] sm:$0xff] %v89
  %s92 = scalar_lea.vmem %s0, 152
  %v93 = vld [vmem:[%s92] sm:$0xff]
  %s94 = scalar_lea.vmem %s1, 184
  %95 = vst [vmem:[%s94] sm:$0xff] %v93
  %s96 = scalar_lea.vmem %s0, 24
  %v97 = vld [vmem:[%s96] sm:$0xff]
  %s98 = scalar_lea.vmem %s1, 88
  %99 = vst [vmem:[%s98] sm:$0xff] %v97
  %s100 = scalar_lea.vmem %s0, 136
  %v101 = vld [vmem:[%s100] sm:$0xff]
  %s102 = scalar_lea.vmem %s1, 200
  %103 = vst [vmem:[%s102] sm:$0xff] %v101
  %s104 = scalar_lea.vmem %s0, 8
  %v105 = vld [vmem:[%s104] sm:$0xff]
  %s106 = scalar_lea.vmem %s1, 104
  %107 = vst [vmem:[%s106] sm:$0xff] %v105
  %s108 = scalar_lea.vmem %s0, 120
  %v109 = vld [vmem:[%s108] sm:$0xff]
  %s110 = scalar_lea.vmem %s1, 216
  %111 = vst [vmem:[%s110] sm:$0xff] %v109

// kernel: fno2d_forward.7
$region0: #{fno2d_forward.7}
  #allocation0 [shape = 'u32[]', space=smem, size = 0x4, offset = 0x4, fixed_abs, tag = 'smem constant byte address 0x4 - core index']
  #allocation1 [shape = 'u32[144,128]{1,0:T(1,128)}', space=vmem, size = 0x12000, scoped, tag = 'internal scratch']
  %s0 = inlined_call_operand.vmem [shape: f32[512,32], index: 0, kind: input, shape index: {}]
  %s1 = inlined_call_operand.vmem [shape: f32[512,32], index: 1, kind: input, shape index: {}]
  %s2 = inlined_call_operand.vmem [shape: f32[32,32], index: 2, kind: input, shape index: {}]
  %s3 = inlined_call_operand.vmem [shape: f32[1,32], index: 3, kind: input, shape index: {}]
  %s4 = inlined_call_operand.vmem [shape: f32[512,32], index: 4, kind: output, shape index: {}]
  %s5 = sld [smem:[#allocation0]]
  $region26: #{fno2d_forward.7} parent=0
    _
  %s7 = ssub.s32 1, %s5
  %s8 = scalar_select 0, %s7, %s5
  // Predicated region
  $region2: #{fno2d_forward.7} parent=0 // pred_check
    _
  $region3: #{fno2d_forward.7} parent=0 // pred_check_branch
    %10 = sbr.rel (0) target = $region5
  $region4: #{fno2d_forward.7} parent=0 // pred_region
    _
  $region5: #{fno2d_forward.7} parent=0 // pred_fallthru
    _
  // Predicated region
  $region6: #{fno2d_forward.7} parent=0 // pred_check
    _
  $region7: #{fno2d_forward.7} parent=0 // pred_check_branch
    %12 = sbr.rel (0) target = $region9
  $region8: #{fno2d_forward.7} parent=0 // pred_region
    _
  $region9: #{fno2d_forward.7} parent=0 // pred_fallthru
    _
  // Predicated region
  $region10: #{fno2d_forward.7} parent=0 // pred_check
    _
  $region11: #{fno2d_forward.7} parent=0 // pred_check_branch
    %14 = sbr.rel (0) target = $region13
  $region12: #{fno2d_forward.7} parent=0 // pred_region
    _
  $region13: #{fno2d_forward.7} parent=0 // pred_fallthru
    _
  // Predicated region
  $region14: #{fno2d_forward.7} parent=0 // pred_check
    _
  $region15: #{fno2d_forward.7} parent=0 // pred_check_branch
    %16 = sbr.rel (0) target = $region17
  $region16: #{fno2d_forward.7} parent=0 // pred_region
    _
  $region17: #{fno2d_forward.7} parent=0 // pred_fallthru
    _
  %v17 = vld [vmem:[%s0] sm:$0xff]
  %v18 = vld [vmem:[%s0 + $0x8] sm:$0xff]
  %v19 = vld [vmem:[%s0 + $0x10] sm:$0xff]
  %v20 = vld [vmem:[%s0 + $0x18] sm:$0xff]
  %v21 = vld [vmem:[%s0 + $0x20] sm:$0xff]
  %v22 = vld [vmem:[%s0 + $0x28] sm:$0xff]
  %v23 = vld [vmem:[%s0 + $0x30] sm:$0xff]
  %v24 = vld [vmem:[%s0 + $0x38] sm:$0xff]
  %v25 = vld [vmem:[%s0 + $0x40] sm:$0xff]
  %v26 = vld [vmem:[%s0 + $0x48] sm:$0xff]
  %v27 = vld [vmem:[%s0 + $0x50] sm:$0xff]
  %v28 = vld [vmem:[%s0 + $0x58] sm:$0xff]
  %v29 = vld [vmem:[%s0 + $0x60] sm:$0xff]
  %v30 = vld [vmem:[%s0 + $0x68] sm:$0xff]
  %v31 = vld [vmem:[%s0 + $0x70] sm:$0xff]
  %v32 = vld [vmem:[%s0 + $0x78] sm:$0xff]
  %v33 = vld [vmem:[%s0 + $0x80] sm:$0xff]
  %v34 = vld [vmem:[%s0 + $0x88] sm:$0xff]
  %v35 = vld [vmem:[%s0 + $0x90] sm:$0xff]
  %v36 = vld [vmem:[%s0 + $0x98] sm:$0xff]
  %v37 = vld [vmem:[%s0 + $0xa0] sm:$0xff]
  %v38 = vld [vmem:[%s0 + $0xa8] sm:$0xff]
  %v39 = vld [vmem:[%s0 + $0xb0] sm:$0xff]
  %v40 = vld [vmem:[%s0 + $0xb8] sm:$0xff]
  %v41 = vld [vmem:[%s0 + $0xc0] sm:$0xff]
  %v42 = vld [vmem:[%s0 + $0xc8] sm:$0xff]
  %v43 = vld [vmem:[%s0 + $0xd0] sm:$0xff]
  %v44 = vld [vmem:[%s0 + $0xd8] sm:$0xff]
  %v45 = vld [vmem:[%s0 + $0xe0] sm:$0xff]
  %v46 = vld [vmem:[%s0 + $0xe8] sm:$0xff]
  %v47 = vld [vmem:[%s0 + $0xf0] sm:$0xff]
  %v48 = vld [vmem:[%s0 + $0xf8] sm:$0xff]
  %v49 = vld [vmem:[%s0 + $0x100] sm:$0xff]
  %v50 = vld [vmem:[%s0 + $0x108] sm:$0xff]
  %v51 = vld [vmem:[%s0 + $0x110] sm:$0xff]
  %v52 = vld [vmem:[%s0 + $0x118] sm:$0xff]
  %v53 = vld [vmem:[%s0 + $0x120] sm:$0xff]
  %v54 = vld [vmem:[%s0 + $0x128] sm:$0xff]
  %v55 = vld [vmem:[%s0 + $0x130] sm:$0xff]
  %v56 = vld [vmem:[%s0 + $0x138] sm:$0xff]
  %v57 = vld [vmem:[%s0 + $0x140] sm:$0xff]
  %v58 = vld [vmem:[%s0 + $0x148] sm:$0xff]
  %v59 = vld [vmem:[%s0 + $0x150] sm:$0xff]
  %v60 = vld [vmem:[%s0 + $0x158] sm:$0xff]
  %v61 = vld [vmem:[%s0 + $0x160] sm:$0xff]
  %v62 = vld [vmem:[%s0 + $0x168] sm:$0xff]
  %v63 = vld [vmem:[%s0 + $0x170] sm:$0xff]
  %v64 = vld [vmem:[%s0 + $0x178] sm:$0xff]
  %v65 = vld [vmem:[%s0 + $0x180] sm:$0xff]
  %v66 = vld [vmem:[%s0 + $0x188] sm:$0xff]
  %v67 = vld [vmem:[%s0 + $0x190] sm:$0xff]
  %v68 = vld [vmem:[%s0 + $0x198] sm:$0xff]
  %v69 = vld [vmem:[%s0 + $0x1a0] sm:$0xff]
  %v70 = vld [vmem:[%s0 + $0x1a8] sm:$0xff]
  %v71 = vld [vmem:[%s0 + $0x1b0] sm:$0xff]
  %v72 = vld [vmem:[%s0 + $0x1b8] sm:$0xff]
  %v73 = vld [vmem:[%s0 + $0x1c0] sm:$0xff]
  %v74 = vld [vmem:[%s0 + $0x1c8] sm:$0xff]
  %v75 = vld [vmem:[%s0 + $0x1d0] sm:$0xff]
  %v76 = vld [vmem:[%s0 + $0x1d8] sm:$0xff]
  %v77 = vld [vmem:[%s0 + $0x1e0] sm:$0xff]
  %v78 = vld [vmem:[%s0 + $0x1e8] sm:$0xff]
  %v79 = vld [vmem:[%s0 + $0x1f0] sm:$0xff]
  %v80 = vld [vmem:[%s0 + $0x1f8] sm:$0xff]
  %v81 = vld [vmem:[%s2] sm:$0xff]
  %v82 = vld [vmem:[%s2 + $0x8] sm:$0xff]
  %v83 = vld [vmem:[%s2 + $0x10] sm:$0xff]
  %v84 = vld [vmem:[%s2 + $0x18] sm:$0xff]
  %v85 = vld [vmem:[%s3] sm:$0x1]
  %v87 = vlaneseq
  %v88 = vshrl.u32 %v87, 7
  %v89 = vsub.s32 0, %v88
  %v90 = vrot.slane %v85, %v89
  %vm92 = vcmask 261120
  %v94 = vsel %vm92, %v17, 0
  %v97 = vsel %vm92, %v18, 0
  %v100 = vsel %vm92, %v19, 0
  %v103 = vsel %vm92, %v20, 0
  %v106 = vsel %vm92, %v21, 0
  %v109 = vsel %vm92, %v22, 0
  %v112 = vsel %vm92, %v23, 0
  %v115 = vsel %vm92, %v24, 0
  %v118 = vsel %vm92, %v25, 0
  %v121 = vsel %vm92, %v26, 0
  %v124 = vsel %vm92, %v27, 0
  %v127 = vsel %vm92, %v28, 0
  %v130 = vsel %vm92, %v29, 0
  %v133 = vsel %vm92, %v30, 0
  %v136 = vsel %vm92, %v31, 0
  %v139 = vsel %vm92, %v32, 0
  %v142 = vsel %vm92, %v33, 0
  %v145 = vsel %vm92, %v34, 0
  %v148 = vsel %vm92, %v35, 0
  %v151 = vsel %vm92, %v36, 0
  %v154 = vsel %vm92, %v37, 0
  %v157 = vsel %vm92, %v38, 0
  %v160 = vsel %vm92, %v39, 0
  %v163 = vsel %vm92, %v40, 0
  %v166 = vsel %vm92, %v41, 0
  %v169 = vsel %vm92, %v42, 0
  %v172 = vsel %vm92, %v43, 0
  %v175 = vsel %vm92, %v44, 0
  %v178 = vsel %vm92, %v45, 0
  %v181 = vsel %vm92, %v46, 0
  %v184 = vsel %vm92, %v47, 0
  %v187 = vsel %vm92, %v48, 0
  %v190 = vsel %vm92, %v49, 0
  %v193 = vsel %vm92, %v50, 0
  %v196 = vsel %vm92, %v51, 0
  %v199 = vsel %vm92, %v52, 0
  %v202 = vsel %vm92, %v53, 0
  %v205 = vsel %vm92, %v54, 0
  %v208 = vsel %vm92, %v55, 0
  %v211 = vsel %vm92, %v56, 0
  %v214 = vsel %vm92, %v57, 0
  %v217 = vsel %vm92, %v58, 0
  %v220 = vsel %vm92, %v59, 0
  %v223 = vsel %vm92, %v60, 0
  %v226 = vsel %vm92, %v61, 0
  %v229 = vsel %vm92, %v62, 0
  %v232 = vsel %vm92, %v63, 0
  %v235 = vsel %vm92, %v64, 0
  %v238 = vsel %vm92, %v65, 0
  %v241 = vsel %vm92, %v66, 0
  %v244 = vsel %vm92, %v67, 0
  %v247 = vsel %vm92, %v68, 0
  %v250 = vsel %vm92, %v69, 0
  %v253 = vsel %vm92, %v70, 0
  %v256 = vsel %vm92, %v71, 0
  %v259 = vsel %vm92, %v72, 0
  %v262 = vsel %vm92, %v73, 0
  %v265 = vsel %vm92, %v74, 0
  %v268 = vsel %vm92, %v75, 0
  %v271 = vsel %vm92, %v76, 0
  %v274 = vsel %vm92, %v77, 0
  %v277 = vsel %vm92, %v78, 0
  %v280 = vsel %vm92, %v79, 0
  %v283 = vsel %vm92, %v80, 0
  %285 = vmatprep.subr.mxu0 0.0
  %286 = vmatpush1.msra.mxu0 %v81
  %287 = vmatprep.subr.mxu0 0.0
  %288 = vmatpush1.msra.mxu0 %v82
  %289 = vmatprep.subr.mxu0 0.0
  %290 = vmatpush1.msra.mxu0 %v83
  %291 = vmatprep.subr.mxu0 0.0
  %292 = vmatpush1.msra.mxu0 %v84
  %293 = vmatprep.subr.mxu0 0.0
  %294 = vmatpush1.msra.mxu0 0.0
  %295 = vmatprep.subr.mxu0 0.0
  %296 = vmatpush1.msra.mxu0 0.0
  %297 = vmatprep.subr.mxu0 0.0
  %298 = vmatpush1.msra.mxu0 0.0
  %299 = vmatprep.subr.mxu0 0.0
  %300 = vmatpush1.msra.mxu0 0.0
  %301 = vmatprep.subr.mxu0 0.0
  %302 = vmatpush1.msra.mxu0 0.0
  %303 = vmatprep.subr.mxu0 0.0
  %304 = vmatpush1.msra.mxu0 0.0
  %305 = vmatprep.subr.mxu0 0.0
  %306 = vmatpush1.msra.mxu0 0.0
  %307 = vmatprep.subr.mxu0 0.0
  %308 = vmatpush1.msra.mxu0 0.0
  %309 = vmatprep.subr.mxu0 0.0
  %310 = vmatpush1.msra.mxu0 0.0
  %311 = vmatprep.subr.mxu0 0.0
  %312 = vmatpush1.msra.mxu0 0.0
  %313 = vmatprep.subr.mxu0 0.0
  %314 = vmatpush1.msra.mxu0 0.0
  %315 = vmatprep.subr.mxu0 0.0
  %316 = vmatpush1.msra.mxu0 0.0
  %317 = vmatprep.subr.mxu0 0.0
  %318 = vmatpush1.msra.mxu0 0.0
  %319 = vmatprep.subr.mxu0 0.0
  %320 = vmatpush1.msra.mxu0 0.0
  %321 = vmatprep.subr.mxu0 0.0
  %322 = vmatpush1.msra.mxu0 0.0
  %323 = vmatprep.subr.mxu0 0.0
  %324 = vmatpush1.msra.mxu0 0.0
  %325 = vmatprep.subr.mxu0 0.0
  %326 = vmatpush1.msra.mxu0 0.0
  %327 = vmatprep.subr.mxu0 0.0
  %328 = vmatpush1.msra.mxu0 0.0
  %329 = vmatprep.subr.mxu0 0.0
  %330 = vmatpush1.msra.mxu0 0.0
  %331 = vmatprep.subr.mxu0 0.0
  %332 = vmatpush1.msra.mxu0 0.0
  %333 = vmatprep.subr.mxu0 0.0
  %334 = vmatpush1.msra.mxu0 0.0
  %335 = vmatprep.subr.mxu0 0.0
  %336 = vmatpush1.msra.mxu0 0.0
  %337 = vmatprep.subr.mxu0 0.0
  %338 = vmatpush1.msra.mxu0 0.0
  %339 = vmatprep.subr.mxu0 0.0
  %340 = vmatpush1.msra.mxu0 0.0
  %341 = vmatprep.subr.mxu0 0.0
  %342 = vmatpush1.msra.mxu0 0.0
  %343 = vmatprep.subr.mxu0 0.0
  %344 = vmatpush1.msra.mxu0 0.0
  %345 = vmatprep.subr.mxu0 0.0
  %346 = vmatpush1.msra.mxu0 0.0
  %347 = vmatprep.subr.mxu0 0.0
  %348 = vmatpush1.msra.mxu0 0.0
  %349 = vmatprep.mubr.f32.mxu0 0.0
  %350 = vmatmul.mubr.f32.gmra.mrb[0].mxu0 %v94
  %v351 = vpop.f32.mrb[0].mxu0
  %v352 = vadd.f32 %v90, %v351
  %v353 = vpop.f32.mrb[0].mxu0
  %354 = vmatprep.mubr.f32.mxu0 0.0
  %355 = vmatmul.mubr.f32.gmra.mrb[0].mxu0 %v97
  %v356 = vpop.f32.mrb[0].mxu0
  %v357 = vadd.f32 %v90, %v356
  %v358 = vpop.f32.mrb[0].mxu0
  %359 = vmatprep.mubr.f32.mxu0 0.0
  %360 = vmatmul.mubr.f32.gmra.mrb[0].mxu0 %v100
  %v361 = vpop.f32.mrb[0].mxu0
  %v362 = vadd.f32 %v90, %v361
  %v363 = vpop.f32.mrb[0].mxu0
  %364 = vmatprep.mubr.f32.mxu0 0.0
  %365 = vmatmul.mubr.f32.gmra.mrb[0].mxu0 %v103
  %v366 = vpop.f32.mrb[0].mxu0
  %v367 = vadd.f32 %v90, %v366
  %v368 = vpop.f32.mrb[0].mxu0
  %369 = vmatprep.mubr.f32.mxu0 0.0
  %370 = vmatmul.mubr.f32.gmra.mrb[0].mxu0 %v106
  %v371 = vpop.f32.mrb[0].mxu0
  %v372 = vadd.f32 %v90, %v371
  %v373 = vpop.f32.mrb[0].mxu0
  %374 = vmatprep.mubr.f32.mxu0 0.0
  %375 = vmatmul.mubr.f32.gmra.mrb[0].mxu0 %v109
  %v376 = vpop.f32.mrb[0].mxu0
  %v377 = vadd.f32 %v90, %v376
  %v378 = vpop.f32.mrb[0].mxu0
  %379 = vmatprep.mubr.f32.mxu0 0.0
  %380 = vmatmul.mubr.f32.gmra.mrb[0].mxu0 %v112
  %v381 = vpop.f32.mrb[0].mxu0
  %v382 = vadd.f32 %v90, %v381
  %v383 = vpop.f32.mrb[0].mxu0
  %384 = vmatprep.mubr.f32.mxu0 0.0
  %385 = vmatmul.mubr.f32.gmra.mrb[0].mxu0 %v115
  %v386 = vpop.f32.mrb[0].mxu0
  %v387 = vadd.f32 %v90, %v386
  %v388 = vpop.f32.mrb[0].mxu0
  %389 = vmatprep.mubr.f32.mxu0 0.0
  %390 = vmatmul.mubr.f32.gmra.mrb[0].mxu0 %v118
  %v391 = vpop.f32.mrb[0].mxu0
  %v392 = vadd.f32 %v90, %v391
  %v393 = vpop.f32.mrb[0].mxu0
  %394 = vmatprep.mubr.f32.mxu0 0.0
  %395 = vmatmul.mubr.f32.gmra.mrb[0].mxu0 %v121
  %v396 = vpop.f32.mrb[0].mxu0
  %v397 = vadd.f32 %v90, %v396
  %v398 = vpop.f32.mrb[0].mxu0
  %399 = vmatprep.mubr.f32.mxu0 0.0
  %400 = vmatmul.mubr.f32.gmra.mrb[0].mxu0 %v124
  %v401 = vpop.f32.mrb[0].mxu0
  %v402 = vadd.f32 %v90, %v401
  %v403 = vpop.f32.mrb[0].mxu0
  %404 = vmatprep.mubr.f32.mxu0 0.0
  %405 = vmatmul.mubr.f32.gmra.mrb[0].mxu0 %v127
  %v406 = vpop.f32.mrb[0].mxu0
  %v407 = vadd.f32 %v90, %v406
  %v408 = vpop.f32.mrb[0].mxu0
  %409 = vmatprep.mubr.f32.mxu0 0.0
  %410 = vmatmul.mubr.f32.gmra.mrb[0].mxu0 %v130
  %v411 = vpop.f32.mrb[0].mxu0
  %v412 = vadd.f32 %v90, %v411
  %v413 = vpop.f32.mrb[0].mxu0
  %414 = vmatprep.mubr.f32.mxu0 0.0
  %415 = vmatmul.mubr.f32.gmra.mrb[0].mxu0 %v133
  %v416 = vpop.f32.mrb[0].mxu0
  %v417 = vadd.f32 %v90, %v416
  %v418 = vpop.f32.mrb[0].mxu0
  %419 = vmatprep.mubr.f32.mxu0 0.0
  %420 = vmatmul.mubr.f32.gmra.mrb[0].mxu0 %v136
  %v421 = vpop.f32.mrb[0].mxu0
  %v422 = vadd.f32 %v90, %v421
  %v423 = vpop.f32.mrb[0].mxu0
  %424 = vmatprep.mubr.f32.mxu0 0.0
  %425 = vmatmul.mubr.f32.gmra.mrb[0].mxu0 %v139
  %v426 = vpop.f32.mrb[0].mxu0
  %v427 = vadd.f32 %v90, %v426
  %v428 = vpop.f32.mrb[0].mxu0
  %429 = vmatprep.mubr.f32.mxu0 0.0
  %430 = vmatmul.mubr.f32.gmra.mrb[0].mxu0 %v142
  %v431 = vpop.f32.mrb[0].mxu0
  %v432 = vadd.f32 %v90, %v431
  %v433 = vpop.f32.mrb[0].mxu0
  %434 = vmatprep.mubr.f32.mxu0 0.0
  %435 = vmatmul.mubr.f32.gmra.mrb[0].mxu0 %v145
  %v436 = vpop.f32.mrb[0].mxu0
  %v437 = vadd.f32 %v90, %v436
  %v438 = vpop.f32.mrb[0].mxu0
  %439 = vmatprep.mubr.f32.mxu0 0.0
  %440 = vmatmul.mubr.f32.gmra.mrb[0].mxu0 %v148
  %v441 = vpop.f32.mrb[0].mxu0
  %v442 = vadd.f32 %v90, %v441
  %v443 = vpop.f32.mrb[0].mxu0
  %444 = vmatprep.mubr.f32.mxu0 0.0
  %445 = vmatmul.mubr.f32.gmra.mrb[0].mxu0 %v151
  %v446 = vpop.f32.mrb[0].mxu0
  %v447 = vadd.f32 %v90, %v446
  %v448 = vpop.f32.mrb[0].mxu0
  %449 = vmatprep.mubr.f32.mxu0 0.0
  %450 = vmatmul.mubr.f32.gmra.mrb[0].mxu0 %v154
  %v451 = vpop.f32.mrb[0].mxu0
  %v452 = vadd.f32 %v90, %v451
  %v453 = vpop.f32.mrb[0].mxu0
  %454 = vmatprep.mubr.f32.mxu0 0.0
  %455 = vmatmul.mubr.f32.gmra.mrb[0].mxu0 %v157
  %v456 = vpop.f32.mrb[0].mxu0
  %v457 = vadd.f32 %v90, %v456
  %v458 = vpop.f32.mrb[0].mxu0
  %459 = vmatprep.mubr.f32.mxu0 0.0
  %460 = vmatmul.mubr.f32.gmra.mrb[0].mxu0 %v160
  %v461 = vpop.f32.mrb[0].mxu0
  %v462 = vadd.f32 %v90, %v461
  %v463 = vpop.f32.mrb[0].mxu0
  %464 = vmatprep.mubr.f32.mxu0 0.0
  %465 = vmatmul.mubr.f32.gmra.mrb[0].mxu0 %v163
  %v466 = vpop.f32.mrb[0].mxu0
  %v467 = vadd.f32 %v90, %v466
  %v468 = vpop.f32.mrb[0].mxu0
  %469 = vmatprep.mubr.f32.mxu0 0.0
  %470 = vmatmul.mubr.f32.gmra.mrb[0].mxu0 %v166
  %v471 = vpop.f32.mrb[0].mxu0
  %v472 = vadd.f32 %v90, %v471
  %v473 = vpop.f32.mrb[0].mxu0
  %474 = vmatprep.mubr.f32.mxu0 0.0
  %475 = vmatmul.mubr.f32.gmra.mrb[0].mxu0 %v169
  %v476 = vpop.f32.mrb[0].mxu0
  %v477 = vadd.f32 %v90, %v476
  %v478 = vpop.f32.mrb[0].mxu0
  %479 = vmatprep.mubr.f32.mxu0 0.0
  %480 = vmatmul.mubr.f32.gmra.mrb[0].mxu0 %v172
  %v481 = vpop.f32.mrb[0].mxu0
  %v482 = vadd.f32 %v90, %v481
  %v483 = vpop.f32.mrb[0].mxu0
  %484 = vmatprep.mubr.f32.mxu0 0.0
  %485 = vmatmul.mubr.f32.gmra.mrb[0].mxu0 %v175
  %v486 = vpop.f32.mrb[0].mxu0
  %v487 = vadd.f32 %v90, %v486
  %v488 = vpop.f32.mrb[0].mxu0
  %489 = vmatprep.mubr.f32.mxu0 0.0
  %490 = vmatmul.mubr.f32.gmra.mrb[0].mxu0 %v178
  %v491 = vpop.f32.mrb[0].mxu0
  %v492 = vadd.f32 %v90, %v491
  %v493 = vpop.f32.mrb[0].mxu0
  %494 = vmatprep.mubr.f32.mxu0 0.0
  %495 = vmatmul.mubr.f32.gmra.mrb[0].mxu0 %v181
  %v496 = vpop.f32.mrb[0].mxu0
  %v497 = vadd.f32 %v90, %v496
  %v498 = vpop.f32.mrb[0].mxu0
  %499 = vmatprep.mubr.f32.mxu0 0.0
  %500 = vmatmul.mubr.f32.gmra.mrb[0].mxu0 %v184
  %v501 = vpop.f32.mrb[0].mxu0
  %v502 = vadd.f32 %v90, %v501
  %v503 = vpop.f32.mrb[0].mxu0
  %504 = vmatprep.mubr.f32.mxu0 0.0
  %505 = vmatmul.mubr.f32.gmra.mrb[0].mxu0 %v187
  %v506 = vpop.f32.mrb[0].mxu0
  %v507 = vadd.f32 %v90, %v506
  %v508 = vpop.f32.mrb[0].mxu0
  %509 = vmatprep.mubr.f32.mxu0 0.0
  %510 = vmatmul.mubr.f32.gmra.mrb[0].mxu0 %v190
  %v511 = vpop.f32.mrb[0].mxu0
  %v512 = vadd.f32 %v90, %v511
  %v513 = vpop.f32.mrb[0].mxu0
  %514 = vmatprep.mubr.f32.mxu0 0.0
  %515 = vmatmul.mubr.f32.gmra.mrb[0].mxu0 %v193
  %v516 = vpop.f32.mrb[0].mxu0
  %v517 = vadd.f32 %v90, %v516
  %v518 = vpop.f32.mrb[0].mxu0
  %519 = vmatprep.mubr.f32.mxu0 0.0
  %520 = vmatmul.mubr.f32.gmra.mrb[0].mxu0 %v196
  %v521 = vpop.f32.mrb[0].mxu0
  %v522 = vadd.f32 %v90, %v521
  %v523 = vpop.f32.mrb[0].mxu0
  %524 = vmatprep.mubr.f32.mxu0 0.0
  %525 = vmatmul.mubr.f32.gmra.mrb[0].mxu0 %v199
  %v526 = vpop.f32.mrb[0].mxu0
  %v527 = vadd.f32 %v90, %v526
  %v528 = vpop.f32.mrb[0].mxu0
  %529 = vmatprep.mubr.f32.mxu0 0.0
  %530 = vmatmul.mubr.f32.gmra.mrb[0].mxu0 %v202
  %v531 = vpop.f32.mrb[0].mxu0
  %v532 = vadd.f32 %v90, %v531
  %v533 = vpop.f32.mrb[0].mxu0
  %534 = vmatprep.mubr.f32.mxu0 0.0
  %535 = vmatmul.mubr.f32.gmra.mrb[0].mxu0 %v205
  %v536 = vpop.f32.mrb[0].mxu0
  %v537 = vadd.f32 %v90, %v536
  %v538 = vpop.f32.mrb[0].mxu0
  %539 = vmatprep.mubr.f32.mxu0 0.0
  %540 = vmatmul.mubr.f32.gmra.mrb[0].mxu0 %v208
  %v541 = vpop.f32.mrb[0].mxu0
  %v542 = vadd.f32 %v90, %v541
  %v543 = vpop.f32.mrb[0].mxu0
  %544 = vmatprep.mubr.f32.mxu0 0.0
  %545 = vmatmul.mubr.f32.gmra.mrb[0].mxu0 %v211
  %v546 = vpop.f32.mrb[0].mxu0
  %v547 = vadd.f32 %v90, %v546
  %v548 = vpop.f32.mrb[0].mxu0
  %549 = vmatprep.mubr.f32.mxu0 0.0
  %550 = vmatmul.mubr.f32.gmra.mrb[0].mxu0 %v214
  %v551 = vpop.f32.mrb[0].mxu0
  %v552 = vadd.f32 %v90, %v551
  %v553 = vpop.f32.mrb[0].mxu0
  %554 = vmatprep.mubr.f32.mxu0 0.0
  %555 = vmatmul.mubr.f32.gmra.mrb[0].mxu0 %v217
  %v556 = vpop.f32.mrb[0].mxu0
  %v557 = vadd.f32 %v90, %v556
  %v558 = vpop.f32.mrb[0].mxu0
  %559 = vmatprep.mubr.f32.mxu0 0.0
  %560 = vmatmul.mubr.f32.gmra.mrb[0].mxu0 %v220
  %v561 = vpop.f32.mrb[0].mxu0
  %v562 = vadd.f32 %v90, %v561
  %v563 = vpop.f32.mrb[0].mxu0
  %564 = vmatprep.mubr.f32.mxu0 0.0
  %565 = vmatmul.mubr.f32.gmra.mrb[0].mxu0 %v223
  %v566 = vpop.f32.mrb[0].mxu0
  %v567 = vadd.f32 %v90, %v566
  %v568 = vpop.f32.mrb[0].mxu0
  %569 = vmatprep.mubr.f32.mxu0 0.0
  %570 = vmatmul.mubr.f32.gmra.mrb[0].mxu0 %v226
  %v571 = vpop.f32.mrb[0].mxu0
  %v572 = vadd.f32 %v90, %v571
  %v573 = vpop.f32.mrb[0].mxu0
  %574 = vmatprep.mubr.f32.mxu0 0.0
  %575 = vmatmul.mubr.f32.gmra.mrb[0].mxu0 %v229
  %v576 = vpop.f32.mrb[0].mxu0
  %v577 = vadd.f32 %v90, %v576
  %v578 = vpop.f32.mrb[0].mxu0
  %579 = vmatprep.mubr.f32.mxu0 0.0
  %580 = vmatmul.mubr.f32.gmra.mrb[0].mxu0 %v232
  %v581 = vpop.f32.mrb[0].mxu0
  %v582 = vadd.f32 %v90, %v581
  %v583 = vpop.f32.mrb[0].mxu0
  %584 = vmatprep.mubr.f32.mxu0 0.0
  %585 = vmatmul.mubr.f32.gmra.mrb[0].mxu0 %v235
  %v586 = vpop.f32.mrb[0].mxu0
  %v587 = vadd.f32 %v90, %v586
  %v588 = vpop.f32.mrb[0].mxu0
  %589 = vmatprep.mubr.f32.mxu0 0.0
  %590 = vmatmul.mubr.f32.gmra.mrb[0].mxu0 %v238
  %v591 = vpop.f32.mrb[0].mxu0
  %v592 = vadd.f32 %v90, %v591
  %v593 = vpop.f32.mrb[0].mxu0
  %594 = vmatprep.mubr.f32.mxu0 0.0
  %595 = vmatmul.mubr.f32.gmra.mrb[0].mxu0 %v241
  %v596 = vpop.f32.mrb[0].mxu0
  %v597 = vadd.f32 %v90, %v596
  %v598 = vpop.f32.mrb[0].mxu0
  %599 = vmatprep.mubr.f32.mxu0 0.0
  %600 = vmatmul.mubr.f32.gmra.mrb[0].mxu0 %v244
  %v601 = vpop.f32.mrb[0].mxu0
  %v602 = vadd.f32 %v90, %v601
  %v603 = vpop.f32.mrb[0].mxu0
  %604 = vmatprep.mubr.f32.mxu0 0.0
  %605 = vmatmul.mubr.f32.gmra.mrb[0].mxu0 %v247
  %v606 = vpop.f32.mrb[0].mxu0
  %v607 = vadd.f32 %v90, %v606
  %v608 = vpop.f32.mrb[0].mxu0
  %609 = vmatprep.mubr.f32.mxu0 0.0
  %610 = vmatmul.mubr.f32.gmra.mrb[0].mxu0 %v250
  %v611 = vpop.f32.mrb[0].mxu0
  %v612 = vadd.f32 %v90, %v611
  %v613 = vpop.f32.mrb[0].mxu0
  %614 = vmatprep.mubr.f32.mxu0 0.0
  %615 = vmatmul.mubr.f32.gmra.mrb[0].mxu0 %v253
  %v616 = vpop.f32.mrb[0].mxu0
  %v617 = vadd.f32 %v90, %v616
  %v618 = vpop.f32.mrb[0].mxu0
  %619 = vmatprep.mubr.f32.mxu0 0.0
  %620 = vmatmul.mubr.f32.gmra.mrb[0].mxu0 %v256
  %v621 = vpop.f32.mrb[0].mxu0
  %v622 = vadd.f32 %v90, %v621
  %v623 = vpop.f32.mrb[0].mxu0
  %624 = vmatprep.mubr.f32.mxu0 0.0
  %625 = vmatmul.mubr.f32.gmra.mrb[0].mxu0 %v259
  %v626 = vpop.f32.mrb[0].mxu0
  %v627 = vadd.f32 %v90, %v626
  %v628 = vpop.f32.mrb[0].mxu0
  %629 = vmatprep.mubr.f32.mxu0 0.0
  %630 = vmatmul.mubr.f32.gmra.mrb[0].mxu0 %v262
  %v631 = vpop.f32.mrb[0].mxu0
  %v632 = vadd.f32 %v90, %v631
  %v633 = vpop.f32.mrb[0].mxu0
  %634 = vmatprep.mubr.f32.mxu0 0.0
  %635 = vmatmul.mubr.f32.gmra.mrb[0].mxu0 %v265
  %v636 = vpop.f32.mrb[0].mxu0
  %v637 = vadd.f32 %v90, %v636
  %v638 = vpop.f32.mrb[0].mxu0
  %639 = vmatprep.mubr.f32.mxu0 0.0
  %640 = vmatmul.mubr.f32.gmra.mrb[0].mxu0 %v268
  %v641 = vpop.f32.mrb[0].mxu0
  %v642 = vadd.f32 %v90, %v641
  %v643 = vpop.f32.mrb[0].mxu0
  %644 = vmatprep.mubr.f32.mxu0 0.0
  %645 = vmatmul.mubr.f32.gmra.mrb[0].mxu0 %v271
  %v646 = vpop.f32.mrb[0].mxu0
  %v647 = vadd.f32 %v90, %v646
  %v648 = vpop.f32.mrb[0].mxu0
  %649 = vmatprep.mubr.f32.mxu0 0.0
  %650 = vmatmul.mubr.f32.gmra.mrb[0].mxu0 %v274
  %v651 = vpop.f32.mrb[0].mxu0
  %v652 = vadd.f32 %v90, %v651
  %v653 = vpop.f32.mrb[0].mxu0
  %654 = vmatprep.mubr.f32.mxu0 0.0
  %655 = vmatmul.mubr.f32.gmra.mrb[0].mxu0 %v277
  %v656 = vpop.f32.mrb[0].mxu0
  %v657 = vadd.f32 %v90, %v656
  %v658 = vpop.f32.mrb[0].mxu0
  %659 = vmatprep.mubr.f32.mxu0 0.0
  %660 = vmatmul.mubr.f32.gmra.mrb[0].mxu0 %v280
  %v661 = vpop.f32.mrb[0].mxu0
  %v662 = vadd.f32 %v90, %v661
  %v663 = vpop.f32.mrb[0].mxu0
  %664 = vmatprep.mubr.f32.mxu0 0.0
  %665 = vmatmul.mubr.f32.gmra.mrb[0].mxu0 %v283
  %v666 = vpop.f32.mrb[0].mxu0
  %v667 = vadd.f32 %v90, %v666
  %v668 = vpop.f32.mrb[0].mxu0
  %669 = vdwg.mxu0
  %v670 = vld [vmem:[%s1] sm:$0xff]
  %v671 = vld [vmem:[%s1 + $0x8] sm:$0xff]
  %v672 = vld [vmem:[%s1 + $0x10] sm:$0xff]
  %v673 = vld [vmem:[%s1 + $0x18] sm:$0xff]
  %v674 = vld [vmem:[%s1 + $0x20] sm:$0xff]
  %v675 = vld [vmem:[%s1 + $0x28] sm:$0xff]
  %v676 = vld [vmem:[%s1 + $0x30] sm:$0xff]
  %v677 = vld [vmem:[%s1 + $0x38] sm:$0xff]
  %v678 = vld [vmem:[%s1 + $0x40] sm:$0xff]
  %v679 = vld [vmem:[%s1 + $0x48] sm:$0xff]
  %v680 = vld [vmem:[%s1 + $0x50] sm:$0xff]
  %v681 = vld [vmem:[%s1 + $0x58] sm:$0xff]
  %v682 = vld [vmem:[%s1 + $0x60] sm:$0xff]
  %v683 = vld [vmem:[%s1 + $0x68] sm:$0xff]
  %v684 = vld [vmem:[%s1 + $0x70] sm:$0xff]
  %v685 = vld [vmem:[%s1 + $0x78] sm:$0xff]
  %v686 = vld [vmem:[%s1 + $0x80] sm:$0xff]
  %v687 = vld [vmem:[%s1 + $0x88] sm:$0xff]
  %v688 = vld [vmem:[%s1 + $0x90] sm:$0xff]
  %v689 = vld [vmem:[%s1 + $0x98] sm:$0xff]
  %v690 = vld [vmem:[%s1 + $0xa0] sm:$0xff]
  %v691 = vld [vmem:[%s1 + $0xa8] sm:$0xff]
  %v692 = vld [vmem:[%s1 + $0xb0] sm:$0xff]
  %v693 = vld [vmem:[%s1 + $0xb8] sm:$0xff]
  %v694 = vld [vmem:[%s1 + $0xc0] sm:$0xff]
  %v695 = vld [vmem:[%s1 + $0xc8] sm:$0xff]
  %v696 = vld [vmem:[%s1 + $0xd0] sm:$0xff]
  %v697 = vld [vmem:[%s1 + $0xd8] sm:$0xff]
  %v698 = vld [vmem:[%s1 + $0xe0] sm:$0xff]
  %v699 = vld [vmem:[%s1 + $0xe8] sm:$0xff]
  %v700 = vld [vmem:[%s1 + $0xf0] sm:$0xff]
  %v701 = vld [vmem:[%s1 + $0xf8] sm:$0xff]
  %v702 = vld [vmem:[%s1 + $0x100] sm:$0xff]
  %v703 = vld [vmem:[%s1 + $0x108] sm:$0xff]
  %v704 = vld [vmem:[%s1 + $0x110] sm:$0xff]
  %v705 = vld [vmem:[%s1 + $0x118] sm:$0xff]
  %v706 = vld [vmem:[%s1 + $0x120] sm:$0xff]
  %v707 = vld [vmem:[%s1 + $0x128] sm:$0xff]
  %v708 = vld [vmem:[%s1 + $0x130] sm:$0xff]
  %v709 = vld [vmem:[%s1 + $0x138] sm:$0xff]
  %v710 = vld [vmem:[%s1 + $0x140] sm:$0xff]
  %v711 = vld [vmem:[%s1 + $0x148] sm:$0xff]
  %v712 = vld [vmem:[%s1 + $0x150] sm:$0xff]
  %v713 = vld [vmem:[%s1 + $0x158] sm:$0xff]
  %v714 = vld [vmem:[%s1 + $0x160] sm:$0xff]
  %v715 = vld [vmem:[%s1 + $0x168] sm:$0xff]
  %v716 = vld [vmem:[%s1 + $0x170] sm:$0xff]
  %v717 = vld [vmem:[%s1 + $0x178] sm:$0xff]
  %v718 = vld [vmem:[%s1 + $0x180] sm:$0xff]
  %v719 = vld [vmem:[%s1 + $0x188] sm:$0xff]
  %v720 = vld [vmem:[%s1 + $0x190] sm:$0xff]
  %v721 = vld [vmem:[%s1 + $0x198] sm:$0xff]
  %v722 = vld [vmem:[%s1 + $0x1a0] sm:$0xff]
  %v723 = vld [vmem:[%s1 + $0x1a8] sm:$0xff]
  %v724 = vld [vmem:[%s1 + $0x1b0] sm:$0xff]
  %v725 = vld [vmem:[%s1 + $0x1b8] sm:$0xff]
  %v726 = vld [vmem:[%s1 + $0x1c0] sm:$0xff]
  %v727 = vld [vmem:[%s1 + $0x1c8] sm:$0xff]
  %v728 = vld [vmem:[%s1 + $0x1d0] sm:$0xff]
  %v729 = vld [vmem:[%s1 + $0x1d8] sm:$0xff]
  %v730 = vld [vmem:[%s1 + $0x1e0] sm:$0xff]
  %v731 = vld [vmem:[%s1 + $0x1e8] sm:$0xff]
  %v732 = vld [vmem:[%s1 + $0x1f0] sm:$0xff]
  %v733 = vld [vmem:[%s1 + $0x1f8] sm:$0xff]
  %v734 = vadd.f32 %v670, %v352
  %v735 = vadd.f32 %v671, %v357
  %v736 = vadd.f32 %v672, %v362
  %v737 = vadd.f32 %v673, %v367
  %v738 = vadd.f32 %v674, %v372
  %v739 = vadd.f32 %v675, %v377
  %v740 = vadd.f32 %v676, %v382
  %v741 = vadd.f32 %v677, %v387
  %v742 = vadd.f32 %v678, %v392
  %v743 = vadd.f32 %v679, %v397
  %v744 = vadd.f32 %v680, %v402
  %v745 = vadd.f32 %v681, %v407
  %v746 = vadd.f32 %v682, %v412
  %v747 = vadd.f32 %v683, %v417
  %v748 = vadd.f32 %v684, %v422
  %v749 = vadd.f32 %v685, %v427
  %v750 = vadd.f32 %v686, %v432
  %v751 = vadd.f32 %v687, %v437
  %v752 = vadd.f32 %v688, %v442
  %v753 = vadd.f32 %v689, %v447
  %v754 = vadd.f32 %v690, %v452
  %v755 = vadd.f32 %v691, %v457
  %v756 = vadd.f32 %v692, %v462
  %v757 = vadd.f32 %v693, %v467
  %v758 = vadd.f32 %v694, %v472
  %v759 = vadd.f32 %v695, %v477
  %v760 = vadd.f32 %v696, %v482
  %v761 = vadd.f32 %v697, %v487
  %v762 = vadd.f32 %v698, %v492
  %v763 = vadd.f32 %v699, %v497
  %v764 = vadd.f32 %v700, %v502
  %v765 = vadd.f32 %v701, %v507
  %v766 = vadd.f32 %v702, %v512
  %v767 = vadd.f32 %v703, %v517
  %v768 = vadd.f32 %v704, %v522
  %v769 = vadd.f32 %v705, %v527
  %v770 = vadd.f32 %v706, %v532
  %v771 = vadd.f32 %v707, %v537
  %v772 = vadd.f32 %v708, %v542
  %v773 = vadd.f32 %v709, %v547
  %v774 = vadd.f32 %v710, %v552
  %v775 = vadd.f32 %v711, %v557
  %v776 = vadd.f32 %v712, %v562
  %v777 = vadd.f32 %v713, %v567
  %v778 = vadd.f32 %v714, %v572
  %v779 = vadd.f32 %v715, %v577
  %v780 = vadd.f32 %v716, %v582
  %v781 = vadd.f32 %v717, %v587
  %v782 = vadd.f32 %v718, %v592
  %v783 = vadd.f32 %v719, %v597
  %v784 = vadd.f32 %v720, %v602
  %v785 = vadd.f32 %v721, %v607
  %v786 = vadd.f32 %v722, %v612
  %v787 = vadd.f32 %v723, %v617
  %v788 = vadd.f32 %v724, %v622
  %v789 = vadd.f32 %v725, %v627
  %v790 = vadd.f32 %v726, %v632
  %v791 = vadd.f32 %v727, %v637
  %v792 = vadd.f32 %v728, %v642
  %v793 = vadd.f32 %v729, %v647
  %v794 = vadd.f32 %v730, %v652
  %v795 = vadd.f32 %v731, %v657
  %v796 = vadd.f32 %v732, %v662
  %v797 = vadd.f32 %v733, %v667
  %v798 = vmul.f32 %v734, 0.5
  %v799 = vmul.f32 %v735, 0.5
  %v800 = vmul.f32 %v736, 0.5
  %v801 = vmul.f32 %v737, 0.5
  %v802 = vmul.f32 %v738, 0.5
  %v803 = vmul.f32 %v739, 0.5
  %v804 = vmul.f32 %v740, 0.5
  %v805 = vmul.f32 %v741, 0.5
  %v806 = vmul.f32 %v742, 0.5
  %v807 = vmul.f32 %v743, 0.5
  %v808 = vmul.f32 %v744, 0.5
  %v809 = vmul.f32 %v745, 0.5
  %v810 = vmul.f32 %v746, 0.5
  %v811 = vmul.f32 %v747, 0.5
  %v812 = vmul.f32 %v748, 0.5
  %v813 = vmul.f32 %v749, 0.5
  %v814 = vmul.f32 %v750, 0.5
  %v815 = vmul.f32 %v751, 0.5
  %v816 = vmul.f32 %v752, 0.5
  %v817 = vmul.f32 %v753, 0.5
  %v818 = vmul.f32 %v754, 0.5
  %v819 = vmul.f32 %v755, 0.5
  %v820 = vmul.f32 %v756, 0.5
  %v821 = vmul.f32 %v757, 0.5
  %v822 = vmul.f32 %v758, 0.5
  %v823 = vmul.f32 %v759, 0.5
  %v824 = vmul.f32 %v760, 0.5
  %v825 = vmul.f32 %v761, 0.5
  %v826 = vmul.f32 %v762, 0.5
  %v827 = vmul.f32 %v763, 0.5
  %v828 = vmul.f32 %v764, 0.5
  %v829 = vmul.f32 %v765, 0.5
  %v830 = vmul.f32 %v766, 0.5
  %v831 = vmul.f32 %v767, 0.5
  %v832 = vmul.f32 %v768, 0.5
  %v833 = vmul.f32 %v769, 0.5
  %v834 = vmul.f32 %v770, 0.5
  %v835 = vmul.f32 %v771, 0.5
  %v836 = vmul.f32 %v772, 0.5
  %v837 = vmul.f32 %v773, 0.5
  %v838 = vmul.f32 %v774, 0.5
  %v839 = vmul.f32 %v775, 0.5
  %v840 = vmul.f32 %v776, 0.5
  %v841 = vmul.f32 %v777, 0.5
  %v842 = vmul.f32 %v778, 0.5
  %v843 = vmul.f32 %v779, 0.5
  %v844 = vmul.f32 %v780, 0.5
  %v845 = vmul.f32 %v781, 0.5
  %v846 = vmul.f32 %v782, 0.5
  %v847 = vmul.f32 %v783, 0.5
  %v848 = vmul.f32 %v784, 0.5
  %v849 = vmul.f32 %v785, 0.5
  %v850 = vmul.f32 %v786, 0.5
  %v851 = vmul.f32 %v787, 0.5
  %v852 = vmul.f32 %v788, 0.5
  %v853 = vmul.f32 %v789, 0.5
  %v854 = vmul.f32 %v790, 0.5
  %v855 = vmul.f32 %v791, 0.5
  %v856 = vmul.f32 %v792, 0.5
  %v857 = vmul.f32 %v793, 0.5
  %v858 = vmul.f32 %v794, 0.5
  %v859 = vmul.f32 %v795, 0.5
  %v860 = vmul.f32 %v796, 0.5
  %v861 = vmul.f32 %v797, 0.5
  %v862 = vmul.f32 %v734, 0.70710677
  %v863 = vmul.f32 %v735, 0.70710677
  %v864 = vmul.f32 %v736, 0.70710677
  %v865 = vmul.f32 %v737, 0.70710677
  %v866 = vmul.f32 %v738, 0.70710677
  %v867 = vmul.f32 %v739, 0.70710677
  %v868 = vmul.f32 %v740, 0.70710677
  %v869 = vmul.f32 %v741, 0.70710677
  %v870 = vmul.f32 %v742, 0.70710677
  %v871 = vmul.f32 %v743, 0.70710677
  %v872 = vmul.f32 %v744, 0.70710677
  %v873 = vmul.f32 %v745, 0.70710677
  %v874 = vmul.f32 %v746, 0.70710677
  %v875 = vmul.f32 %v747, 0.70710677
  %v876 = vmul.f32 %v748, 0.70710677
  %v877 = vmul.f32 %v749, 0.70710677
  %v878 = vmul.f32 %v750, 0.70710677
  %v879 = vmul.f32 %v751, 0.70710677
  %v880 = vmul.f32 %v752, 0.70710677
  %v881 = vmul.f32 %v753, 0.70710677
  %v882 = vmul.f32 %v754, 0.70710677
  %v883 = vmul.f32 %v755, 0.70710677
  %v884 = vmul.f32 %v756, 0.70710677
  %v885 = vmul.f32 %v757, 0.70710677
  %v886 = vmul.f32 %v758, 0.70710677
  %v887 = vmul.f32 %v759, 0.70710677
  %v888 = vmul.f32 %v760, 0.70710677
  %v889 = vmul.f32 %v761, 0.70710677
  %v890 = vmul.f32 %v762, 0.70710677
  %v891 = vmul.f32 %v763, 0.70710677
  %v892 = vmul.f32 %v764, 0.70710677
  %v893 = vmul.f32 %v765, 0.70710677
  %v894 = vmul.f32 %v766, 0.70710677
  %v895 = vmul.f32 %v767, 0.70710677
  %v896 = vmul.f32 %v768, 0.70710677
  %v897 = vmul.f32 %v769, 0.70710677
  %v898 = vmul.f32 %v770, 0.70710677
  %v899 = vmul.f32 %v771, 0.70710677
  %v900 = vmul.f32 %v772, 0.70710677
  %v901 = vmul.f32 %v773, 0.70710677
  %v902 = vmul.f32 %v774, 0.70710677
  %v903 = vmul.f32 %v775, 0.70710677
  %v904 = vmul.f32 %v776, 0.70710677
  %v905 = vmul.f32 %v777, 0.70710677
  %v906 = vmul.f32 %v778, 0.70710677
  %v907 = vmul.f32 %v779, 0.70710677
  %v908 = vmul.f32 %v780, 0.70710677
  %v909 = vmul.f32 %v781, 0.70710677
  %v910 = vmul.f32 %v782, 0.70710677
  %v911 = vmul.f32 %v783, 0.70710677
  %v912 = vmul.f32 %v784, 0.70710677
  %v913 = vmul.f32 %v785, 0.70710677
  %v914 = vmul.f32 %v786, 0.70710677
  %v915 = vmul.f32 %v787, 0.70710677
  %v916 = vmul.f32 %v788, 0.70710677
  %v917 = vmul.f32 %v789, 0.70710677
  %v918 = vmul.f32 %v790, 0.70710677
  %v919 = vmul.f32 %v791, 0.70710677
  %v920 = vmul.f32 %v792, 0.70710677
  %v921 = vmul.f32 %v793, 0.70710677
  %v922 = vmul.f32 %v794, 0.70710677
  %v923 = vmul.f32 %v795, 0.70710677
  %v924 = vmul.f32 %v796, 0.70710677
  %v925 = vmul.f32 %v797, 0.70710677
  %v926 = verf.f32.pop %v862
  %v927 = verf.f32.pop %v863
  %v928 = verf.f32.pop %v864
  %v929 = verf.f32.pop %v865
  %v930 = verf.f32.pop %v866
  %v931 = verf.f32.pop %v867
  %v932 = verf.f32.pop %v868
  %v933 = verf.f32.pop %v869
  %v934 = verf.f32.pop %v870
  %v935 = verf.f32.pop %v871
  %v936 = verf.f32.pop %v872
  %v937 = verf.f32.pop %v873
  %v938 = verf.f32.pop %v874
  %v939 = verf.f32.pop %v875
  %v940 = verf.f32.pop %v876
  %v941 = verf.f32.pop %v877
  %v942 = verf.f32.pop %v878
  %v943 = verf.f32.pop %v879
  %v944 = verf.f32.pop %v880
  %v945 = verf.f32.pop %v881
  %v946 = verf.f32.pop %v882
  %v947 = verf.f32.pop %v883
  %v948 = verf.f32.pop %v884
  %v949 = verf.f32.pop %v885
  %v950 = verf.f32.pop %v886
  %v951 = verf.f32.pop %v887
  %v952 = verf.f32.pop %v888
  %v953 = verf.f32.pop %v889
  %v954 = verf.f32.pop %v890
  %v955 = verf.f32.pop %v891
  %v956 = verf.f32.pop %v892
  %v957 = verf.f32.pop %v893
  %v958 = verf.f32.pop %v894
  %v959 = verf.f32.pop %v895
  %v960 = verf.f32.pop %v896
  %v961 = verf.f32.pop %v897
  %v962 = verf.f32.pop %v898
  %v963 = verf.f32.pop %v899
  %v964 = verf.f32.pop %v900
  %v965 = verf.f32.pop %v901
  %v966 = verf.f32.pop %v902
  %v967 = verf.f32.pop %v903
  %v968 = verf.f32.pop %v904
  %v969 = verf.f32.pop %v905
  %v970 = verf.f32.pop %v906
  %v971 = verf.f32.pop %v907
  %v972 = verf.f32.pop %v908
  %v973 = verf.f32.pop %v909
  %v974 = verf.f32.pop %v910
  %v975 = verf.f32.pop %v911
  %v976 = verf.f32.pop %v912
  %v977 = verf.f32.pop %v913
  %v978 = verf.f32.pop %v914
  %v979 = verf.f32.pop %v915
  %v980 = verf.f32.pop %v916
  %v981 = verf.f32.pop %v917
  %v982 = verf.f32.pop %v918
  %v983 = verf.f32.pop %v919
  %v984 = verf.f32.pop %v920
  %v985 = verf.f32.pop %v921
  %v986 = verf.f32.pop %v922
  %v987 = verf.f32.pop %v923
  %v988 = verf.f32.pop %v924
  %v989 = verf.f32.pop %v925
  %v990 = vadd.f32 %v926, 1.0
  %v991 = vadd.f32 %v927, 1.0
  %v992 = vadd.f32 %v928, 1.0
  %v993 = vadd.f32 %v929, 1.0
  %v994 = vadd.f32 %v930, 1.0
  %v995 = vadd.f32 %v931, 1.0
  %v996 = vadd.f32 %v932, 1.0
  %v997 = vadd.f32 %v933, 1.0
  %v998 = vadd.f32 %v934, 1.0
  %v999 = vadd.f32 %v935, 1.0
  %v1000 = vadd.f32 %v936, 1.0
  %v1001 = vadd.f32 %v937, 1.0
  %v1002 = vadd.f32 %v938, 1.0
  %v1003 = vadd.f32 %v939, 1.0
  %v1004 = vadd.f32 %v940, 1.0
  %v1005 = vadd.f32 %v941, 1.0
  %v1006 = vadd.f32 %v942, 1.0
  %v1007 = vadd.f32 %v943, 1.0
  %v1008 = vadd.f32 %v944, 1.0
  %v1009 = vadd.f32 %v945, 1.0
  %v1010 = vadd.f32 %v946, 1.0
  %v1011 = vadd.f32 %v947, 1.0
  %v1012 = vadd.f32 %v948, 1.0
  %v1013 = vadd.f32 %v949, 1.0
  %v1014 = vadd.f32 %v950, 1.0
  %v1015 = vadd.f32 %v951, 1.0
  %v1016 = vadd.f32 %v952, 1.0
  %v1017 = vadd.f32 %v953, 1.0
  %v1018 = vadd.f32 %v954, 1.0
  %v1019 = vadd.f32 %v955, 1.0
  %v1020 = vadd.f32 %v956, 1.0
  %v1021 = vadd.f32 %v957, 1.0
  %v1022 = vadd.f32 %v958, 1.0
  %v1023 = vadd.f32 %v959, 1.0
  %v1024 = vadd.f32 %v960, 1.0
  %v1025 = vadd.f32 %v961, 1.0
  %v1026 = vadd.f32 %v962, 1.0
  %v1027 = vadd.f32 %v963, 1.0
  %v1028 = vadd.f32 %v964, 1.0
  %v1029 = vadd.f32 %v965, 1.0
  %v1030 = vadd.f32 %v966, 1.0
  %v1031 = vadd.f32 %v967, 1.0
  %v1032 = vadd.f32 %v968, 1.0
  %v1033 = vadd.f32 %v969, 1.0
  %v1034 = vadd.f32 %v970, 1.0
  %v1035 = vadd.f32 %v971, 1.0
  %v1036 = vadd.f32 %v972, 1.0
  %v1037 = vadd.f32 %v973, 1.0
  %v1038 = vadd.f32 %v974, 1.0
  %v1039 = vadd.f32 %v975, 1.0
  %v1040 = vadd.f32 %v976, 1.0
  %v1041 = vadd.f32 %v977, 1.0
  %v1042 = vadd.f32 %v978, 1.0
  %v1043 = vadd.f32 %v979, 1.0
  %v1044 = vadd.f32 %v980, 1.0
  %v1045 = vadd.f32 %v981, 1.0
  %v1046 = vadd.f32 %v982, 1.0
  %v1047 = vadd.f32 %v983, 1.0
  %v1048 = vadd.f32 %v984, 1.0
  %v1049 = vadd.f32 %v985, 1.0
  %v1050 = vadd.f32 %v986, 1.0
  %v1051 = vadd.f32 %v987, 1.0
  %v1052 = vadd.f32 %v988, 1.0
  %v1053 = vadd.f32 %v989, 1.0
  %v1054 = vmul.f32 %v798, %v990
  %v1055 = vmul.f32 %v799, %v991
  %v1056 = vmul.f32 %v800, %v992
  %v1057 = vmul.f32 %v801, %v993
  %v1058 = vmul.f32 %v802, %v994
  %v1059 = vmul.f32 %v803, %v995
  %v1060 = vmul.f32 %v804, %v996
  %v1061 = vmul.f32 %v805, %v997
  %v1062 = vmul.f32 %v806, %v998
  %v1063 = vmul.f32 %v807, %v999
  %v1064 = vmul.f32 %v808, %v1000
  %v1065 = vmul.f32 %v809, %v1001
  %v1066 = vmul.f32 %v810, %v1002
  %v1067 = vmul.f32 %v811, %v1003
  %v1068 = vmul.f32 %v812, %v1004
  %v1069 = vmul.f32 %v813, %v1005
  %v1070 = vmul.f32 %v814, %v1006
  %v1071 = vmul.f32 %v815, %v1007
  %v1072 = vmul.f32 %v816, %v1008
  %v1073 = vmul.f32 %v817, %v1009
  %v1074 = vmul.f32 %v818, %v1010
  %v1075 = vmul.f32 %v819, %v1011
  %v1076 = vmul.f32 %v820, %v1012
  %v1077 = vmul.f32 %v821, %v1013
  %v1078 = vmul.f32 %v822, %v1014
  %v1079 = vmul.f32 %v823, %v1015
  %v1080 = vmul.f32 %v824, %v1016
  %v1081 = vmul.f32 %v825, %v1017
  %v1082 = vmul.f32 %v826, %v1018
  %v1083 = vmul.f32 %v827, %v1019
  %v1084 = vmul.f32 %v828, %v1020
  %v1085 = vmul.f32 %v829, %v1021
  %v1086 = vmul.f32 %v830, %v1022
  %v1087 = vmul.f32 %v831, %v1023
  %v1088 = vmul.f32 %v832, %v1024
  %v1089 = vmul.f32 %v833, %v1025
  %v1090 = vmul.f32 %v834, %v1026
  %v1091 = vmul.f32 %v835, %v1027
  %v1092 = vmul.f32 %v836, %v1028
  %v1093 = vmul.f32 %v837, %v1029
  %v1094 = vmul.f32 %v838, %v1030
  %v1095 = vmul.f32 %v839, %v1031
  %v1096 = vmul.f32 %v840, %v1032
  %v1097 = vmul.f32 %v841, %v1033
  %v1098 = vmul.f32 %v842, %v1034
  %v1099 = vmul.f32 %v843, %v1035
  %v1100 = vmul.f32 %v844, %v1036
  %v1101 = vmul.f32 %v845, %v1037
  %v1102 = vmul.f32 %v846, %v1038
  %v1103 = vmul.f32 %v847, %v1039
  %v1104 = vmul.f32 %v848, %v1040
  %v1105 = vmul.f32 %v849, %v1041
  %v1106 = vmul.f32 %v850, %v1042
  %v1107 = vmul.f32 %v851, %v1043
  %v1108 = vmul.f32 %v852, %v1044
  %v1109 = vmul.f32 %v853, %v1045
  %v1110 = vmul.f32 %v854, %v1046
  %v1111 = vmul.f32 %v855, %v1047
  %v1112 = vmul.f32 %v856, %v1048
  %v1113 = vmul.f32 %v857, %v1049
  %v1114 = vmul.f32 %v858, %v1050
  %v1115 = vmul.f32 %v859, %v1051
  %v1116 = vmul.f32 %v860, %v1052
  %v1117 = vmul.f32 %v861, %v1053
  %1118 = vst.msk [vmem:[%s4] sm:$0xff] %vm92, %v1054
  %1119 = vst.msk [vmem:[%s4 + $0x8] sm:$0xff] %vm92, %v1055
  %1120 = vst.msk [vmem:[%s4 + $0x10] sm:$0xff] %vm92, %v1056
  %1121 = vst.msk [vmem:[%s4 + $0x18] sm:$0xff] %vm92, %v1057
  %1122 = vst.msk [vmem:[%s4 + $0x20] sm:$0xff] %vm92, %v1058
  %1123 = vst.msk [vmem:[%s4 + $0x28] sm:$0xff] %vm92, %v1059
  %1124 = vst.msk [vmem:[%s4 + $0x30] sm:$0xff] %vm92, %v1060
  %1125 = vst.msk [vmem:[%s4 + $0x38] sm:$0xff] %vm92, %v1061
  %1126 = vst.msk [vmem:[%s4 + $0x40] sm:$0xff] %vm92, %v1062
  %1127 = vst.msk [vmem:[%s4 + $0x48] sm:$0xff] %vm92, %v1063
  %1128 = vst.msk [vmem:[%s4 + $0x50] sm:$0xff] %vm92, %v1064
  %1129 = vst.msk [vmem:[%s4 + $0x58] sm:$0xff] %vm92, %v1065
  %1130 = vst.msk [vmem:[%s4 + $0x60] sm:$0xff] %vm92, %v1066
  %1131 = vst.msk [vmem:[%s4 + $0x68] sm:$0xff] %vm92, %v1067
  %1132 = vst.msk [vmem:[%s4 + $0x70] sm:$0xff] %vm92, %v1068
  %1133 = vst.msk [vmem:[%s4 + $0x78] sm:$0xff] %vm92, %v1069
  %1134 = vst.msk [vmem:[%s4 + $0x80] sm:$0xff] %vm92, %v1070
  %1135 = vst.msk [vmem:[%s4 + $0x88] sm:$0xff] %vm92, %v1071
  %1136 = vst.msk [vmem:[%s4 + $0x90] sm:$0xff] %vm92, %v1072
  %1137 = vst.msk [vmem:[%s4 + $0x98] sm:$0xff] %vm92, %v1073
  %1138 = vst.msk [vmem:[%s4 + $0xa0] sm:$0xff] %vm92, %v1074
  %1139 = vst.msk [vmem:[%s4 + $0xa8] sm:$0xff] %vm92, %v1075
  %1140 = vst.msk [vmem:[%s4 + $0xb0] sm:$0xff] %vm92, %v1076
  %1141 = vst.msk [vmem:[%s4 + $0xb8] sm:$0xff] %vm92, %v1077
  %1142 = vst.msk [vmem:[%s4 + $0xc0] sm:$0xff] %vm92, %v1078
  %1143 = vst.msk [vmem:[%s4 + $0xc8] sm:$0xff] %vm92, %v1079
  %1144 = vst.msk [vmem:[%s4 + $0xd0] sm:$0xff] %vm92, %v1080
  %1145 = vst.msk [vmem:[%s4 + $0xd8] sm:$0xff] %vm92, %v1081
  %1146 = vst.msk [vmem:[%s4 + $0xe0] sm:$0xff] %vm92, %v1082
  %1147 = vst.msk [vmem:[%s4 + $0xe8] sm:$0xff] %vm92, %v1083
  %1148 = vst.msk [vmem:[%s4 + $0xf0] sm:$0xff] %vm92, %v1084
  %1149 = vst.msk [vmem:[%s4 + $0xf8] sm:$0xff] %vm92, %v1085
  %1150 = vst.msk [vmem:[%s4 + $0x100] sm:$0xff] %vm92, %v1086
  %1151 = vst.msk [vmem:[%s4 + $0x108] sm:$0xff] %vm92, %v1087
  %1152 = vst.msk [vmem:[%s4 + $0x110] sm:$0xff] %vm92, %v1088
  %1153 = vst.msk [vmem:[%s4 + $0x118] sm:$0xff] %vm92, %v1089
  %1154 = vst.msk [vmem:[%s4 + $0x120] sm:$0xff] %vm92, %v1090
  %1155 = vst.msk [vmem:[%s4 + $0x128] sm:$0xff] %vm92, %v1091
  %1156 = vst.msk [vmem:[%s4 + $0x130] sm:$0xff] %vm92, %v1092
  %1157 = vst.msk [vmem:[%s4 + $0x138] sm:$0xff] %vm92, %v1093
  %1158 = vst.msk [vmem:[%s4 + $0x140] sm:$0xff] %vm92, %v1094
  %1159 = vst.msk [vmem:[%s4 + $0x148] sm:$0xff] %vm92, %v1095
  %1160 = vst.msk [vmem:[%s4 + $0x150] sm:$0xff] %vm92, %v1096
  %1161 = vst.msk [vmem:[%s4 + $0x158] sm:$0xff] %vm92, %v1097
  %1162 = vst.msk [vmem:[%s4 + $0x160] sm:$0xff] %vm92, %v1098
  %1163 = vst.msk [vmem:[%s4 + $0x168] sm:$0xff] %vm92, %v1099
  %1164 = vst.msk [vmem:[%s4 + $0x170] sm:$0xff] %vm92, %v1100
  %1165 = vst.msk [vmem:[%s4 + $0x178] sm:$0xff] %vm92, %v1101
  %1166 = vst.msk [vmem:[%s4 + $0x180] sm:$0xff] %vm92, %v1102
  %1167 = vst.msk [vmem:[%s4 + $0x188] sm:$0xff] %vm92, %v1103
  %1168 = vst.msk [vmem:[%s4 + $0x190] sm:$0xff] %vm92, %v1104
  %1169 = vst.msk [vmem:[%s4 + $0x198] sm:$0xff] %vm92, %v1105
  %1170 = vst.msk [vmem:[%s4 + $0x1a0] sm:$0xff] %vm92, %v1106
  %1171 = vst.msk [vmem:[%s4 + $0x1a8] sm:$0xff] %vm92, %v1107
  %1172 = vst.msk [vmem:[%s4 + $0x1b0] sm:$0xff] %vm92, %v1108
  %1173 = vst.msk [vmem:[%s4 + $0x1b8] sm:$0xff] %vm92, %v1109
  %1174 = vst.msk [vmem:[%s4 + $0x1c0] sm:$0xff] %vm92, %v1110
  %1175 = vst.msk [vmem:[%s4 + $0x1c8] sm:$0xff] %vm92, %v1111
  %1176 = vst.msk [vmem:[%s4 + $0x1d0] sm:$0xff] %vm92, %v1112
  %1177 = vst.msk [vmem:[%s4 + $0x1d8] sm:$0xff] %vm92, %v1113
  %1178 = vst.msk [vmem:[%s4 + $0x1e0] sm:$0xff] %vm92, %v1114
  %1179 = vst.msk [vmem:[%s4 + $0x1e8] sm:$0xff] %vm92, %v1115
  %1180 = vst.msk [vmem:[%s4 + $0x1f0] sm:$0xff] %vm92, %v1116
  %1181 = vst.msk [vmem:[%s4 + $0x1f8] sm:$0xff] %vm92, %v1117
  // Predicated region
  $region18: #{fno2d_forward.7} parent=0 // pred_check
    _
  $region19: #{fno2d_forward.7} parent=0 // pred_check_branch
    %1183 = sbr.rel (0) target = $region21
  $region20: #{fno2d_forward.7} parent=0 // pred_region
    _
  $region21: #{fno2d_forward.7} parent=0 // pred_fallthru
    _
  // Predicated region
  $region22: #{fno2d_forward.7} parent=0 // pred_check
    _
  $region23: #{fno2d_forward.7} parent=0 // pred_check_branch
    %1185 = sbr.rel (0) target = $region25
  $region24: #{fno2d_forward.7} parent=0 // pred_region
    _
  $region25: #{fno2d_forward.7} parent=0 // pred_fallthru
    _

// kernel: fno2d_forward.9
$region0: #{fno2d_forward.9}
  #allocation0 [shape = 'u32[]', space=smem, size = 0x4, offset = 0x4, fixed_abs, tag = 'smem constant byte address 0x4 - core index']
  #allocation1 [shape = 'u32[144,128]{1,0:T(1,128)}', space=vmem, size = 0x12000, scoped, tag = 'internal scratch']
  #allocation2 [shape = 'f32[1,1]{1,0:T(1,128)S(1)}', space=vmem, size = 0x200, scoped, tag = 'scoped memory for fno2d_forward.9']
  %s0 = inlined_call_operand.vmem [shape: f32[512,32], index: 0, kind: input, shape index: {}]
  %s1 = inlined_call_operand.vmem [shape: f32[512,32], index: 1, kind: input, shape index: {}]
  %s2 = inlined_call_operand.vmem [shape: f32[32,32], index: 2, kind: input, shape index: {}]
  %s3 = inlined_call_operand.vmem [shape: f32[1,32], index: 3, kind: input, shape index: {}]
  %s4 = inlined_call_operand.vmem [shape: f32[32,128], index: 4, kind: input, shape index: {}]
  %s5 = inlined_call_operand.vmem [shape: f32[1,128], index: 5, kind: input, shape index: {}]
  %s6 = inlined_call_operand.vmem [shape: f32[1,128], index: 6, kind: input, shape index: {}]
  %s7 = inlined_call_operand.<no memory space> [shape: f32[1,1], index: 7, kind: input, shape index: {}]
  %s8 = inlined_call_operand.vmem [shape: f32[512,1], index: 8, kind: output, shape index: {}]
  %s9 = sld [smem:[#allocation0]]
  $region42: #{fno2d_forward.9} parent=0
    _
  %s11 = ssub.s32 1, %s9
  %s12 = scalar_select 0, %s11, %s9
  %v13 = vstv %s7
  %14 = vst [vmem:[#allocation2] sm:$0x1] %v13
  // Predicated region
  $region2: #{fno2d_forward.9} parent=0 // pred_check
    _
  $region3: #{fno2d_forward.9} parent=0 // pred_check_branch
    %16 = sbr.rel (0) target = $region5
  $region4: #{fno2d_forward.9} parent=0 // pred_region
    _
  $region5: #{fno2d_forward.9} parent=0 // pred_fallthru
    _
  // Predicated region
  $region6: #{fno2d_forward.9} parent=0 // pred_check
    _
  $region7: #{fno2d_forward.9} parent=0 // pred_check_branch
    %18 = sbr.rel (0) target = $region9
  $region8: #{fno2d_forward.9} parent=0 // pred_region
    _
  $region9: #{fno2d_forward.9} parent=0 // pred_fallthru
    _
  // Predicated region
  $region10: #{fno2d_forward.9} parent=0 // pred_check
    _
  $region11: #{fno2d_forward.9} parent=0 // pred_check_branch
    %20 = sbr.rel (0) target = $region13
  $region12: #{fno2d_forward.9} parent=0 // pred_region
    _
  $region13: #{fno2d_forward.9} parent=0 // pred_fallthru
    _
  // Predicated region
  $region14: #{fno2d_forward.9} parent=0 // pred_check
    _
  $region15: #{fno2d_forward.9} parent=0 // pred_check_branch
    %22 = sbr.rel (0) target = $region17
  $region16: #{fno2d_forward.9} parent=0 // pred_region
    _
  $region17: #{fno2d_forward.9} parent=0 // pred_fallthru
    _
  // Predicated region
  $region18: #{fno2d_forward.9} parent=0 // pred_check
    _
  $region19: #{fno2d_forward.9} parent=0 // pred_check_branch
    %24 = sbr.rel (0) target = $region21
  $region20: #{fno2d_forward.9} parent=0 // pred_region
    _
  $region21: #{fno2d_forward.9} parent=0 // pred_fallthru
    _
  // Predicated region
  $region22: #{fno2d_forward.9} parent=0 // pred_check
    _
  $region23: #{fno2d_forward.9} parent=0 // pred_check_branch
    %26 = sbr.rel (0) target = $region25
  $region24: #{fno2d_forward.9} parent=0 // pred_region
    _
  $region25: #{fno2d_forward.9} parent=0 // pred_fallthru
    _
  // Predicated region
  $region26: #{fno2d_forward.9} parent=0 // pred_check
    _
  $region27: #{fno2d_forward.9} parent=0 // pred_check_branch
    %28 = sbr.rel (0) target = $region29
  $region28: #{fno2d_forward.9} parent=0 // pred_region
    _
  $region29: #{fno2d_forward.9} parent=0 // pred_fallthru
    _
  // Predicated region
  $region30: #{fno2d_forward.9} parent=0 // pred_check
    _
  $region31: #{fno2d_forward.9} parent=0 // pred_check_branch
    %30 = sbr.rel (0) target = $region33
  $region32: #{fno2d_forward.9} parent=0 // pred_region
    _
  $region33: #{fno2d_forward.9} parent=0 // pred_fallthru
    _
  %v31 = vld [vmem:[%s0] sm:$0xff]
  %v32 = vld [vmem:[%s0 + $0x8] sm:$0xff]
  %v33 = vld [vmem:[%s0 + $0x10] sm:$0xff]
  %v34 = vld [vmem:[%s0 + $0x18] sm:$0xff]
  %v35 = vld [vmem:[%s0 + $0x20] sm:$0xff]
  %v36 = vld [vmem:[%s0 + $0x28] sm:$0xff]
  %v37 = vld [vmem:[%s0 + $0x30] sm:$0xff]
  %v38 = vld [vmem:[%s0 + $0x38] sm:$0xff]
  %v39 = vld [vmem:[%s0 + $0x40] sm:$0xff]
  %v40 = vld [vmem:[%s0 + $0x48] sm:$0xff]
  %v41 = vld [vmem:[%s0 + $0x50] sm:$0xff]
  %v42 = vld [vmem:[%s0 + $0x58] sm:$0xff]
  %v43 = vld [vmem:[%s0 + $0x60] sm:$0xff]
  %v44 = vld [vmem:[%s0 + $0x68] sm:$0xff]
  %v45 = vld [vmem:[%s0 + $0x70] sm:$0xff]
  %v46 = vld [vmem:[%s0 + $0x78] sm:$0xff]
  %v47 = vld [vmem:[%s0 + $0x80] sm:$0xff]
  %v48 = vld [vmem:[%s0 + $0x88] sm:$0xff]
  %v49 = vld [vmem:[%s0 + $0x90] sm:$0xff]
  %v50 = vld [vmem:[%s0 + $0x98] sm:$0xff]
  %v51 = vld [vmem:[%s0 + $0xa0] sm:$0xff]
  %v52 = vld [vmem:[%s0 + $0xa8] sm:$0xff]
  %v53 = vld [vmem:[%s0 + $0xb0] sm:$0xff]
  %v54 = vld [vmem:[%s0 + $0xb8] sm:$0xff]
  %v55 = vld [vmem:[%s0 + $0xc0] sm:$0xff]
  %v56 = vld [vmem:[%s0 + $0xc8] sm:$0xff]
  %v57 = vld [vmem:[%s0 + $0xd0] sm:$0xff]
  %v58 = vld [vmem:[%s0 + $0xd8] sm:$0xff]
  %v59 = vld [vmem:[%s0 + $0xe0] sm:$0xff]
  %v60 = vld [vmem:[%s0 + $0xe8] sm:$0xff]
  %v61 = vld [vmem:[%s0 + $0xf0] sm:$0xff]
  %v62 = vld [vmem:[%s0 + $0xf8] sm:$0xff]
  %v63 = vld [vmem:[%s0 + $0x100] sm:$0xff]
  %v64 = vld [vmem:[%s0 + $0x108] sm:$0xff]
  %v65 = vld [vmem:[%s0 + $0x110] sm:$0xff]
  %v66 = vld [vmem:[%s0 + $0x118] sm:$0xff]
  %v67 = vld [vmem:[%s0 + $0x120] sm:$0xff]
  %v68 = vld [vmem:[%s0 + $0x128] sm:$0xff]
  %v69 = vld [vmem:[%s0 + $0x130] sm:$0xff]
  %v70 = vld [vmem:[%s0 + $0x138] sm:$0xff]
  %v71 = vld [vmem:[%s0 + $0x140] sm:$0xff]
  %v72 = vld [vmem:[%s0 + $0x148] sm:$0xff]
  %v73 = vld [vmem:[%s0 + $0x150] sm:$0xff]
  %v74 = vld [vmem:[%s0 + $0x158] sm:$0xff]
  %v75 = vld [vmem:[%s0 + $0x160] sm:$0xff]
  %v76 = vld [vmem:[%s0 + $0x168] sm:$0xff]
  %v77 = vld [vmem:[%s0 + $0x170] sm:$0xff]
  %v78 = vld [vmem:[%s0 + $0x178] sm:$0xff]
  %v79 = vld [vmem:[%s0 + $0x180] sm:$0xff]
  %v80 = vld [vmem:[%s0 + $0x188] sm:$0xff]
  %v81 = vld [vmem:[%s0 + $0x190] sm:$0xff]
  %v82 = vld [vmem:[%s0 + $0x198] sm:$0xff]
  %v83 = vld [vmem:[%s0 + $0x1a0] sm:$0xff]
  %v84 = vld [vmem:[%s0 + $0x1a8] sm:$0xff]
  %v85 = vld [vmem:[%s0 + $0x1b0] sm:$0xff]
  %v86 = vld [vmem:[%s0 + $0x1b8] sm:$0xff]
  %v87 = vld [vmem:[%s0 + $0x1c0] sm:$0xff]
  %v88 = vld [vmem:[%s0 + $0x1c8] sm:$0xff]
  %v89 = vld [vmem:[%s0 + $0x1d0] sm:$0xff]
  %v90 = vld [vmem:[%s0 + $0x1d8] sm:$0xff]
  %v91 = vld [vmem:[%s0 + $0x1e0] sm:$0xff]
  %v92 = vld [vmem:[%s0 + $0x1e8] sm:$0xff]
  %v93 = vld [vmem:[%s0 + $0x1f0] sm:$0xff]
  %v94 = vld [vmem:[%s0 + $0x1f8] sm:$0xff]
  %v95 = vld [vmem:[%s2] sm:$0xff]
  %v96 = vld [vmem:[%s2 + $0x8] sm:$0xff]
  %v97 = vld [vmem:[%s2 + $0x10] sm:$0xff]
  %v98 = vld [vmem:[%s2 + $0x18] sm:$0xff]
  %v99 = vld [vmem:[%s3] sm:$0x1]
  %v101 = vlaneseq
  %v102 = vshrl.u32 %v101, 7
  %v103 = vsub.s32 0, %v102
  %v104 = vrot.slane %v99, %v103
  %vm106 = vcmask 261120
  %v108 = vsel %vm106, %v31, 0
  %v111 = vsel %vm106, %v32, 0
  %v114 = vsel %vm106, %v33, 0
  %v117 = vsel %vm106, %v34, 0
  %v120 = vsel %vm106, %v35, 0
  %v123 = vsel %vm106, %v36, 0
  %v126 = vsel %vm106, %v37, 0
  %v129 = vsel %vm106, %v38, 0
  %v132 = vsel %vm106, %v39, 0
  %v135 = vsel %vm106, %v40, 0
  %v138 = vsel %vm106, %v41, 0
  %v141 = vsel %vm106, %v42, 0
  %v144 = vsel %vm106, %v43, 0
  %v147 = vsel %vm106, %v44, 0
  %v150 = vsel %vm106, %v45, 0
  %v153 = vsel %vm106, %v46, 0
  %v156 = vsel %vm106, %v47, 0
  %v159 = vsel %vm106, %v48, 0
  %v162 = vsel %vm106, %v49, 0
  %v165 = vsel %vm106, %v50, 0
  %v168 = vsel %vm106, %v51, 0
  %v171 = vsel %vm106, %v52, 0
  %v174 = vsel %vm106, %v53, 0
  %v177 = vsel %vm106, %v54, 0
  %v180 = vsel %vm106, %v55, 0
  %v183 = vsel %vm106, %v56, 0
  %v186 = vsel %vm106, %v57, 0
  %v189 = vsel %vm106, %v58, 0
  %v192 = vsel %vm106, %v59, 0
  %v195 = vsel %vm106, %v60, 0
  %v198 = vsel %vm106, %v61, 0
  %v201 = vsel %vm106, %v62, 0
  %v204 = vsel %vm106, %v63, 0
  %v207 = vsel %vm106, %v64, 0
  %v210 = vsel %vm106, %v65, 0
  %v213 = vsel %vm106, %v66, 0
  %v216 = vsel %vm106, %v67, 0
  %v219 = vsel %vm106, %v68, 0
  %v222 = vsel %vm106, %v69, 0
  %v225 = vsel %vm106, %v70, 0
  %v228 = vsel %vm106, %v71, 0
  %v231 = vsel %vm106, %v72, 0
  %v234 = vsel %vm106, %v73, 0
  %v237 = vsel %vm106, %v74, 0
  %v240 = vsel %vm106, %v75, 0
  %v243 = vsel %vm106, %v76, 0
  %v246 = vsel %vm106, %v77, 0
  %v249 = vsel %vm106, %v78, 0
  %v252 = vsel %vm106, %v79, 0
  %v255 = vsel %vm106, %v80, 0
  %v258 = vsel %vm106, %v81, 0
  %v261 = vsel %vm106, %v82, 0
  %v264 = vsel %vm106, %v83, 0
  %v267 = vsel %vm106, %v84, 0
  %v270 = vsel %vm106, %v85, 0
  %v273 = vsel %vm106, %v86, 0
  %v276 = vsel %vm106, %v87, 0
  %v279 = vsel %vm106, %v88, 0
  %v282 = vsel %vm106, %v89, 0
  %v285 = vsel %vm106, %v90, 0
  %v288 = vsel %vm106, %v91, 0
  %v291 = vsel %vm106, %v92, 0
  %v294 = vsel %vm106, %v93, 0
  %v297 = vsel %vm106, %v94, 0
  %299 = vmatprep.subr.mxu0 0.0
  %300 = vmatpush1.msra.mxu0 %v95
  %301 = vmatprep.subr.mxu0 0.0
  %302 = vmatpush1.msra.mxu0 %v96
  %303 = vmatprep.subr.mxu0 0.0
  %304 = vmatpush1.msra.mxu0 %v97
  %305 = vmatprep.subr.mxu0 0.0
  %306 = vmatpush1.msra.mxu0 %v98
  %307 = vmatprep.subr.mxu0 0.0
  %308 = vmatpush1.msra.mxu0 0.0
  %309 = vmatprep.subr.mxu0 0.0
  %310 = vmatpush1.msra.mxu0 0.0
  %311 = vmatprep.subr.mxu0 0.0
  %312 = vmatpush1.msra.mxu0 0.0
  %313 = vmatprep.subr.mxu0 0.0
  %314 = vmatpush1.msra.mxu0 0.0
  %315 = vmatprep.subr.mxu0 0.0
  %316 = vmatpush1.msra.mxu0 0.0
  %317 = vmatprep.subr.mxu0 0.0
  %318 = vmatpush1.msra.mxu0 0.0
  %319 = vmatprep.subr.mxu0 0.0
  %320 = vmatpush1.msra.mxu0 0.0
  %321 = vmatprep.subr.mxu0 0.0
  %322 = vmatpush1.msra.mxu0 0.0
  %323 = vmatprep.subr.mxu0 0.0
  %324 = vmatpush1.msra.mxu0 0.0
  %325 = vmatprep.subr.mxu0 0.0
  %326 = vmatpush1.msra.mxu0 0.0
  %327 = vmatprep.subr.mxu0 0.0
  %328 = vmatpush1.msra.mxu0 0.0
  %329 = vmatprep.subr.mxu0 0.0
  %330 = vmatpush1.msra.mxu0 0.0
  %331 = vmatprep.subr.mxu0 0.0
  %332 = vmatpush1.msra.mxu0 0.0
  %333 = vmatprep.subr.mxu0 0.0
  %334 = vmatpush1.msra.mxu0 0.0
  %335 = vmatprep.subr.mxu0 0.0
  %336 = vmatpush1.msra.mxu0 0.0
  %337 = vmatprep.subr.mxu0 0.0
  %338 = vmatpush1.msra.mxu0 0.0
  %339 = vmatprep.subr.mxu0 0.0
  %340 = vmatpush1.msra.mxu0 0.0
  %341 = vmatprep.subr.mxu0 0.0
  %342 = vmatpush1.msra.mxu0 0.0
  %343 = vmatprep.subr.mxu0 0.0
  %344 = vmatpush1.msra.mxu0 0.0
  %345 = vmatprep.subr.mxu0 0.0
  %346 = vmatpush1.msra.mxu0 0.0
  %347 = vmatprep.subr.mxu0 0.0
  %348 = vmatpush1.msra.mxu0 0.0
  %349 = vmatprep.subr.mxu0 0.0
  %350 = vmatpush1.msra.mxu0 0.0
  %351 = vmatprep.subr.mxu0 0.0
  %352 = vmatpush1.msra.mxu0 0.0
  %353 = vmatprep.subr.mxu0 0.0
  %354 = vmatpush1.msra.mxu0 0.0
  %355 = vmatprep.subr.mxu0 0.0
  %356 = vmatpush1.msra.mxu0 0.0
  %357 = vmatprep.subr.mxu0 0.0
  %358 = vmatpush1.msra.mxu0 0.0
  %359 = vmatprep.subr.mxu0 0.0
  %360 = vmatpush1.msra.mxu0 0.0
  %361 = vmatprep.subr.mxu0 0.0
  %362 = vmatpush1.msra.mxu0 0.0
  %363 = vmatprep.mubr.f32.mxu0 0.0
  %364 = vmatmul.mubr.f32.gmra.mrb[0].mxu0 %v108
  %v365 = vpop.f32.mrb[0].mxu0
  %v366 = vadd.f32 %v104, %v365
  %v367 = vpop.f32.mrb[0].mxu0
  %368 = vmatprep.mubr.f32.mxu0 0.0
  %369 = vmatmul.mubr.f32.gmra.mrb[0].mxu0 %v111
  %v370 = vpop.f32.mrb[0].mxu0
  %v371 = vadd.f32 %v104, %v370
  %v372 = vpop.f32.mrb[0].mxu0
  %373 = vmatprep.mubr.f32.mxu0 0.0
  %374 = vmatmul.mubr.f32.gmra.mrb[0].mxu0 %v114
  %v375 = vpop.f32.mrb[0].mxu0
  %v376 = vadd.f32 %v104, %v375
  %v377 = vpop.f32.mrb[0].mxu0
  %378 = vmatprep.mubr.f32.mxu0 0.0
  %379 = vmatmul.mubr.f32.gmra.mrb[0].mxu0 %v117
  %v380 = vpop.f32.mrb[0].mxu0
  %v381 = vadd.f32 %v104, %v380
  %v382 = vpop.f32.mrb[0].mxu0
  %383 = vmatprep.mubr.f32.mxu0 0.0
  %384 = vmatmul.mubr.f32.gmra.mrb[0].mxu0 %v120
  %v385 = vpop.f32.mrb[0].mxu0
  %v386 = vadd.f32 %v104, %v385
  %v387 = vpop.f32.mrb[0].mxu0
  %388 = vmatprep.mubr.f32.mxu0 0.0
  %389 = vmatmul.mubr.f32.gmra.mrb[0].mxu0 %v123
  %v390 = vpop.f32.mrb[0].mxu0
  %v391 = vadd.f32 %v104, %v390
  %v392 = vpop.f32.mrb[0].mxu0
  %393 = vmatprep.mubr.f32.mxu0 0.0
  %394 = vmatmul.mubr.f32.gmra.mrb[0].mxu0 %v126
  %v395 = vpop.f32.mrb[0].mxu0
  %v396 = vadd.f32 %v104, %v395
  %v397 = vpop.f32.mrb[0].mxu0
  %398 = vmatprep.mubr.f32.mxu0 0.0
  %399 = vmatmul.mubr.f32.gmra.mrb[0].mxu0 %v129
  %v400 = vpop.f32.mrb[0].mxu0
  %v401 = vadd.f32 %v104, %v400
  %v402 = vpop.f32.mrb[0].mxu0
  %403 = vmatprep.mubr.f32.mxu0 0.0
  %404 = vmatmul.mubr.f32.gmra.mrb[0].mxu0 %v132
  %v405 = vpop.f32.mrb[0].mxu0
  %v406 = vadd.f32 %v104, %v405
  %v407 = vpop.f32.mrb[0].mxu0
  %408 = vmatprep.mubr.f32.mxu0 0.0
  %409 = vmatmul.mubr.f32.gmra.mrb[0].mxu0 %v135
  %v410 = vpop.f32.mrb[0].mxu0
  %v411 = vadd.f32 %v104, %v410
  %v412 = vpop.f32.mrb[0].mxu0
  %413 = vmatprep.mubr.f32.mxu0 0.0
  %414 = vmatmul.mubr.f32.gmra.mrb[0].mxu0 %v138
  %v415 = vpop.f32.mrb[0].mxu0
  %v416 = vadd.f32 %v104, %v415
  %v417 = vpop.f32.mrb[0].mxu0
  %418 = vmatprep.mubr.f32.mxu0 0.0
  %419 = vmatmul.mubr.f32.gmra.mrb[0].mxu0 %v141
  %v420 = vpop.f32.mrb[0].mxu0
  %v421 = vadd.f32 %v104, %v420
  %v422 = vpop.f32.mrb[0].mxu0
  %423 = vmatprep.mubr.f32.mxu0 0.0
  %424 = vmatmul.mubr.f32.gmra.mrb[0].mxu0 %v144
  %v425 = vpop.f32.mrb[0].mxu0
  %v426 = vadd.f32 %v104, %v425
  %v427 = vpop.f32.mrb[0].mxu0
  %428 = vmatprep.mubr.f32.mxu0 0.0
  %429 = vmatmul.mubr.f32.gmra.mrb[0].mxu0 %v147
  %v430 = vpop.f32.mrb[0].mxu0
  %v431 = vadd.f32 %v104, %v430
  %v432 = vpop.f32.mrb[0].mxu0
  %433 = vmatprep.mubr.f32.mxu0 0.0
  %434 = vmatmul.mubr.f32.gmra.mrb[0].mxu0 %v150
  %v435 = vpop.f32.mrb[0].mxu0
  %v436 = vadd.f32 %v104, %v435
  %v437 = vpop.f32.mrb[0].mxu0
  %438 = vmatprep.mubr.f32.mxu0 0.0
  %439 = vmatmul.mubr.f32.gmra.mrb[0].mxu0 %v153
  %v440 = vpop.f32.mrb[0].mxu0
  %v441 = vadd.f32 %v104, %v440
  %v442 = vpop.f32.mrb[0].mxu0
  %443 = vmatprep.mubr.f32.mxu0 0.0
  %444 = vmatmul.mubr.f32.gmra.mrb[0].mxu0 %v156
  %v445 = vpop.f32.mrb[0].mxu0
  %v446 = vadd.f32 %v104, %v445
  %v447 = vpop.f32.mrb[0].mxu0
  %448 = vmatprep.mubr.f32.mxu0 0.0
  %449 = vmatmul.mubr.f32.gmra.mrb[0].mxu0 %v159
  %v450 = vpop.f32.mrb[0].mxu0
  %v451 = vadd.f32 %v104, %v450
  %v452 = vpop.f32.mrb[0].mxu0
  %453 = vmatprep.mubr.f32.mxu0 0.0
  %454 = vmatmul.mubr.f32.gmra.mrb[0].mxu0 %v162
  %v455 = vpop.f32.mrb[0].mxu0
  %v456 = vadd.f32 %v104, %v455
  %v457 = vpop.f32.mrb[0].mxu0
  %458 = vmatprep.mubr.f32.mxu0 0.0
  %459 = vmatmul.mubr.f32.gmra.mrb[0].mxu0 %v165
  %v460 = vpop.f32.mrb[0].mxu0
  %v461 = vadd.f32 %v104, %v460
  %v462 = vpop.f32.mrb[0].mxu0
  %463 = vmatprep.mubr.f32.mxu0 0.0
  %464 = vmatmul.mubr.f32.gmra.mrb[0].mxu0 %v168
  %v465 = vpop.f32.mrb[0].mxu0
  %v466 = vadd.f32 %v104, %v465
  %v467 = vpop.f32.mrb[0].mxu0
  %468 = vmatprep.mubr.f32.mxu0 0.0
  %469 = vmatmul.mubr.f32.gmra.mrb[0].mxu0 %v171
  %v470 = vpop.f32.mrb[0].mxu0
  %v471 = vadd.f32 %v104, %v470
  %v472 = vpop.f32.mrb[0].mxu0
  %473 = vmatprep.mubr.f32.mxu0 0.0
  %474 = vmatmul.mubr.f32.gmra.mrb[0].mxu0 %v174
  %v475 = vpop.f32.mrb[0].mxu0
  %v476 = vadd.f32 %v104, %v475
  %v477 = vpop.f32.mrb[0].mxu0
  %478 = vmatprep.mubr.f32.mxu0 0.0
  %479 = vmatmul.mubr.f32.gmra.mrb[0].mxu0 %v177
  %v480 = vpop.f32.mrb[0].mxu0
  %v481 = vadd.f32 %v104, %v480
  %v482 = vpop.f32.mrb[0].mxu0
  %483 = vmatprep.mubr.f32.mxu0 0.0
  %484 = vmatmul.mubr.f32.gmra.mrb[0].mxu0 %v180
  %v485 = vpop.f32.mrb[0].mxu0
  %v486 = vadd.f32 %v104, %v485
  %v487 = vpop.f32.mrb[0].mxu0
  %488 = vmatprep.mubr.f32.mxu0 0.0
  %489 = vmatmul.mubr.f32.gmra.mrb[0].mxu0 %v183
  %v490 = vpop.f32.mrb[0].mxu0
  %v491 = vadd.f32 %v104, %v490
  %v492 = vpop.f32.mrb[0].mxu0
  %493 = vmatprep.mubr.f32.mxu0 0.0
  %494 = vmatmul.mubr.f32.gmra.mrb[0].mxu0 %v186
  %v495 = vpop.f32.mrb[0].mxu0
  %v496 = vadd.f32 %v104, %v495
  %v497 = vpop.f32.mrb[0].mxu0
  %498 = vmatprep.mubr.f32.mxu0 0.0
  %499 = vmatmul.mubr.f32.gmra.mrb[0].mxu0 %v189
  %v500 = vpop.f32.mrb[0].mxu0
  %v501 = vadd.f32 %v104, %v500
  %v502 = vpop.f32.mrb[0].mxu0
  %503 = vmatprep.mubr.f32.mxu0 0.0
  %504 = vmatmul.mubr.f32.gmra.mrb[0].mxu0 %v192
  %v505 = vpop.f32.mrb[0].mxu0
  %v506 = vadd.f32 %v104, %v505
  %v507 = vpop.f32.mrb[0].mxu0
  %508 = vmatprep.mubr.f32.mxu0 0.0
  %509 = vmatmul.mubr.f32.gmra.mrb[0].mxu0 %v195
  %v510 = vpop.f32.mrb[0].mxu0
  %v511 = vadd.f32 %v104, %v510
  %v512 = vpop.f32.mrb[0].mxu0
  %513 = vmatprep.mubr.f32.mxu0 0.0
  %514 = vmatmul.mubr.f32.gmra.mrb[0].mxu0 %v198
  %v515 = vpop.f32.mrb[0].mxu0
  %v516 = vadd.f32 %v104, %v515
  %v517 = vpop.f32.mrb[0].mxu0
  %518 = vmatprep.mubr.f32.mxu0 0.0
  %519 = vmatmul.mubr.f32.gmra.mrb[0].mxu0 %v201
  %v520 = vpop.f32.mrb[0].mxu0
  %v521 = vadd.f32 %v104, %v520
  %v522 = vpop.f32.mrb[0].mxu0
  %523 = vmatprep.mubr.f32.mxu0 0.0
  %524 = vmatmul.mubr.f32.gmra.mrb[0].mxu0 %v204
  %v525 = vpop.f32.mrb[0].mxu0
  %v526 = vadd.f32 %v104, %v525
  %v527 = vpop.f32.mrb[0].mxu0
  %528 = vmatprep.mubr.f32.mxu0 0.0
  %529 = vmatmul.mubr.f32.gmra.mrb[0].mxu0 %v207
  %v530 = vpop.f32.mrb[0].mxu0
  %v531 = vadd.f32 %v104, %v530
  %v532 = vpop.f32.mrb[0].mxu0
  %533 = vmatprep.mubr.f32.mxu0 0.0
  %534 = vmatmul.mubr.f32.gmra.mrb[0].mxu0 %v210
  %v535 = vpop.f32.mrb[0].mxu0
  %v536 = vadd.f32 %v104, %v535
  %v537 = vpop.f32.mrb[0].mxu0
  %538 = vmatprep.mubr.f32.mxu0 0.0
  %539 = vmatmul.mubr.f32.gmra.mrb[0].mxu0 %v213
  %v540 = vpop.f32.mrb[0].mxu0
  %v541 = vadd.f32 %v104, %v540
  %v542 = vpop.f32.mrb[0].mxu0
  %543 = vmatprep.mubr.f32.mxu0 0.0
  %544 = vmatmul.mubr.f32.gmra.mrb[0].mxu0 %v216
  %v545 = vpop.f32.mrb[0].mxu0
  %v546 = vadd.f32 %v104, %v545
  %v547 = vpop.f32.mrb[0].mxu0
  %548 = vmatprep.mubr.f32.mxu0 0.0
  %549 = vmatmul.mubr.f32.gmra.mrb[0].mxu0 %v219
  %v550 = vpop.f32.mrb[0].mxu0
  %v551 = vadd.f32 %v104, %v550
  %v552 = vpop.f32.mrb[0].mxu0
  %553 = vmatprep.mubr.f32.mxu0 0.0
  %554 = vmatmul.mubr.f32.gmra.mrb[0].mxu0 %v222
  %v555 = vpop.f32.mrb[0].mxu0
  %v556 = vadd.f32 %v104, %v555
  %v557 = vpop.f32.mrb[0].mxu0
  %558 = vmatprep.mubr.f32.mxu0 0.0
  %559 = vmatmul.mubr.f32.gmra.mrb[0].mxu0 %v225
  %v560 = vpop.f32.mrb[0].mxu0
  %v561 = vadd.f32 %v104, %v560
  %v562 = vpop.f32.mrb[0].mxu0
  %563 = vmatprep.mubr.f32.mxu0 0.0
  %564 = vmatmul.mubr.f32.gmra.mrb[0].mxu0 %v228
  %v565 = vpop.f32.mrb[0].mxu0
  %v566 = vadd.f32 %v104, %v565
  %v567 = vpop.f32.mrb[0].mxu0
  %568 = vmatprep.mubr.f32.mxu0 0.0
  %569 = vmatmul.mubr.f32.gmra.mrb[0].mxu0 %v231
  %v570 = vpop.f32.mrb[0].mxu0
  %v571 = vadd.f32 %v104, %v570
  %v572 = vpop.f32.mrb[0].mxu0
  %573 = vmatprep.mubr.f32.mxu0 0.0
  %574 = vmatmul.mubr.f32.gmra.mrb[0].mxu0 %v234
  %v575 = vpop.f32.mrb[0].mxu0
  %v576 = vadd.f32 %v104, %v575
  %v577 = vpop.f32.mrb[0].mxu0
  %578 = vmatprep.mubr.f32.mxu0 0.0
  %579 = vmatmul.mubr.f32.gmra.mrb[0].mxu0 %v237
  %v580 = vpop.f32.mrb[0].mxu0
  %v581 = vadd.f32 %v104, %v580
  %v582 = vpop.f32.mrb[0].mxu0
  %583 = vmatprep.mubr.f32.mxu0 0.0
  %584 = vmatmul.mubr.f32.gmra.mrb[0].mxu0 %v240
  %v585 = vpop.f32.mrb[0].mxu0
  %v586 = vadd.f32 %v104, %v585
  %v587 = vpop.f32.mrb[0].mxu0
  %588 = vmatprep.mubr.f32.mxu0 0.0
  %589 = vmatmul.mubr.f32.gmra.mrb[0].mxu0 %v243
  %v590 = vpop.f32.mrb[0].mxu0
  %v591 = vadd.f32 %v104, %v590
  %v592 = vpop.f32.mrb[0].mxu0
  %593 = vmatprep.mubr.f32.mxu0 0.0
  %594 = vmatmul.mubr.f32.gmra.mrb[0].mxu0 %v246
  %v595 = vpop.f32.mrb[0].mxu0
  %v596 = vadd.f32 %v104, %v595
  %v597 = vpop.f32.mrb[0].mxu0
  %598 = vmatprep.mubr.f32.mxu0 0.0
  %599 = vmatmul.mubr.f32.gmra.mrb[0].mxu0 %v249
  %v600 = vpop.f32.mrb[0].mxu0
  %v601 = vadd.f32 %v104, %v600
  %v602 = vpop.f32.mrb[0].mxu0
  %603 = vmatprep.mubr.f32.mxu0 0.0
  %604 = vmatmul.mubr.f32.gmra.mrb[0].mxu0 %v252
  %v605 = vpop.f32.mrb[0].mxu0
  %v606 = vadd.f32 %v104, %v605
  %v607 = vpop.f32.mrb[0].mxu0
  %608 = vmatprep.mubr.f32.mxu0 0.0
  %609 = vmatmul.mubr.f32.gmra.mrb[0].mxu0 %v255
  %v610 = vpop.f32.mrb[0].mxu0
  %v611 = vadd.f32 %v104, %v610
  %v612 = vpop.f32.mrb[0].mxu0
  %613 = vmatprep.mubr.f32.mxu0 0.0
  %614 = vmatmul.mubr.f32.gmra.mrb[0].mxu0 %v258
  %v615 = vpop.f32.mrb[0].mxu0
  %v616 = vadd.f32 %v104, %v615
  %v617 = vpop.f32.mrb[0].mxu0
  %618 = vmatprep.mubr.f32.mxu0 0.0
  %619 = vmatmul.mubr.f32.gmra.mrb[0].mxu0 %v261
  %v620 = vpop.f32.mrb[0].mxu0
  %v621 = vadd.f32 %v104, %v620
  %v622 = vpop.f32.mrb[0].mxu0
  %623 = vmatprep.mubr.f32.mxu0 0.0
  %624 = vmatmul.mubr.f32.gmra.mrb[0].mxu0 %v264
  %v625 = vpop.f32.mrb[0].mxu0
  %v626 = vadd.f32 %v104, %v625
  %v627 = vpop.f32.mrb[0].mxu0
  %628 = vmatprep.mubr.f32.mxu0 0.0
  %629 = vmatmul.mubr.f32.gmra.mrb[0].mxu0 %v267
  %v630 = vpop.f32.mrb[0].mxu0
  %v631 = vadd.f32 %v104, %v630
  %v632 = vpop.f32.mrb[0].mxu0
  %633 = vmatprep.mubr.f32.mxu0 0.0
  %634 = vmatmul.mubr.f32.gmra.mrb[0].mxu0 %v270
  %v635 = vpop.f32.mrb[0].mxu0
  %v636 = vadd.f32 %v104, %v635
  %v637 = vpop.f32.mrb[0].mxu0
  %638 = vmatprep.mubr.f32.mxu0 0.0
  %639 = vmatmul.mubr.f32.gmra.mrb[0].mxu0 %v273
  %v640 = vpop.f32.mrb[0].mxu0
  %v641 = vadd.f32 %v104, %v640
  %v642 = vpop.f32.mrb[0].mxu0
  %643 = vmatprep.mubr.f32.mxu0 0.0
  %644 = vmatmul.mubr.f32.gmra.mrb[0].mxu0 %v276
  %v645 = vpop.f32.mrb[0].mxu0
  %v646 = vadd.f32 %v104, %v645
  %v647 = vpop.f32.mrb[0].mxu0
  %648 = vmatprep.mubr.f32.mxu0 0.0
  %649 = vmatmul.mubr.f32.gmra.mrb[0].mxu0 %v279
  %v650 = vpop.f32.mrb[0].mxu0
  %v651 = vadd.f32 %v104, %v650
  %v652 = vpop.f32.mrb[0].mxu0
  %653 = vmatprep.mubr.f32.mxu0 0.0
  %654 = vmatmul.mubr.f32.gmra.mrb[0].mxu0 %v282
  %v655 = vpop.f32.mrb[0].mxu0
  %v656 = vadd.f32 %v104, %v655
  %v657 = vpop.f32.mrb[0].mxu0
  %658 = vmatprep.mubr.f32.mxu0 0.0
  %659 = vmatmul.mubr.f32.gmra.mrb[0].mxu0 %v285
  %v660 = vpop.f32.mrb[0].mxu0
  %v661 = vadd.f32 %v104, %v660
  %v662 = vpop.f32.mrb[0].mxu0
  %663 = vmatprep.mubr.f32.mxu0 0.0
  %664 = vmatmul.mubr.f32.gmra.mrb[0].mxu0 %v288
  %v665 = vpop.f32.mrb[0].mxu0
  %v666 = vadd.f32 %v104, %v665
  %v667 = vpop.f32.mrb[0].mxu0
  %668 = vmatprep.mubr.f32.mxu0 0.0
  %669 = vmatmul.mubr.f32.gmra.mrb[0].mxu0 %v291
  %v670 = vpop.f32.mrb[0].mxu0
  %v671 = vadd.f32 %v104, %v670
  %v672 = vpop.f32.mrb[0].mxu0
  %673 = vmatprep.mubr.f32.mxu0 0.0
  %674 = vmatmul.mubr.f32.gmra.mrb[0].mxu0 %v294
  %v675 = vpop.f32.mrb[0].mxu0
  %v676 = vadd.f32 %v104, %v675
  %v677 = vpop.f32.mrb[0].mxu0
  %678 = vmatprep.mubr.f32.mxu0 0.0
  %679 = vmatmul.mubr.f32.gmra.mrb[0].mxu0 %v297
  %v680 = vpop.f32.mrb[0].mxu0
  %v681 = vadd.f32 %v104, %v680
  %v682 = vpop.f32.mrb[0].mxu0
  %683 = vdwg.mxu0
  %v684 = vld [vmem:[%s1] sm:$0xff]
  %v685 = vld [vmem:[%s1 + $0x8] sm:$0xff]
  %v686 = vld [vmem:[%s1 + $0x10] sm:$0xff]
  %v687 = vld [vmem:[%s1 + $0x18] sm:$0xff]
  %v688 = vld [vmem:[%s1 + $0x20] sm:$0xff]
  %v689 = vld [vmem:[%s1 + $0x28] sm:$0xff]
  %v690 = vld [vmem:[%s1 + $0x30] sm:$0xff]
  %v691 = vld [vmem:[%s1 + $0x38] sm:$0xff]
  %v692 = vld [vmem:[%s1 + $0x40] sm:$0xff]
  %v693 = vld [vmem:[%s1 + $0x48] sm:$0xff]
  %v694 = vld [vmem:[%s1 + $0x50] sm:$0xff]
  %v695 = vld [vmem:[%s1 + $0x58] sm:$0xff]
  %v696 = vld [vmem:[%s1 + $0x60] sm:$0xff]
  %v697 = vld [vmem:[%s1 + $0x68] sm:$0xff]
  %v698 = vld [vmem:[%s1 + $0x70] sm:$0xff]
  %v699 = vld [vmem:[%s1 + $0x78] sm:$0xff]
  %v700 = vld [vmem:[%s1 + $0x80] sm:$0xff]
  %v701 = vld [vmem:[%s1 + $0x88] sm:$0xff]
  %v702 = vld [vmem:[%s1 + $0x90] sm:$0xff]
  %v703 = vld [vmem:[%s1 + $0x98] sm:$0xff]
  %v704 = vld [vmem:[%s1 + $0xa0] sm:$0xff]
  %v705 = vld [vmem:[%s1 + $0xa8] sm:$0xff]
  %v706 = vld [vmem:[%s1 + $0xb0] sm:$0xff]
  %v707 = vld [vmem:[%s1 + $0xb8] sm:$0xff]
  %v708 = vld [vmem:[%s1 + $0xc0] sm:$0xff]
  %v709 = vld [vmem:[%s1 + $0xc8] sm:$0xff]
  %v710 = vld [vmem:[%s1 + $0xd0] sm:$0xff]
  %v711 = vld [vmem:[%s1 + $0xd8] sm:$0xff]
  %v712 = vld [vmem:[%s1 + $0xe0] sm:$0xff]
  %v713 = vld [vmem:[%s1 + $0xe8] sm:$0xff]
  %v714 = vld [vmem:[%s1 + $0xf0] sm:$0xff]
  %v715 = vld [vmem:[%s1 + $0xf8] sm:$0xff]
  %v716 = vld [vmem:[%s1 + $0x100] sm:$0xff]
  %v717 = vld [vmem:[%s1 + $0x108] sm:$0xff]
  %v718 = vld [vmem:[%s1 + $0x110] sm:$0xff]
  %v719 = vld [vmem:[%s1 + $0x118] sm:$0xff]
  %v720 = vld [vmem:[%s1 + $0x120] sm:$0xff]
  %v721 = vld [vmem:[%s1 + $0x128] sm:$0xff]
  %v722 = vld [vmem:[%s1 + $0x130] sm:$0xff]
  %v723 = vld [vmem:[%s1 + $0x138] sm:$0xff]
  %v724 = vld [vmem:[%s1 + $0x140] sm:$0xff]
  %v725 = vld [vmem:[%s1 + $0x148] sm:$0xff]
  %v726 = vld [vmem:[%s1 + $0x150] sm:$0xff]
  %v727 = vld [vmem:[%s1 + $0x158] sm:$0xff]
  %v728 = vld [vmem:[%s1 + $0x160] sm:$0xff]
  %v729 = vld [vmem:[%s1 + $0x168] sm:$0xff]
  %v730 = vld [vmem:[%s1 + $0x170] sm:$0xff]
  %v731 = vld [vmem:[%s1 + $0x178] sm:$0xff]
  %v732 = vld [vmem:[%s1 + $0x180] sm:$0xff]
  %v733 = vld [vmem:[%s1 + $0x188] sm:$0xff]
  %v734 = vld [vmem:[%s1 + $0x190] sm:$0xff]
  %v735 = vld [vmem:[%s1 + $0x198] sm:$0xff]
  %v736 = vld [vmem:[%s1 + $0x1a0] sm:$0xff]
  %v737 = vld [vmem:[%s1 + $0x1a8] sm:$0xff]
  %v738 = vld [vmem:[%s1 + $0x1b0] sm:$0xff]
  %v739 = vld [vmem:[%s1 + $0x1b8] sm:$0xff]
  %v740 = vld [vmem:[%s1 + $0x1c0] sm:$0xff]
  %v741 = vld [vmem:[%s1 + $0x1c8] sm:$0xff]
  %v742 = vld [vmem:[%s1 + $0x1d0] sm:$0xff]
  %v743 = vld [vmem:[%s1 + $0x1d8] sm:$0xff]
  %v744 = vld [vmem:[%s1 + $0x1e0] sm:$0xff]
  %v745 = vld [vmem:[%s1 + $0x1e8] sm:$0xff]
  %v746 = vld [vmem:[%s1 + $0x1f0] sm:$0xff]
  %v747 = vld [vmem:[%s1 + $0x1f8] sm:$0xff]
  %v748 = vadd.f32 %v366, %v684
  %v749 = vadd.f32 %v371, %v685
  %v750 = vadd.f32 %v376, %v686
  %v751 = vadd.f32 %v381, %v687
  %v752 = vadd.f32 %v386, %v688
  %v753 = vadd.f32 %v391, %v689
  %v754 = vadd.f32 %v396, %v690
  %v755 = vadd.f32 %v401, %v691
  %v756 = vadd.f32 %v406, %v692
  %v757 = vadd.f32 %v411, %v693
  %v758 = vadd.f32 %v416, %v694
  %v759 = vadd.f32 %v421, %v695
  %v760 = vadd.f32 %v426, %v696
  %v761 = vadd.f32 %v431, %v697
  %v762 = vadd.f32 %v436, %v698
  %v763 = vadd.f32 %v441, %v699
  %v764 = vadd.f32 %v446, %v700
  %v765 = vadd.f32 %v451, %v701
  %v766 = vadd.f32 %v456, %v702
  %v767 = vadd.f32 %v461, %v703
  %v768 = vadd.f32 %v466, %v704
  %v769 = vadd.f32 %v471, %v705
  %v770 = vadd.f32 %v476, %v706
  %v771 = vadd.f32 %v481, %v707
  %v772 = vadd.f32 %v486, %v708
  %v773 = vadd.f32 %v491, %v709
  %v774 = vadd.f32 %v496, %v710
  %v775 = vadd.f32 %v501, %v711
  %v776 = vadd.f32 %v506, %v712
  %v777 = vadd.f32 %v511, %v713
  %v778 = vadd.f32 %v516, %v714
  %v779 = vadd.f32 %v521, %v715
  %v780 = vadd.f32 %v526, %v716
  %v781 = vadd.f32 %v531, %v717
  %v782 = vadd.f32 %v536, %v718
  %v783 = vadd.f32 %v541, %v719
  %v784 = vadd.f32 %v546, %v720
  %v785 = vadd.f32 %v551, %v721
  %v786 = vadd.f32 %v556, %v722
  %v787 = vadd.f32 %v561, %v723
  %v788 = vadd.f32 %v566, %v724
  %v789 = vadd.f32 %v571, %v725
  %v790 = vadd.f32 %v576, %v726
  %v791 = vadd.f32 %v581, %v727
  %v792 = vadd.f32 %v586, %v728
  %v793 = vadd.f32 %v591, %v729
  %v794 = vadd.f32 %v596, %v730
  %v795 = vadd.f32 %v601, %v731
  %v796 = vadd.f32 %v606, %v732
  %v797 = vadd.f32 %v611, %v733
  %v798 = vadd.f32 %v616, %v734
  %v799 = vadd.f32 %v621, %v735
  %v800 = vadd.f32 %v626, %v736
  %v801 = vadd.f32 %v631, %v737
  %v802 = vadd.f32 %v636, %v738
  %v803 = vadd.f32 %v641, %v739
  %v804 = vadd.f32 %v646, %v740
  %v805 = vadd.f32 %v651, %v741
  %v806 = vadd.f32 %v656, %v742
  %v807 = vadd.f32 %v661, %v743
  %v808 = vadd.f32 %v666, %v744
  %v809 = vadd.f32 %v671, %v745
  %v810 = vadd.f32 %v676, %v746
  %v811 = vadd.f32 %v681, %v747
  %v812 = vmul.f32 %v748, 0.5
  %v813 = vmul.f32 %v749, 0.5
  %v814 = vmul.f32 %v750, 0.5
  %v815 = vmul.f32 %v751, 0.5
  %v816 = vmul.f32 %v752, 0.5
  %v817 = vmul.f32 %v753, 0.5
  %v818 = vmul.f32 %v754, 0.5
  %v819 = vmul.f32 %v755, 0.5
  %v820 = vmul.f32 %v756, 0.5
  %v821 = vmul.f32 %v757, 0.5
  %v822 = vmul.f32 %v758, 0.5
  %v823 = vmul.f32 %v759, 0.5
  %v824 = vmul.f32 %v760, 0.5
  %v825 = vmul.f32 %v761, 0.5
  %v826 = vmul.f32 %v762, 0.5
  %v827 = vmul.f32 %v763, 0.5
  %v828 = vmul.f32 %v764, 0.5
  %v829 = vmul.f32 %v765, 0.5
  %v830 = vmul.f32 %v766, 0.5
  %v831 = vmul.f32 %v767, 0.5
  %v832 = vmul.f32 %v768, 0.5
  %v833 = vmul.f32 %v769, 0.5
  %v834 = vmul.f32 %v770, 0.5
  %v835 = vmul.f32 %v771, 0.5
  %v836 = vmul.f32 %v772, 0.5
  %v837 = vmul.f32 %v773, 0.5
  %v838 = vmul.f32 %v774, 0.5
  %v839 = vmul.f32 %v775, 0.5
  %v840 = vmul.f32 %v776, 0.5
  %v841 = vmul.f32 %v777, 0.5
  %v842 = vmul.f32 %v778, 0.5
  %v843 = vmul.f32 %v779, 0.5
  %v844 = vmul.f32 %v780, 0.5
  %v845 = vmul.f32 %v781, 0.5
  %v846 = vmul.f32 %v782, 0.5
  %v847 = vmul.f32 %v783, 0.5
  %v848 = vmul.f32 %v784, 0.5
  %v849 = vmul.f32 %v785, 0.5
  %v850 = vmul.f32 %v786, 0.5
  %v851 = vmul.f32 %v787, 0.5
  %v852 = vmul.f32 %v788, 0.5
  %v853 = vmul.f32 %v789, 0.5
  %v854 = vmul.f32 %v790, 0.5
  %v855 = vmul.f32 %v791, 0.5
  %v856 = vmul.f32 %v792, 0.5
  %v857 = vmul.f32 %v793, 0.5
  %v858 = vmul.f32 %v794, 0.5
  %v859 = vmul.f32 %v795, 0.5
  %v860 = vmul.f32 %v796, 0.5
  %v861 = vmul.f32 %v797, 0.5
  %v862 = vmul.f32 %v798, 0.5
  %v863 = vmul.f32 %v799, 0.5
  %v864 = vmul.f32 %v800, 0.5
  %v865 = vmul.f32 %v801, 0.5
  %v866 = vmul.f32 %v802, 0.5
  %v867 = vmul.f32 %v803, 0.5
  %v868 = vmul.f32 %v804, 0.5
  %v869 = vmul.f32 %v805, 0.5
  %v870 = vmul.f32 %v806, 0.5
  %v871 = vmul.f32 %v807, 0.5
  %v872 = vmul.f32 %v808, 0.5
  %v873 = vmul.f32 %v809, 0.5
  %v874 = vmul.f32 %v810, 0.5
  %v875 = vmul.f32 %v811, 0.5
  %v876 = vmul.f32 %v748, 0.70710677
  %v877 = vmul.f32 %v749, 0.70710677
  %v878 = vmul.f32 %v750, 0.70710677
  %v879 = vmul.f32 %v751, 0.70710677
  %v880 = vmul.f32 %v752, 0.70710677
  %v881 = vmul.f32 %v753, 0.70710677
  %v882 = vmul.f32 %v754, 0.70710677
  %v883 = vmul.f32 %v755, 0.70710677
  %v884 = vmul.f32 %v756, 0.70710677
  %v885 = vmul.f32 %v757, 0.70710677
  %v886 = vmul.f32 %v758, 0.70710677
  %v887 = vmul.f32 %v759, 0.70710677
  %v888 = vmul.f32 %v760, 0.70710677
  %v889 = vmul.f32 %v761, 0.70710677
  %v890 = vmul.f32 %v762, 0.70710677
  %v891 = vmul.f32 %v763, 0.70710677
  %v892 = vmul.f32 %v764, 0.70710677
  %v893 = vmul.f32 %v765, 0.70710677
  %v894 = vmul.f32 %v766, 0.70710677
  %v895 = vmul.f32 %v767, 0.70710677
  %v896 = vmul.f32 %v768, 0.70710677
  %v897 = vmul.f32 %v769, 0.70710677
  %v898 = vmul.f32 %v770, 0.70710677
  %v899 = vmul.f32 %v771, 0.70710677
  %v900 = vmul.f32 %v772, 0.70710677
  %v901 = vmul.f32 %v773, 0.70710677
  %v902 = vmul.f32 %v774, 0.70710677
  %v903 = vmul.f32 %v775, 0.70710677
  %v904 = vmul.f32 %v776, 0.70710677
  %v905 = vmul.f32 %v777, 0.70710677
  %v906 = vmul.f32 %v778, 0.70710677
  %v907 = vmul.f32 %v779, 0.70710677
  %v908 = vmul.f32 %v780, 0.70710677
  %v909 = vmul.f32 %v781, 0.70710677
  %v910 = vmul.f32 %v782, 0.70710677
  %v911 = vmul.f32 %v783, 0.70710677
  %v912 = vmul.f32 %v784, 0.70710677
  %v913 = vmul.f32 %v785, 0.70710677
  %v914 = vmul.f32 %v786, 0.70710677
  %v915 = vmul.f32 %v787, 0.70710677
  %v916 = vmul.f32 %v788, 0.70710677
  %v917 = vmul.f32 %v789, 0.70710677
  %v918 = vmul.f32 %v790, 0.70710677
  %v919 = vmul.f32 %v791, 0.70710677
  %v920 = vmul.f32 %v792, 0.70710677
  %v921 = vmul.f32 %v793, 0.70710677
  %v922 = vmul.f32 %v794, 0.70710677
  %v923 = vmul.f32 %v795, 0.70710677
  %v924 = vmul.f32 %v796, 0.70710677
  %v925 = vmul.f32 %v797, 0.70710677
  %v926 = vmul.f32 %v798, 0.70710677
  %v927 = vmul.f32 %v799, 0.70710677
  %v928 = vmul.f32 %v800, 0.70710677
  %v929 = vmul.f32 %v801, 0.70710677
  %v930 = vmul.f32 %v802, 0.70710677
  %v931 = vmul.f32 %v803, 0.70710677
  %v932 = vmul.f32 %v804, 0.70710677
  %v933 = vmul.f32 %v805, 0.70710677
  %v934 = vmul.f32 %v806, 0.70710677
  %v935 = vmul.f32 %v807, 0.70710677
  %v936 = vmul.f32 %v808, 0.70710677
  %v937 = vmul.f32 %v809, 0.70710677
  %v938 = vmul.f32 %v810, 0.70710677
  %v939 = vmul.f32 %v811, 0.70710677
  %v940 = verf.f32.pop %v876
  %v941 = verf.f32.pop %v877
  %v942 = verf.f32.pop %v878
  %v943 = verf.f32.pop %v879
  %v944 = verf.f32.pop %v880
  %v945 = verf.f32.pop %v881
  %v946 = verf.f32.pop %v882
  %v947 = verf.f32.pop %v883
  %v948 = verf.f32.pop %v884
  %v949 = verf.f32.pop %v885
  %v950 = verf.f32.pop %v886
  %v951 = verf.f32.pop %v887
  %v952 = verf.f32.pop %v888
  %v953 = verf.f32.pop %v889
  %v954 = verf.f32.pop %v890
  %v955 = verf.f32.pop %v891
  %v956 = verf.f32.pop %v892
  %v957 = verf.f32.pop %v893
  %v958 = verf.f32.pop %v894
  %v959 = verf.f32.pop %v895
  %v960 = verf.f32.pop %v896
  %v961 = verf.f32.pop %v897
  %v962 = verf.f32.pop %v898
  %v963 = verf.f32.pop %v899
  %v964 = verf.f32.pop %v900
  %v965 = verf.f32.pop %v901
  %v966 = verf.f32.pop %v902
  %v967 = verf.f32.pop %v903
  %v968 = verf.f32.pop %v904
  %v969 = verf.f32.pop %v905
  %v970 = verf.f32.pop %v906
  %v971 = verf.f32.pop %v907
  %v972 = verf.f32.pop %v908
  %v973 = verf.f32.pop %v909
  %v974 = verf.f32.pop %v910
  %v975 = verf.f32.pop %v911
  %v976 = verf.f32.pop %v912
  %v977 = verf.f32.pop %v913
  %v978 = verf.f32.pop %v914
  %v979 = verf.f32.pop %v915
  %v980 = verf.f32.pop %v916
  %v981 = verf.f32.pop %v917
  %v982 = verf.f32.pop %v918
  %v983 = verf.f32.pop %v919
  %v984 = verf.f32.pop %v920
  %v985 = verf.f32.pop %v921
  %v986 = verf.f32.pop %v922
  %v987 = verf.f32.pop %v923
  %v988 = verf.f32.pop %v924
  %v989 = verf.f32.pop %v925
  %v990 = verf.f32.pop %v926
  %v991 = verf.f32.pop %v927
  %v992 = verf.f32.pop %v928
  %v993 = verf.f32.pop %v929
  %v994 = verf.f32.pop %v930
  %v995 = verf.f32.pop %v931
  %v996 = verf.f32.pop %v932
  %v997 = verf.f32.pop %v933
  %v998 = verf.f32.pop %v934
  %v999 = verf.f32.pop %v935
  %v1000 = verf.f32.pop %v936
  %v1001 = verf.f32.pop %v937
  %v1002 = verf.f32.pop %v938
  %v1003 = verf.f32.pop %v939
  %v1004 = vadd.f32 %v940, 1.0
  %v1005 = vadd.f32 %v941, 1.0
  %v1006 = vadd.f32 %v942, 1.0
  %v1007 = vadd.f32 %v943, 1.0
  %v1008 = vadd.f32 %v944, 1.0
  %v1009 = vadd.f32 %v945, 1.0
  %v1010 = vadd.f32 %v946, 1.0
  %v1011 = vadd.f32 %v947, 1.0
  %v1012 = vadd.f32 %v948, 1.0
  %v1013 = vadd.f32 %v949, 1.0
  %v1014 = vadd.f32 %v950, 1.0
  %v1015 = vadd.f32 %v951, 1.0
  %v1016 = vadd.f32 %v952, 1.0
  %v1017 = vadd.f32 %v953, 1.0
  %v1018 = vadd.f32 %v954, 1.0
  %v1019 = vadd.f32 %v955, 1.0
  %v1020 = vadd.f32 %v956, 1.0
  %v1021 = vadd.f32 %v957, 1.0
  %v1022 = vadd.f32 %v958, 1.0
  %v1023 = vadd.f32 %v959, 1.0
  %v1024 = vadd.f32 %v960, 1.0
  %v1025 = vadd.f32 %v961, 1.0
  %v1026 = vadd.f32 %v962, 1.0
  %v1027 = vadd.f32 %v963, 1.0
  %v1028 = vadd.f32 %v964, 1.0
  %v1029 = vadd.f32 %v965, 1.0
  %v1030 = vadd.f32 %v966, 1.0
  %v1031 = vadd.f32 %v967, 1.0
  %v1032 = vadd.f32 %v968, 1.0
  %v1033 = vadd.f32 %v969, 1.0
  %v1034 = vadd.f32 %v970, 1.0
  %v1035 = vadd.f32 %v971, 1.0
  %v1036 = vadd.f32 %v972, 1.0
  %v1037 = vadd.f32 %v973, 1.0
  %v1038 = vadd.f32 %v974, 1.0
  %v1039 = vadd.f32 %v975, 1.0
  %v1040 = vadd.f32 %v976, 1.0
  %v1041 = vadd.f32 %v977, 1.0
  %v1042 = vadd.f32 %v978, 1.0
  %v1043 = vadd.f32 %v979, 1.0
  %v1044 = vadd.f32 %v980, 1.0
  %v1045 = vadd.f32 %v981, 1.0
  %v1046 = vadd.f32 %v982, 1.0
  %v1047 = vadd.f32 %v983, 1.0
  %v1048 = vadd.f32 %v984, 1.0
  %v1049 = vadd.f32 %v985, 1.0
  %v1050 = vadd.f32 %v986, 1.0
  %v1051 = vadd.f32 %v987, 1.0
  %v1052 = vadd.f32 %v988, 1.0
  %v1053 = vadd.f32 %v989, 1.0
  %v1054 = vadd.f32 %v990, 1.0
  %v1055 = vadd.f32 %v991, 1.0
  %v1056 = vadd.f32 %v992, 1.0
  %v1057 = vadd.f32 %v993, 1.0
  %v1058 = vadd.f32 %v994, 1.0
  %v1059 = vadd.f32 %v995, 1.0
  %v1060 = vadd.f32 %v996, 1.0
  %v1061 = vadd.f32 %v997, 1.0
  %v1062 = vadd.f32 %v998, 1.0
  %v1063 = vadd.f32 %v999, 1.0
  %v1064 = vadd.f32 %v1000, 1.0
  %v1065 = vadd.f32 %v1001, 1.0
  %v1066 = vadd.f32 %v1002, 1.0
  %v1067 = vadd.f32 %v1003, 1.0
  %v1068 = vmul.f32 %v812, %v1004
  %v1069 = vmul.f32 %v813, %v1005
  %v1070 = vmul.f32 %v814, %v1006
  %v1071 = vmul.f32 %v815, %v1007
  %v1072 = vmul.f32 %v816, %v1008
  %v1073 = vmul.f32 %v817, %v1009
  %v1074 = vmul.f32 %v818, %v1010
  %v1075 = vmul.f32 %v819, %v1011
  %v1076 = vmul.f32 %v820, %v1012
  %v1077 = vmul.f32 %v821, %v1013
  %v1078 = vmul.f32 %v822, %v1014
  %v1079 = vmul.f32 %v823, %v1015
  %v1080 = vmul.f32 %v824, %v1016
  %v1081 = vmul.f32 %v825, %v1017
  %v1082 = vmul.f32 %v826, %v1018
  %v1083 = vmul.f32 %v827, %v1019
  %v1084 = vmul.f32 %v828, %v1020
  %v1085 = vmul.f32 %v829, %v1021
  %v1086 = vmul.f32 %v830, %v1022
  %v1087 = vmul.f32 %v831, %v1023
  %v1088 = vmul.f32 %v832, %v1024
  %v1089 = vmul.f32 %v833, %v1025
  %v1090 = vmul.f32 %v834, %v1026
  %v1091 = vmul.f32 %v835, %v1027
  %v1092 = vmul.f32 %v836, %v1028
  %v1093 = vmul.f32 %v837, %v1029
  %v1094 = vmul.f32 %v838, %v1030
  %v1095 = vmul.f32 %v839, %v1031
  %v1096 = vmul.f32 %v840, %v1032
  %v1097 = vmul.f32 %v841, %v1033
  %v1098 = vmul.f32 %v842, %v1034
  %v1099 = vmul.f32 %v843, %v1035
  %v1100 = vmul.f32 %v844, %v1036
  %v1101 = vmul.f32 %v845, %v1037
  %v1102 = vmul.f32 %v846, %v1038
  %v1103 = vmul.f32 %v847, %v1039
  %v1104 = vmul.f32 %v848, %v1040
  %v1105 = vmul.f32 %v849, %v1041
  %v1106 = vmul.f32 %v850, %v1042
  %v1107 = vmul.f32 %v851, %v1043
  %v1108 = vmul.f32 %v852, %v1044
  %v1109 = vmul.f32 %v853, %v1045
  %v1110 = vmul.f32 %v854, %v1046
  %v1111 = vmul.f32 %v855, %v1047
  %v1112 = vmul.f32 %v856, %v1048
  %v1113 = vmul.f32 %v857, %v1049
  %v1114 = vmul.f32 %v858, %v1050
  %v1115 = vmul.f32 %v859, %v1051
  %v1116 = vmul.f32 %v860, %v1052
  %v1117 = vmul.f32 %v861, %v1053
  %v1118 = vmul.f32 %v862, %v1054
  %v1119 = vmul.f32 %v863, %v1055
  %v1120 = vmul.f32 %v864, %v1056
  %v1121 = vmul.f32 %v865, %v1057
  %v1122 = vmul.f32 %v866, %v1058
  %v1123 = vmul.f32 %v867, %v1059
  %v1124 = vmul.f32 %v868, %v1060
  %v1125 = vmul.f32 %v869, %v1061
  %v1126 = vmul.f32 %v870, %v1062
  %v1127 = vmul.f32 %v871, %v1063
  %v1128 = vmul.f32 %v872, %v1064
  %v1129 = vmul.f32 %v873, %v1065
  %v1130 = vmul.f32 %v874, %v1066
  %v1131 = vmul.f32 %v875, %v1067
  %v1132 = vld [vmem:[%s4] sm:$0xff]
  %v1133 = vld [vmem:[%s4 + $0x8] sm:$0xff]
  %v1134 = vld [vmem:[%s4 + $0x10] sm:$0xff]
  %v1135 = vld [vmem:[%s4 + $0x18] sm:$0xff]
  %v1136 = vld [vmem:[%s5] sm:$0x1]
  %v1138 = vlaneseq
  %v1139 = vshrl.u32 %v1138, 7
  %v1140 = vsub.s32 0, %v1139
  %v1141 = vrot.slane %v1136, %v1140
  %v1144 = vsel %vm106, %v1068, 0
  %v1147 = vsel %vm106, %v1069, 0
  %v1150 = vsel %vm106, %v1070, 0
  %v1153 = vsel %vm106, %v1071, 0
  %v1156 = vsel %vm106, %v1072, 0
  %v1159 = vsel %vm106, %v1073, 0
  %v1162 = vsel %vm106, %v1074, 0
  %v1165 = vsel %vm106, %v1075, 0
  %v1168 = vsel %vm106, %v1076, 0
  %v1171 = vsel %vm106, %v1077, 0
  %v1174 = vsel %vm106, %v1078, 0
  %v1177 = vsel %vm106, %v1079, 0
  %v1180 = vsel %vm106, %v1080, 0
  %v1183 = vsel %vm106, %v1081, 0
  %v1186 = vsel %vm106, %v1082, 0
  %v1189 = vsel %vm106, %v1083, 0
  %v1192 = vsel %vm106, %v1084, 0
  %v1195 = vsel %vm106, %v1085, 0
  %v1198 = vsel %vm106, %v1086, 0
  %v1201 = vsel %vm106, %v1087, 0
  %v1204 = vsel %vm106, %v1088, 0
  %v1207 = vsel %vm106, %v1089, 0
  %v1210 = vsel %vm106, %v1090, 0
  %v1213 = vsel %vm106, %v1091, 0
  %v1216 = vsel %vm106, %v1092, 0
  %v1219 = vsel %vm106, %v1093, 0
  %v1222 = vsel %vm106, %v1094, 0
  %v1225 = vsel %vm106, %v1095, 0
  %v1228 = vsel %vm106, %v1096, 0
  %v1231 = vsel %vm106, %v1097, 0
  %v1234 = vsel %vm106, %v1098, 0
  %v1237 = vsel %vm106, %v1099, 0
  %v1240 = vsel %vm106, %v1100, 0
  %v1243 = vsel %vm106, %v1101, 0
  %v1246 = vsel %vm106, %v1102, 0
  %v1249 = vsel %vm106, %v1103, 0
  %v1252 = vsel %vm106, %v1104, 0
  %v1255 = vsel %vm106, %v1105, 0
  %v1258 = vsel %vm106, %v1106, 0
  %v1261 = vsel %vm106, %v1107, 0
  %v1264 = vsel %vm106, %v1108, 0
  %v1267 = vsel %vm106, %v1109, 0
  %v1270 = vsel %vm106, %v1110, 0
  %v1273 = vsel %vm106, %v1111, 0
  %v1276 = vsel %vm106, %v1112, 0
  %v1279 = vsel %vm106, %v1113, 0
  %v1282 = vsel %vm106, %v1114, 0
  %v1285 = vsel %vm106, %v1115, 0
  %v1288 = vsel %vm106, %v1116, 0
  %v1291 = vsel %vm106, %v1117, 0
  %v1294 = vsel %vm106, %v1118, 0
  %v1297 = vsel %vm106, %v1119, 0
  %v1300 = vsel %vm106, %v1120, 0
  %v1303 = vsel %vm106, %v1121, 0
  %v1306 = vsel %vm106, %v1122, 0
  %v1309 = vsel %vm106, %v1123, 0
  %v1312 = vsel %vm106, %v1124, 0
  %v1315 = vsel %vm106, %v1125, 0
  %v1318 = vsel %vm106, %v1126, 0
  %v1321 = vsel %vm106, %v1127, 0
  %v1324 = vsel %vm106, %v1128, 0
  %v1327 = vsel %vm106, %v1129, 0
  %v1330 = vsel %vm106, %v1130, 0
  %v1333 = vsel %vm106, %v1131, 0
  %1335 = vmatprep.subr.mxu0 0.0
  %1336 = vmatpush1.msra.mxu0 %v1132
  %1337 = vmatprep.subr.mxu0 0.0
  %1338 = vmatpush1.msra.mxu0 %v1133
  %1339 = vmatprep.subr.mxu0 0.0
  %1340 = vmatpush1.msra.mxu0 %v1134
  %1341 = vmatprep.subr.mxu0 0.0
  %1342 = vmatpush1.msra.mxu0 %v1135
  %1343 = vmatprep.subr.mxu0 0.0
  %1344 = vmatpush1.msra.mxu0 0.0
  %1345 = vmatprep.subr.mxu0 0.0
  %1346 = vmatpush1.msra.mxu0 0.0
  %1347 = vmatprep.subr.mxu0 0.0
  %1348 = vmatpush1.msra.mxu0 0.0
  %1349 = vmatprep.subr.mxu0 0.0
  %1350 = vmatpush1.msra.mxu0 0.0
  %1351 = vmatprep.subr.mxu0 0.0
  %1352 = vmatpush1.msra.mxu0 0.0
  %1353 = vmatprep.subr.mxu0 0.0
  %1354 = vmatpush1.msra.mxu0 0.0
  %1355 = vmatprep.subr.mxu0 0.0
  %1356 = vmatpush1.msra.mxu0 0.0
  %1357 = vmatprep.subr.mxu0 0.0
  %1358 = vmatpush1.msra.mxu0 0.0
  %1359 = vmatprep.subr.mxu0 0.0
  %1360 = vmatpush1.msra.mxu0 0.0
  %1361 = vmatprep.subr.mxu0 0.0
  %1362 = vmatpush1.msra.mxu0 0.0
  %1363 = vmatprep.subr.mxu0 0.0
  %1364 = vmatpush1.msra.mxu0 0.0
  %1365 = vmatprep.subr.mxu0 0.0
  %1366 = vmatpush1.msra.mxu0 0.0
  %1367 = vmatprep.subr.mxu0 0.0
  %1368 = vmatpush1.msra.mxu0 0.0
  %1369 = vmatprep.subr.mxu0 0.0
  %1370 = vmatpush1.msra.mxu0 0.0
  %1371 = vmatprep.subr.mxu0 0.0
  %1372 = vmatpush1.msra.mxu0 0.0
  %1373 = vmatprep.subr.mxu0 0.0
  %1374 = vmatpush1.msra.mxu0 0.0
  %1375 = vmatprep.subr.mxu0 0.0
  %1376 = vmatpush1.msra.mxu0 0.0
  %1377 = vmatprep.subr.mxu0 0.0
  %1378 = vmatpush1.msra.mxu0 0.0
  %1379 = vmatprep.subr.mxu0 0.0
  %1380 = vmatpush1.msra.mxu0 0.0
  %1381 = vmatprep.subr.mxu0 0.0
  %1382 = vmatpush1.msra.mxu0 0.0
  %1383 = vmatprep.subr.mxu0 0.0
  %1384 = vmatpush1.msra.mxu0 0.0
  %1385 = vmatprep.subr.mxu0 0.0
  %1386 = vmatpush1.msra.mxu0 0.0
  %1387 = vmatprep.subr.mxu0 0.0
  %1388 = vmatpush1.msra.mxu0 0.0
  %1389 = vmatprep.subr.mxu0 0.0
  %1390 = vmatpush1.msra.mxu0 0.0
  %1391 = vmatprep.subr.mxu0 0.0
  %1392 = vmatpush1.msra.mxu0 0.0
  %1393 = vmatprep.subr.mxu0 0.0
  %1394 = vmatpush1.msra.mxu0 0.0
  %1395 = vmatprep.subr.mxu0 0.0
  %1396 = vmatpush1.msra.mxu0 0.0
  %1397 = vmatprep.subr.mxu0 0.0
  %1398 = vmatpush1.msra.mxu0 0.0
  %1399 = vmatprep.mubr.f32.mxu0 0.0
  %1400 = vmatmul.mubr.f32.gmra.mrb[0].mxu0 %v1144
  %v1401 = vpop.f32.mrb[0].mxu0
  %v1402 = vadd.f32 %v1141, %v1401
  %v1403 = vpop.f32.mrb[0].mxu0
  %1404 = vmatprep.mubr.f32.mxu0 0.0
  %1405 = vmatmul.mubr.f32.gmra.mrb[0].mxu0 %v1147
  %v1406 = vpop.f32.mrb[0].mxu0
  %v1407 = vadd.f32 %v1141, %v1406
  %v1408 = vpop.f32.mrb[0].mxu0
  %1409 = vmatprep.mubr.f32.mxu0 0.0
  %1410 = vmatmul.mubr.f32.gmra.mrb[0].mxu0 %v1150
  %v1411 = vpop.f32.mrb[0].mxu0
  %v1412 = vadd.f32 %v1141, %v1411
  %v1413 = vpop.f32.mrb[0].mxu0
  %1414 = vmatprep.mubr.f32.mxu0 0.0
  %1415 = vmatmul.mubr.f32.gmra.mrb[0].mxu0 %v1153
  %v1416 = vpop.f32.mrb[0].mxu0
  %v1417 = vadd.f32 %v1141, %v1416
  %v1418 = vpop.f32.mrb[0].mxu0
  %1419 = vmatprep.mubr.f32.mxu0 0.0
  %1420 = vmatmul.mubr.f32.gmra.mrb[0].mxu0 %v1156
  %v1421 = vpop.f32.mrb[0].mxu0
  %v1422 = vadd.f32 %v1141, %v1421
  %v1423 = vpop.f32.mrb[0].mxu0
  %1424 = vmatprep.mubr.f32.mxu0 0.0
  %1425 = vmatmul.mubr.f32.gmra.mrb[0].mxu0 %v1159
  %v1426 = vpop.f32.mrb[0].mxu0
  %v1427 = vadd.f32 %v1141, %v1426
  %v1428 = vpop.f32.mrb[0].mxu0
  %1429 = vmatprep.mubr.f32.mxu0 0.0
  %1430 = vmatmul.mubr.f32.gmra.mrb[0].mxu0 %v1162
  %v1431 = vpop.f32.mrb[0].mxu0
  %v1432 = vadd.f32 %v1141, %v1431
  %v1433 = vpop.f32.mrb[0].mxu0
  %1434 = vmatprep.mubr.f32.mxu0 0.0
  %1435 = vmatmul.mubr.f32.gmra.mrb[0].mxu0 %v1165
  %v1436 = vpop.f32.mrb[0].mxu0
  %v1437 = vadd.f32 %v1141, %v1436
  %v1438 = vpop.f32.mrb[0].mxu0
  %1439 = vmatprep.mubr.f32.mxu0 0.0
  %1440 = vmatmul.mubr.f32.gmra.mrb[0].mxu0 %v1168
  %v1441 = vpop.f32.mrb[0].mxu0
  %v1442 = vadd.f32 %v1141, %v1441
  %v1443 = vpop.f32.mrb[0].mxu0
  %1444 = vmatprep.mubr.f32.mxu0 0.0
  %1445 = vmatmul.mubr.f32.gmra.mrb[0].mxu0 %v1171
  %v1446 = vpop.f32.mrb[0].mxu0
  %v1447 = vadd.f32 %v1141, %v1446
  %v1448 = vpop.f32.mrb[0].mxu0
  %1449 = vmatprep.mubr.f32.mxu0 0.0
  %1450 = vmatmul.mubr.f32.gmra.mrb[0].mxu0 %v1174
  %v1451 = vpop.f32.mrb[0].mxu0
  %v1452 = vadd.f32 %v1141, %v1451
  %v1453 = vpop.f32.mrb[0].mxu0
  %1454 = vmatprep.mubr.f32.mxu0 0.0
  %1455 = vmatmul.mubr.f32.gmra.mrb[0].mxu0 %v1177
  %v1456 = vpop.f32.mrb[0].mxu0
  %v1457 = vadd.f32 %v1141, %v1456
  %v1458 = vpop.f32.mrb[0].mxu0
  %1459 = vmatprep.mubr.f32.mxu0 0.0
  %1460 = vmatmul.mubr.f32.gmra.mrb[0].mxu0 %v1180
  %v1461 = vpop.f32.mrb[0].mxu0
  %v1462 = vadd.f32 %v1141, %v1461
  %v1463 = vpop.f32.mrb[0].mxu0
  %1464 = vmatprep.mubr.f32.mxu0 0.0
  %1465 = vmatmul.mubr.f32.gmra.mrb[0].mxu0 %v1183
  %v1466 = vpop.f32.mrb[0].mxu0
  %v1467 = vadd.f32 %v1141, %v1466
  %v1468 = vpop.f32.mrb[0].mxu0
  %1469 = vmatprep.mubr.f32.mxu0 0.0
  %1470 = vmatmul.mubr.f32.gmra.mrb[0].mxu0 %v1186
  %v1471 = vpop.f32.mrb[0].mxu0
  %v1472 = vadd.f32 %v1141, %v1471
  %v1473 = vpop.f32.mrb[0].mxu0
  %1474 = vmatprep.mubr.f32.mxu0 0.0
  %1475 = vmatmul.mubr.f32.gmra.mrb[0].mxu0 %v1189
  %v1476 = vpop.f32.mrb[0].mxu0
  %v1477 = vadd.f32 %v1141, %v1476
  %v1478 = vpop.f32.mrb[0].mxu0
  %1479 = vmatprep.mubr.f32.mxu0 0.0
  %1480 = vmatmul.mubr.f32.gmra.mrb[0].mxu0 %v1192
  %v1481 = vpop.f32.mrb[0].mxu0
  %v1482 = vadd.f32 %v1141, %v1481
  %v1483 = vpop.f32.mrb[0].mxu0
  %1484 = vmatprep.mubr.f32.mxu0 0.0
  %1485 = vmatmul.mubr.f32.gmra.mrb[0].mxu0 %v1195
  %v1486 = vpop.f32.mrb[0].mxu0
  %v1487 = vadd.f32 %v1141, %v1486
  %v1488 = vpop.f32.mrb[0].mxu0
  %1489 = vmatprep.mubr.f32.mxu0 0.0
  %1490 = vmatmul.mubr.f32.gmra.mrb[0].mxu0 %v1198
  %v1491 = vpop.f32.mrb[0].mxu0
  %v1492 = vadd.f32 %v1141, %v1491
  %v1493 = vpop.f32.mrb[0].mxu0
  %1494 = vmatprep.mubr.f32.mxu0 0.0
  %1495 = vmatmul.mubr.f32.gmra.mrb[0].mxu0 %v1201
  %v1496 = vpop.f32.mrb[0].mxu0
  %v1497 = vadd.f32 %v1141, %v1496
  %v1498 = vpop.f32.mrb[0].mxu0
  %1499 = vmatprep.mubr.f32.mxu0 0.0
  %1500 = vmatmul.mubr.f32.gmra.mrb[0].mxu0 %v1204
  %v1501 = vpop.f32.mrb[0].mxu0
  %v1502 = vadd.f32 %v1141, %v1501
  %v1503 = vpop.f32.mrb[0].mxu0
  %1504 = vmatprep.mubr.f32.mxu0 0.0
  %1505 = vmatmul.mubr.f32.gmra.mrb[0].mxu0 %v1207
  %v1506 = vpop.f32.mrb[0].mxu0
  %v1507 = vadd.f32 %v1141, %v1506
  %v1508 = vpop.f32.mrb[0].mxu0
  %1509 = vmatprep.mubr.f32.mxu0 0.0
  %1510 = vmatmul.mubr.f32.gmra.mrb[0].mxu0 %v1210
  %v1511 = vpop.f32.mrb[0].mxu0
  %v1512 = vadd.f32 %v1141, %v1511
  %v1513 = vpop.f32.mrb[0].mxu0
  %1514 = vmatprep.mubr.f32.mxu0 0.0
  %1515 = vmatmul.mubr.f32.gmra.mrb[0].mxu0 %v1213
  %v1516 = vpop.f32.mrb[0].mxu0
  %v1517 = vadd.f32 %v1141, %v1516
  %v1518 = vpop.f32.mrb[0].mxu0
  %1519 = vmatprep.mubr.f32.mxu0 0.0
  %1520 = vmatmul.mubr.f32.gmra.mrb[0].mxu0 %v1216
  %v1521 = vpop.f32.mrb[0].mxu0
  %v1522 = vadd.f32 %v1141, %v1521
  %v1523 = vpop.f32.mrb[0].mxu0
  %1524 = vmatprep.mubr.f32.mxu0 0.0
  %1525 = vmatmul.mubr.f32.gmra.mrb[0].mxu0 %v1219
  %v1526 = vpop.f32.mrb[0].mxu0
  %v1527 = vadd.f32 %v1141, %v1526
  %v1528 = vpop.f32.mrb[0].mxu0
  %1529 = vmatprep.mubr.f32.mxu0 0.0
  %1530 = vmatmul.mubr.f32.gmra.mrb[0].mxu0 %v1222
  %v1531 = vpop.f32.mrb[0].mxu0
  %v1532 = vadd.f32 %v1141, %v1531
  %v1533 = vpop.f32.mrb[0].mxu0
  %1534 = vmatprep.mubr.f32.mxu0 0.0
  %1535 = vmatmul.mubr.f32.gmra.mrb[0].mxu0 %v1225
  %v1536 = vpop.f32.mrb[0].mxu0
  %v1537 = vadd.f32 %v1141, %v1536
  %v1538 = vpop.f32.mrb[0].mxu0
  %1539 = vmatprep.mubr.f32.mxu0 0.0
  %1540 = vmatmul.mubr.f32.gmra.mrb[0].mxu0 %v1228
  %v1541 = vpop.f32.mrb[0].mxu0
  %v1542 = vadd.f32 %v1141, %v1541
  %v1543 = vpop.f32.mrb[0].mxu0
  %1544 = vmatprep.mubr.f32.mxu0 0.0
  %1545 = vmatmul.mubr.f32.gmra.mrb[0].mxu0 %v1231
  %v1546 = vpop.f32.mrb[0].mxu0
  %v1547 = vadd.f32 %v1141, %v1546
  %v1548 = vpop.f32.mrb[0].mxu0
  %1549 = vmatprep.mubr.f32.mxu0 0.0
  %1550 = vmatmul.mubr.f32.gmra.mrb[0].mxu0 %v1234
  %v1551 = vpop.f32.mrb[0].mxu0
  %v1552 = vadd.f32 %v1141, %v1551
  %v1553 = vpop.f32.mrb[0].mxu0
  %1554 = vmatprep.mubr.f32.mxu0 0.0
  %1555 = vmatmul.mubr.f32.gmra.mrb[0].mxu0 %v1237
  %v1556 = vpop.f32.mrb[0].mxu0
  %v1557 = vadd.f32 %v1141, %v1556
  %v1558 = vpop.f32.mrb[0].mxu0
  %1559 = vmatprep.mubr.f32.mxu0 0.0
  %1560 = vmatmul.mubr.f32.gmra.mrb[0].mxu0 %v1240
  %v1561 = vpop.f32.mrb[0].mxu0
  %v1562 = vadd.f32 %v1141, %v1561
  %v1563 = vpop.f32.mrb[0].mxu0
  %1564 = vmatprep.mubr.f32.mxu0 0.0
  %1565 = vmatmul.mubr.f32.gmra.mrb[0].mxu0 %v1243
  %v1566 = vpop.f32.mrb[0].mxu0
  %v1567 = vadd.f32 %v1141, %v1566
  %v1568 = vpop.f32.mrb[0].mxu0
  %1569 = vmatprep.mubr.f32.mxu0 0.0
  %1570 = vmatmul.mubr.f32.gmra.mrb[0].mxu0 %v1246
  %v1571 = vpop.f32.mrb[0].mxu0
  %v1572 = vadd.f32 %v1141, %v1571
  %v1573 = vpop.f32.mrb[0].mxu0
  %1574 = vmatprep.mubr.f32.mxu0 0.0
  %1575 = vmatmul.mubr.f32.gmra.mrb[0].mxu0 %v1249
  %v1576 = vpop.f32.mrb[0].mxu0
  %v1577 = vadd.f32 %v1141, %v1576
  %v1578 = vpop.f32.mrb[0].mxu0
  %1579 = vmatprep.mubr.f32.mxu0 0.0
  %1580 = vmatmul.mubr.f32.gmra.mrb[0].mxu0 %v1252
  %v1581 = vpop.f32.mrb[0].mxu0
  %v1582 = vadd.f32 %v1141, %v1581
  %v1583 = vpop.f32.mrb[0].mxu0
  %1584 = vmatprep.mubr.f32.mxu0 0.0
  %1585 = vmatmul.mubr.f32.gmra.mrb[0].mxu0 %v1255
  %v1586 = vpop.f32.mrb[0].mxu0
  %v1587 = vadd.f32 %v1141, %v1586
  %v1588 = vpop.f32.mrb[0].mxu0
  %1589 = vmatprep.mubr.f32.mxu0 0.0
  %1590 = vmatmul.mubr.f32.gmra.mrb[0].mxu0 %v1258
  %v1591 = vpop.f32.mrb[0].mxu0
  %v1592 = vadd.f32 %v1141, %v1591
  %v1593 = vpop.f32.mrb[0].mxu0
  %1594 = vmatprep.mubr.f32.mxu0 0.0
  %1595 = vmatmul.mubr.f32.gmra.mrb[0].mxu0 %v1261
  %v1596 = vpop.f32.mrb[0].mxu0
  %v1597 = vadd.f32 %v1141, %v1596
  %v1598 = vpop.f32.mrb[0].mxu0
  %1599 = vmatprep.mubr.f32.mxu0 0.0
  %1600 = vmatmul.mubr.f32.gmra.mrb[0].mxu0 %v1264
  %v1601 = vpop.f32.mrb[0].mxu0
  %v1602 = vadd.f32 %v1141, %v1601
  %v1603 = vpop.f32.mrb[0].mxu0
  %1604 = vmatprep.mubr.f32.mxu0 0.0
  %1605 = vmatmul.mubr.f32.gmra.mrb[0].mxu0 %v1267
  %v1606 = vpop.f32.mrb[0].mxu0
  %v1607 = vadd.f32 %v1141, %v1606
  %v1608 = vpop.f32.mrb[0].mxu0
  %1609 = vmatprep.mubr.f32.mxu0 0.0
  %1610 = vmatmul.mubr.f32.gmra.mrb[0].mxu0 %v1270
  %v1611 = vpop.f32.mrb[0].mxu0
  %v1612 = vadd.f32 %v1141, %v1611
  %v1613 = vpop.f32.mrb[0].mxu0
  %1614 = vmatprep.mubr.f32.mxu0 0.0
  %1615 = vmatmul.mubr.f32.gmra.mrb[0].mxu0 %v1273
  %v1616 = vpop.f32.mrb[0].mxu0
  %v1617 = vadd.f32 %v1141, %v1616
  %v1618 = vpop.f32.mrb[0].mxu0
  %1619 = vmatprep.mubr.f32.mxu0 0.0
  %1620 = vmatmul.mubr.f32.gmra.mrb[0].mxu0 %v1276
  %v1621 = vpop.f32.mrb[0].mxu0
  %v1622 = vadd.f32 %v1141, %v1621
  %v1623 = vpop.f32.mrb[0].mxu0
  %1624 = vmatprep.mubr.f32.mxu0 0.0
  %1625 = vmatmul.mubr.f32.gmra.mrb[0].mxu0 %v1279
  %v1626 = vpop.f32.mrb[0].mxu0
  %v1627 = vadd.f32 %v1141, %v1626
  %v1628 = vpop.f32.mrb[0].mxu0
  %1629 = vmatprep.mubr.f32.mxu0 0.0
  %1630 = vmatmul.mubr.f32.gmra.mrb[0].mxu0 %v1282
  %v1631 = vpop.f32.mrb[0].mxu0
  %v1632 = vadd.f32 %v1141, %v1631
  %v1633 = vpop.f32.mrb[0].mxu0
  %1634 = vmatprep.mubr.f32.mxu0 0.0
  %1635 = vmatmul.mubr.f32.gmra.mrb[0].mxu0 %v1285
  %v1636 = vpop.f32.mrb[0].mxu0
  %v1637 = vadd.f32 %v1141, %v1636
  %v1638 = vpop.f32.mrb[0].mxu0
  %1639 = vmatprep.mubr.f32.mxu0 0.0
  %1640 = vmatmul.mubr.f32.gmra.mrb[0].mxu0 %v1288
  %v1641 = vpop.f32.mrb[0].mxu0
  %v1642 = vadd.f32 %v1141, %v1641
  %v1643 = vpop.f32.mrb[0].mxu0
  %1644 = vmatprep.mubr.f32.mxu0 0.0
  %1645 = vmatmul.mubr.f32.gmra.mrb[0].mxu0 %v1291
  %v1646 = vpop.f32.mrb[0].mxu0
  %v1647 = vadd.f32 %v1141, %v1646
  %v1648 = vpop.f32.mrb[0].mxu0
  %1649 = vmatprep.mubr.f32.mxu0 0.0
  %1650 = vmatmul.mubr.f32.gmra.mrb[0].mxu0 %v1294
  %v1651 = vpop.f32.mrb[0].mxu0
  %v1652 = vadd.f32 %v1141, %v1651
  %v1653 = vpop.f32.mrb[0].mxu0
  %1654 = vmatprep.mubr.f32.mxu0 0.0
  %1655 = vmatmul.mubr.f32.gmra.mrb[0].mxu0 %v1297
  %v1656 = vpop.f32.mrb[0].mxu0
  %v1657 = vadd.f32 %v1141, %v1656
  %v1658 = vpop.f32.mrb[0].mxu0
  %1659 = vmatprep.mubr.f32.mxu0 0.0
  %1660 = vmatmul.mubr.f32.gmra.mrb[0].mxu0 %v1300
  %v1661 = vpop.f32.mrb[0].mxu0
  %v1662 = vadd.f32 %v1141, %v1661
  %v1663 = vpop.f32.mrb[0].mxu0
  %1664 = vmatprep.mubr.f32.mxu0 0.0
  %1665 = vmatmul.mubr.f32.gmra.mrb[0].mxu0 %v1303
  %v1666 = vpop.f32.mrb[0].mxu0
  %v1667 = vadd.f32 %v1141, %v1666
  %v1668 = vpop.f32.mrb[0].mxu0
  %1669 = vmatprep.mubr.f32.mxu0 0.0
  %1670 = vmatmul.mubr.f32.gmra.mrb[0].mxu0 %v1306
  %v1671 = vpop.f32.mrb[0].mxu0
  %v1672 = vadd.f32 %v1141, %v1671
  %v1673 = vpop.f32.mrb[0].mxu0
  %1674 = vmatprep.mubr.f32.mxu0 0.0
  %1675 = vmatmul.mubr.f32.gmra.mrb[0].mxu0 %v1309
  %v1676 = vpop.f32.mrb[0].mxu0
  %v1677 = vadd.f32 %v1141, %v1676
  %v1678 = vpop.f32.mrb[0].mxu0
  %1679 = vmatprep.mubr.f32.mxu0 0.0
  %1680 = vmatmul.mubr.f32.gmra.mrb[0].mxu0 %v1312
  %v1681 = vpop.f32.mrb[0].mxu0
  %v1682 = vadd.f32 %v1141, %v1681
  %v1683 = vpop.f32.mrb[0].mxu0
  %1684 = vmatprep.mubr.f32.mxu0 0.0
  %1685 = vmatmul.mubr.f32.gmra.mrb[0].mxu0 %v1315
  %v1686 = vpop.f32.mrb[0].mxu0
  %v1687 = vadd.f32 %v1141, %v1686
  %v1688 = vpop.f32.mrb[0].mxu0
  %1689 = vmatprep.mubr.f32.mxu0 0.0
  %1690 = vmatmul.mubr.f32.gmra.mrb[0].mxu0 %v1318
  %v1691 = vpop.f32.mrb[0].mxu0
  %v1692 = vadd.f32 %v1141, %v1691
  %v1693 = vpop.f32.mrb[0].mxu0
  %1694 = vmatprep.mubr.f32.mxu0 0.0
  %1695 = vmatmul.mubr.f32.gmra.mrb[0].mxu0 %v1321
  %v1696 = vpop.f32.mrb[0].mxu0
  %v1697 = vadd.f32 %v1141, %v1696
  %v1698 = vpop.f32.mrb[0].mxu0
  %1699 = vmatprep.mubr.f32.mxu0 0.0
  %1700 = vmatmul.mubr.f32.gmra.mrb[0].mxu0 %v1324
  %v1701 = vpop.f32.mrb[0].mxu0
  %v1702 = vadd.f32 %v1141, %v1701
  %v1703 = vpop.f32.mrb[0].mxu0
  %1704 = vmatprep.mubr.f32.mxu0 0.0
  %1705 = vmatmul.mubr.f32.gmra.mrb[0].mxu0 %v1327
  %v1706 = vpop.f32.mrb[0].mxu0
  %v1707 = vadd.f32 %v1141, %v1706
  %v1708 = vpop.f32.mrb[0].mxu0
  %1709 = vmatprep.mubr.f32.mxu0 0.0
  %1710 = vmatmul.mubr.f32.gmra.mrb[0].mxu0 %v1330
  %v1711 = vpop.f32.mrb[0].mxu0
  %v1712 = vadd.f32 %v1141, %v1711
  %v1713 = vpop.f32.mrb[0].mxu0
  %1714 = vmatprep.mubr.f32.mxu0 0.0
  %1715 = vmatmul.mubr.f32.gmra.mrb[0].mxu0 %v1333
  %v1716 = vpop.f32.mrb[0].mxu0
  %v1717 = vadd.f32 %v1141, %v1716
  %v1718 = vpop.f32.mrb[0].mxu0
  %1719 = vdwg.mxu0
  %v1720 = vmax.f32 %v1402, 0.0
  %v1721 = vmax.f32 %v1407, 0.0
  %v1722 = vmax.f32 %v1412, 0.0
  %v1723 = vmax.f32 %v1417, 0.0
  %v1724 = vmax.f32 %v1422, 0.0
  %v1725 = vmax.f32 %v1427, 0.0
  %v1726 = vmax.f32 %v1432, 0.0
  %v1727 = vmax.f32 %v1437, 0.0
  %v1728 = vmax.f32 %v1442, 0.0
  %v1729 = vmax.f32 %v1447, 0.0
  %v1730 = vmax.f32 %v1452, 0.0
  %v1731 = vmax.f32 %v1457, 0.0
  %v1732 = vmax.f32 %v1462, 0.0
  %v1733 = vmax.f32 %v1467, 0.0
  %v1734 = vmax.f32 %v1472, 0.0
  %v1735 = vmax.f32 %v1477, 0.0
  %v1736 = vmax.f32 %v1482, 0.0
  %v1737 = vmax.f32 %v1487, 0.0
  %v1738 = vmax.f32 %v1492, 0.0
  %v1739 = vmax.f32 %v1497, 0.0
  %v1740 = vmax.f32 %v1502, 0.0
  %v1741 = vmax.f32 %v1507, 0.0
  %v1742 = vmax.f32 %v1512, 0.0
  %v1743 = vmax.f32 %v1517, 0.0
  %v1744 = vmax.f32 %v1522, 0.0
  %v1745 = vmax.f32 %v1527, 0.0
  %v1746 = vmax.f32 %v1532, 0.0
  %v1747 = vmax.f32 %v1537, 0.0
  %v1748 = vmax.f32 %v1542, 0.0
  %v1749 = vmax.f32 %v1547, 0.0
  %v1750 = vmax.f32 %v1552, 0.0
  %v1751 = vmax.f32 %v1557, 0.0
  %v1752 = vmax.f32 %v1562, 0.0
  %v1753 = vmax.f32 %v1567, 0.0
  %v1754 = vmax.f32 %v1572, 0.0
  %v1755 = vmax.f32 %v1577, 0.0
  %v1756 = vmax.f32 %v1582, 0.0
  %v1757 = vmax.f32 %v1587, 0.0
  %v1758 = vmax.f32 %v1592, 0.0
  %v1759 = vmax.f32 %v1597, 0.0
  %v1760 = vmax.f32 %v1602, 0.0
  %v1761 = vmax.f32 %v1607, 0.0
  %v1762 = vmax.f32 %v1612, 0.0
  %v1763 = vmax.f32 %v1617, 0.0
  %v1764 = vmax.f32 %v1622, 0.0
  %v1765 = vmax.f32 %v1627, 0.0
  %v1766 = vmax.f32 %v1632, 0.0
  %v1767 = vmax.f32 %v1637, 0.0
  %v1768 = vmax.f32 %v1642, 0.0
  %v1769 = vmax.f32 %v1647, 0.0
  %v1770 = vmax.f32 %v1652, 0.0
  %v1771 = vmax.f32 %v1657, 0.0
  %v1772 = vmax.f32 %v1662, 0.0
  %v1773 = vmax.f32 %v1667, 0.0
  %v1774 = vmax.f32 %v1672, 0.0
  %v1775 = vmax.f32 %v1677, 0.0
  %v1776 = vmax.f32 %v1682, 0.0
  %v1777 = vmax.f32 %v1687, 0.0
  %v1778 = vmax.f32 %v1692, 0.0
  %v1779 = vmax.f32 %v1697, 0.0
  %v1780 = vmax.f32 %v1702, 0.0
  %v1781 = vmax.f32 %v1707, 0.0
  %v1782 = vmax.f32 %v1712, 0.0
  %v1783 = vmax.f32 %v1717, 0.0
  %v1784 = vld [vmem:[%s6] sm:$0x1]
  %v1786 = vlaneseq
  %v1787 = vshrl.u32 %v1786, 7
  %v1788 = vsub.s32 0, %v1787
  %v1789 = vrot.slane %v1784, %v1788
  %v1791 = vmul.f32 %v1720, %v1789
  %v1792 = vmul.f32 %v1721, %v1789
  %v1793 = vmul.f32 %v1722, %v1789
  %v1794 = vmul.f32 %v1723, %v1789
  %v1795 = vmul.f32 %v1724, %v1789
  %v1796 = vmul.f32 %v1725, %v1789
  %v1797 = vmul.f32 %v1726, %v1789
  %v1798 = vmul.f32 %v1727, %v1789
  %v1799 = vmul.f32 %v1728, %v1789
  %v1800 = vmul.f32 %v1729, %v1789
  %v1801 = vmul.f32 %v1730, %v1789
  %v1802 = vmul.f32 %v1731, %v1789
  %v1803 = vmul.f32 %v1732, %v1789
  %v1804 = vmul.f32 %v1733, %v1789
  %v1805 = vmul.f32 %v1734, %v1789
  %v1806 = vmul.f32 %v1735, %v1789
  %v1807 = vmul.f32 %v1736, %v1789
  %v1808 = vmul.f32 %v1737, %v1789
  %v1809 = vmul.f32 %v1738, %v1789
  %v1810 = vmul.f32 %v1739, %v1789
  %v1811 = vmul.f32 %v1740, %v1789
  %v1812 = vmul.f32 %v1741, %v1789
  %v1813 = vmul.f32 %v1742, %v1789
  %v1814 = vmul.f32 %v1743, %v1789
  %v1815 = vmul.f32 %v1744, %v1789
  %v1816 = vmul.f32 %v1745, %v1789
  %v1817 = vmul.f32 %v1746, %v1789
  %v1818 = vmul.f32 %v1747, %v1789
  %v1819 = vmul.f32 %v1748, %v1789
  %v1820 = vmul.f32 %v1749, %v1789
  %v1821 = vmul.f32 %v1750, %v1789
  %v1822 = vmul.f32 %v1751, %v1789
  %v1823 = vmul.f32 %v1752, %v1789
  %v1824 = vmul.f32 %v1753, %v1789
  %v1825 = vmul.f32 %v1754, %v1789
  %v1826 = vmul.f32 %v1755, %v1789
  %v1827 = vmul.f32 %v1756, %v1789
  %v1828 = vmul.f32 %v1757, %v1789
  %v1829 = vmul.f32 %v1758, %v1789
  %v1830 = vmul.f32 %v1759, %v1789
  %v1831 = vmul.f32 %v1760, %v1789
  %v1832 = vmul.f32 %v1761, %v1789
  %v1833 = vmul.f32 %v1762, %v1789
  %v1834 = vmul.f32 %v1763, %v1789
  %v1835 = vmul.f32 %v1764, %v1789
  %v1836 = vmul.f32 %v1765, %v1789
  %v1837 = vmul.f32 %v1766, %v1789
  %v1838 = vmul.f32 %v1767, %v1789
  %v1839 = vmul.f32 %v1768, %v1789
  %v1840 = vmul.f32 %v1769, %v1789
  %v1841 = vmul.f32 %v1770, %v1789
  %v1842 = vmul.f32 %v1771, %v1789
  %v1843 = vmul.f32 %v1772, %v1789
  %v1844 = vmul.f32 %v1773, %v1789
  %v1845 = vmul.f32 %v1774, %v1789
  %v1846 = vmul.f32 %v1775, %v1789
  %v1847 = vmul.f32 %v1776, %v1789
  %v1848 = vmul.f32 %v1777, %v1789
  %v1849 = vmul.f32 %v1778, %v1789
  %v1850 = vmul.f32 %v1779, %v1789
  %v1851 = vmul.f32 %v1780, %v1789
  %v1852 = vmul.f32 %v1781, %v1789
  %v1853 = vmul.f32 %v1782, %v1789
  %v1854 = vmul.f32 %v1783, %v1789
  %1855 = vadd.xlane.f32.xlu0 %v1791
  %v1856 = vpop.xlane.xlu0 %1855
  %1857 = vadd.xlane.f32.xlu0 %v1792
  %v1858 = vpop.xlane.xlu0 %1857
  %1859 = vadd.xlane.f32.xlu0 %v1793
  %v1860 = vpop.xlane.xlu0 %1859
  %1861 = vadd.xlane.f32.xlu0 %v1794
  %v1862 = vpop.xlane.xlu0 %1861
  %1863 = vadd.xlane.f32.xlu0 %v1795
  %v1864 = vpop.xlane.xlu0 %1863
  %1865 = vadd.xlane.f32.xlu0 %v1796
  %v1866 = vpop.xlane.xlu0 %1865
  %1867 = vadd.xlane.f32.xlu0 %v1797
  %v1868 = vpop.xlane.xlu0 %1867
  %1869 = vadd.xlane.f32.xlu0 %v1798
  %v1870 = vpop.xlane.xlu0 %1869
  %1871 = vadd.xlane.f32.xlu0 %v1799
  %v1872 = vpop.xlane.xlu0 %1871
  %1873 = vadd.xlane.f32.xlu0 %v1800
  %v1874 = vpop.xlane.xlu0 %1873
  %1875 = vadd.xlane.f32.xlu0 %v1801
  %v1876 = vpop.xlane.xlu0 %1875
  %1877 = vadd.xlane.f32.xlu0 %v1802
  %v1878 = vpop.xlane.xlu0 %1877
  %1879 = vadd.xlane.f32.xlu0 %v1803
  %v1880 = vpop.xlane.xlu0 %1879
  %1881 = vadd.xlane.f32.xlu0 %v1804
  %v1882 = vpop.xlane.xlu0 %1881
  %1883 = vadd.xlane.f32.xlu0 %v1805
  %v1884 = vpop.xlane.xlu0 %1883
  %1885 = vadd.xlane.f32.xlu0 %v1806
  %v1886 = vpop.xlane.xlu0 %1885
  %1887 = vadd.xlane.f32.xlu0 %v1807
  %v1888 = vpop.xlane.xlu0 %1887
  %1889 = vadd.xlane.f32.xlu0 %v1808
  %v1890 = vpop.xlane.xlu0 %1889
  %1891 = vadd.xlane.f32.xlu0 %v1809
  %v1892 = vpop.xlane.xlu0 %1891
  %1893 = vadd.xlane.f32.xlu0 %v1810
  %v1894 = vpop.xlane.xlu0 %1893
  %1895 = vadd.xlane.f32.xlu0 %v1811
  %v1896 = vpop.xlane.xlu0 %1895
  %1897 = vadd.xlane.f32.xlu0 %v1812
  %v1898 = vpop.xlane.xlu0 %1897
  %1899 = vadd.xlane.f32.xlu0 %v1813
  %v1900 = vpop.xlane.xlu0 %1899
  %1901 = vadd.xlane.f32.xlu0 %v1814
  %v1902 = vpop.xlane.xlu0 %1901
  %1903 = vadd.xlane.f32.xlu0 %v1815
  %v1904 = vpop.xlane.xlu0 %1903
  %1905 = vadd.xlane.f32.xlu0 %v1816
  %v1906 = vpop.xlane.xlu0 %1905
  %1907 = vadd.xlane.f32.xlu0 %v1817
  %v1908 = vpop.xlane.xlu0 %1907
  %1909 = vadd.xlane.f32.xlu0 %v1818
  %v1910 = vpop.xlane.xlu0 %1909
  %1911 = vadd.xlane.f32.xlu0 %v1819
  %v1912 = vpop.xlane.xlu0 %1911
  %1913 = vadd.xlane.f32.xlu0 %v1820
  %v1914 = vpop.xlane.xlu0 %1913
  %1915 = vadd.xlane.f32.xlu0 %v1821
  %v1916 = vpop.xlane.xlu0 %1915
  %1917 = vadd.xlane.f32.xlu0 %v1822
  %v1918 = vpop.xlane.xlu0 %1917
  %1919 = vadd.xlane.f32.xlu0 %v1823
  %v1920 = vpop.xlane.xlu0 %1919
  %1921 = vadd.xlane.f32.xlu0 %v1824
  %v1922 = vpop.xlane.xlu0 %1921
  %1923 = vadd.xlane.f32.xlu0 %v1825
  %v1924 = vpop.xlane.xlu0 %1923
  %1925 = vadd.xlane.f32.xlu0 %v1826
  %v1926 = vpop.xlane.xlu0 %1925
  %1927 = vadd.xlane.f32.xlu0 %v1827
  %v1928 = vpop.xlane.xlu0 %1927
  %1929 = vadd.xlane.f32.xlu0 %v1828
  %v1930 = vpop.xlane.xlu0 %1929
  %1931 = vadd.xlane.f32.xlu0 %v1829
  %v1932 = vpop.xlane.xlu0 %1931
  %1933 = vadd.xlane.f32.xlu0 %v1830
  %v1934 = vpop.xlane.xlu0 %1933
  %1935 = vadd.xlane.f32.xlu0 %v1831
  %v1936 = vpop.xlane.xlu0 %1935
  %1937 = vadd.xlane.f32.xlu0 %v1832
  %v1938 = vpop.xlane.xlu0 %1937
  %1939 = vadd.xlane.f32.xlu0 %v1833
  %v1940 = vpop.xlane.xlu0 %1939
  %1941 = vadd.xlane.f32.xlu0 %v1834
  %v1942 = vpop.xlane.xlu0 %1941
  %1943 = vadd.xlane.f32.xlu0 %v1835
  %v1944 = vpop.xlane.xlu0 %1943
  %1945 = vadd.xlane.f32.xlu0 %v1836
  %v1946 = vpop.xlane.xlu0 %1945
  %1947 = vadd.xlane.f32.xlu0 %v1837
  %v1948 = vpop.xlane.xlu0 %1947
  %1949 = vadd.xlane.f32.xlu0 %v1838
  %v1950 = vpop.xlane.xlu0 %1949
  %1951 = vadd.xlane.f32.xlu0 %v1839
  %v1952 = vpop.xlane.xlu0 %1951
  %1953 = vadd.xlane.f32.xlu0 %v1840
  %v1954 = vpop.xlane.xlu0 %1953
  %1955 = vadd.xlane.f32.xlu0 %v1841
  %v1956 = vpop.xlane.xlu0 %1955
  %1957 = vadd.xlane.f32.xlu0 %v1842
  %v1958 = vpop.xlane.xlu0 %1957
  %1959 = vadd.xlane.f32.xlu0 %v1843
  %v1960 = vpop.xlane.xlu0 %1959
  %1961 = vadd.xlane.f32.xlu0 %v1844
  %v1962 = vpop.xlane.xlu0 %1961
  %1963 = vadd.xlane.f32.xlu0 %v1845
  %v1964 = vpop.xlane.xlu0 %1963
  %1965 = vadd.xlane.f32.xlu0 %v1846
  %v1966 = vpop.xlane.xlu0 %1965
  %1967 = vadd.xlane.f32.xlu0 %v1847
  %v1968 = vpop.xlane.xlu0 %1967
  %1969 = vadd.xlane.f32.xlu0 %v1848
  %v1970 = vpop.xlane.xlu0 %1969
  %1971 = vadd.xlane.f32.xlu0 %v1849
  %v1972 = vpop.xlane.xlu0 %1971
  %1973 = vadd.xlane.f32.xlu0 %v1850
  %v1974 = vpop.xlane.xlu0 %1973
  %1975 = vadd.xlane.f32.xlu0 %v1851
  %v1976 = vpop.xlane.xlu0 %1975
  %1977 = vadd.xlane.f32.xlu0 %v1852
  %v1978 = vpop.xlane.xlu0 %1977
  %1979 = vadd.xlane.f32.xlu0 %v1853
  %v1980 = vpop.xlane.xlu0 %1979
  %1981 = vadd.xlane.f32.xlu0 %v1854
  %v1982 = vpop.xlane.xlu0 %1981
  %v1983 = vld [vmem:[#allocation2] sm:$0x1]
  %v1985 = vlaneseq
  %v1986 = vshrl.u32 %v1985, 7
  %v1987 = vsub.s32 0, %v1986
  %v1988 = vrot.slane %v1983, %v1987
  %v1990 = vadd.f32 %v1856, %v1988
  %v1991 = vadd.f32 %v1858, %v1988
  %v1992 = vadd.f32 %v1860, %v1988
  %v1993 = vadd.f32 %v1862, %v1988
  %v1994 = vadd.f32 %v1864, %v1988
  %v1995 = vadd.f32 %v1866, %v1988
  %v1996 = vadd.f32 %v1868, %v1988
  %v1997 = vadd.f32 %v1870, %v1988
  %v1998 = vadd.f32 %v1872, %v1988
  %v1999 = vadd.f32 %v1874, %v1988
  %v2000 = vadd.f32 %v1876, %v1988
  %v2001 = vadd.f32 %v1878, %v1988
  %v2002 = vadd.f32 %v1880, %v1988
  %v2003 = vadd.f32 %v1882, %v1988
  %v2004 = vadd.f32 %v1884, %v1988
  %v2005 = vadd.f32 %v1886, %v1988
  %v2006 = vadd.f32 %v1888, %v1988
  %v2007 = vadd.f32 %v1890, %v1988
  %v2008 = vadd.f32 %v1892, %v1988
  %v2009 = vadd.f32 %v1894, %v1988
  %v2010 = vadd.f32 %v1896, %v1988
  %v2011 = vadd.f32 %v1898, %v1988
  %v2012 = vadd.f32 %v1900, %v1988
  %v2013 = vadd.f32 %v1902, %v1988
  %v2014 = vadd.f32 %v1904, %v1988
  %v2015 = vadd.f32 %v1906, %v1988
  %v2016 = vadd.f32 %v1908, %v1988
  %v2017 = vadd.f32 %v1910, %v1988
  %v2018 = vadd.f32 %v1912, %v1988
  %v2019 = vadd.f32 %v1914, %v1988
  %v2020 = vadd.f32 %v1916, %v1988
  %v2021 = vadd.f32 %v1918, %v1988
  %v2022 = vadd.f32 %v1920, %v1988
  %v2023 = vadd.f32 %v1922, %v1988
  %v2024 = vadd.f32 %v1924, %v1988
  %v2025 = vadd.f32 %v1926, %v1988
  %v2026 = vadd.f32 %v1928, %v1988
  %v2027 = vadd.f32 %v1930, %v1988
  %v2028 = vadd.f32 %v1932, %v1988
  %v2029 = vadd.f32 %v1934, %v1988
  %v2030 = vadd.f32 %v1936, %v1988
  %v2031 = vadd.f32 %v1938, %v1988
  %v2032 = vadd.f32 %v1940, %v1988
  %v2033 = vadd.f32 %v1942, %v1988
  %v2034 = vadd.f32 %v1944, %v1988
  %v2035 = vadd.f32 %v1946, %v1988
  %v2036 = vadd.f32 %v1948, %v1988
  %v2037 = vadd.f32 %v1950, %v1988
  %v2038 = vadd.f32 %v1952, %v1988
  %v2039 = vadd.f32 %v1954, %v1988
  %v2040 = vadd.f32 %v1956, %v1988
  %v2041 = vadd.f32 %v1958, %v1988
  %v2042 = vadd.f32 %v1960, %v1988
  %v2043 = vadd.f32 %v1962, %v1988
  %v2044 = vadd.f32 %v1964, %v1988
  %v2045 = vadd.f32 %v1966, %v1988
  %v2046 = vadd.f32 %v1968, %v1988
  %v2047 = vadd.f32 %v1970, %v1988
  %v2048 = vadd.f32 %v1972, %v1988
  %v2049 = vadd.f32 %v1974, %v1988
  %v2050 = vadd.f32 %v1976, %v1988
  %v2051 = vadd.f32 %v1978, %v1988
  %v2052 = vadd.f32 %v1980, %v1988
  %v2053 = vadd.f32 %v1982, %v1988
  %vm2054 = vcmask 7168
  %2055 = vst.msk [vmem:[%s8] sm:$0xff] %vm2054, %v1990
  %2056 = vst.msk [vmem:[%s8 + $0x8] sm:$0xff] %vm2054, %v1991
  %2057 = vst.msk [vmem:[%s8 + $0x10] sm:$0xff] %vm2054, %v1992
  %2058 = vst.msk [vmem:[%s8 + $0x18] sm:$0xff] %vm2054, %v1993
  %2059 = vst.msk [vmem:[%s8 + $0x20] sm:$0xff] %vm2054, %v1994
  %2060 = vst.msk [vmem:[%s8 + $0x28] sm:$0xff] %vm2054, %v1995
  %2061 = vst.msk [vmem:[%s8 + $0x30] sm:$0xff] %vm2054, %v1996
  %2062 = vst.msk [vmem:[%s8 + $0x38] sm:$0xff] %vm2054, %v1997
  %2063 = vst.msk [vmem:[%s8 + $0x40] sm:$0xff] %vm2054, %v1998
  %2064 = vst.msk [vmem:[%s8 + $0x48] sm:$0xff] %vm2054, %v1999
  %2065 = vst.msk [vmem:[%s8 + $0x50] sm:$0xff] %vm2054, %v2000
  %2066 = vst.msk [vmem:[%s8 + $0x58] sm:$0xff] %vm2054, %v2001
  %2067 = vst.msk [vmem:[%s8 + $0x60] sm:$0xff] %vm2054, %v2002
  %2068 = vst.msk [vmem:[%s8 + $0x68] sm:$0xff] %vm2054, %v2003
  %2069 = vst.msk [vmem:[%s8 + $0x70] sm:$0xff] %vm2054, %v2004
  %2070 = vst.msk [vmem:[%s8 + $0x78] sm:$0xff] %vm2054, %v2005
  %2071 = vst.msk [vmem:[%s8 + $0x80] sm:$0xff] %vm2054, %v2006
  %2072 = vst.msk [vmem:[%s8 + $0x88] sm:$0xff] %vm2054, %v2007
  %2073 = vst.msk [vmem:[%s8 + $0x90] sm:$0xff] %vm2054, %v2008
  %2074 = vst.msk [vmem:[%s8 + $0x98] sm:$0xff] %vm2054, %v2009
  %2075 = vst.msk [vmem:[%s8 + $0xa0] sm:$0xff] %vm2054, %v2010
  %2076 = vst.msk [vmem:[%s8 + $0xa8] sm:$0xff] %vm2054, %v2011
  %2077 = vst.msk [vmem:[%s8 + $0xb0] sm:$0xff] %vm2054, %v2012
  %2078 = vst.msk [vmem:[%s8 + $0xb8] sm:$0xff] %vm2054, %v2013
  %2079 = vst.msk [vmem:[%s8 + $0xc0] sm:$0xff] %vm2054, %v2014
  %2080 = vst.msk [vmem:[%s8 + $0xc8] sm:$0xff] %vm2054, %v2015
  %2081 = vst.msk [vmem:[%s8 + $0xd0] sm:$0xff] %vm2054, %v2016
  %2082 = vst.msk [vmem:[%s8 + $0xd8] sm:$0xff] %vm2054, %v2017
  %2083 = vst.msk [vmem:[%s8 + $0xe0] sm:$0xff] %vm2054, %v2018
  %2084 = vst.msk [vmem:[%s8 + $0xe8] sm:$0xff] %vm2054, %v2019
  %2085 = vst.msk [vmem:[%s8 + $0xf0] sm:$0xff] %vm2054, %v2020
  %2086 = vst.msk [vmem:[%s8 + $0xf8] sm:$0xff] %vm2054, %v2021
  %2087 = vst.msk [vmem:[%s8 + $0x100] sm:$0xff] %vm2054, %v2022
  %2088 = vst.msk [vmem:[%s8 + $0x108] sm:$0xff] %vm2054, %v2023
  %2089 = vst.msk [vmem:[%s8 + $0x110] sm:$0xff] %vm2054, %v2024
  %2090 = vst.msk [vmem:[%s8 + $0x118] sm:$0xff] %vm2054, %v2025
  %2091 = vst.msk [vmem:[%s8 + $0x120] sm:$0xff] %vm2054, %v2026
  %2092 = vst.msk [vmem:[%s8 + $0x128] sm:$0xff] %vm2054, %v2027
  %2093 = vst.msk [vmem:[%s8 + $0x130] sm:$0xff] %vm2054, %v2028
  %2094 = vst.msk [vmem:[%s8 + $0x138] sm:$0xff] %vm2054, %v2029
  %2095 = vst.msk [vmem:[%s8 + $0x140] sm:$0xff] %vm2054, %v2030
  %2096 = vst.msk [vmem:[%s8 + $0x148] sm:$0xff] %vm2054, %v2031
  %2097 = vst.msk [vmem:[%s8 + $0x150] sm:$0xff] %vm2054, %v2032
  %2098 = vst.msk [vmem:[%s8 + $0x158] sm:$0xff] %vm2054, %v2033
  %2099 = vst.msk [vmem:[%s8 + $0x160] sm:$0xff] %vm2054, %v2034
  %2100 = vst.msk [vmem:[%s8 + $0x168] sm:$0xff] %vm2054, %v2035
  %2101 = vst.msk [vmem:[%s8 + $0x170] sm:$0xff] %vm2054, %v2036
  %2102 = vst.msk [vmem:[%s8 + $0x178] sm:$0xff] %vm2054, %v2037
  %2103 = vst.msk [vmem:[%s8 + $0x180] sm:$0xff] %vm2054, %v2038
  %2104 = vst.msk [vmem:[%s8 + $0x188] sm:$0xff] %vm2054, %v2039
  %2105 = vst.msk [vmem:[%s8 + $0x190] sm:$0xff] %vm2054, %v2040
  %2106 = vst.msk [vmem:[%s8 + $0x198] sm:$0xff] %vm2054, %v2041
  %2107 = vst.msk [vmem:[%s8 + $0x1a0] sm:$0xff] %vm2054, %v2042
  %2108 = vst.msk [vmem:[%s8 + $0x1a8] sm:$0xff] %vm2054, %v2043
  %2109 = vst.msk [vmem:[%s8 + $0x1b0] sm:$0xff] %vm2054, %v2044
  %2110 = vst.msk [vmem:[%s8 + $0x1b8] sm:$0xff] %vm2054, %v2045
  %2111 = vst.msk [vmem:[%s8 + $0x1c0] sm:$0xff] %vm2054, %v2046
  %2112 = vst.msk [vmem:[%s8 + $0x1c8] sm:$0xff] %vm2054, %v2047
  %2113 = vst.msk [vmem:[%s8 + $0x1d0] sm:$0xff] %vm2054, %v2048
  %2114 = vst.msk [vmem:[%s8 + $0x1d8] sm:$0xff] %vm2054, %v2049
  %2115 = vst.msk [vmem:[%s8 + $0x1e0] sm:$0xff] %vm2054, %v2050
  %2116 = vst.msk [vmem:[%s8 + $0x1e8] sm:$0xff] %vm2054, %v2051
  %2117 = vst.msk [vmem:[%s8 + $0x1f0] sm:$0xff] %vm2054, %v2052
  %2118 = vst.msk [vmem:[%s8 + $0x1f8] sm:$0xff] %vm2054, %v2053
  // Predicated region
  $region34: #{fno2d_forward.9} parent=0 // pred_check
    _
  $region35: #{fno2d_forward.9} parent=0 // pred_check_branch
    %2120 = sbr.rel (0) target = $region37
  $region36: #{fno2d_forward.9} parent=0 // pred_region
    _
  $region37: #{fno2d_forward.9} parent=0 // pred_fallthru
    _
  // Predicated region
  $region38: #{fno2d_forward.9} parent=0 // pred_check
    _
  $region39: #{fno2d_forward.9} parent=0 // pred_check_branch
    %2122 = sbr.rel (0) target = $region41
  $region40: #{fno2d_forward.9} parent=0 // pred_region
    _
  $region41: #{fno2d_forward.9} parent=0 // pred_fallthru
    _

</llo_original>
